<compile_context>
chip_gen: v6e
topology: v6e:2x2x1
jax: 0.10.0
libtpu: 0.0.40
codegen_flags: <defaults>
</compile_context>

<pallas_src>
import jax
import jax.numpy as jnp
from jax import lax
from jax.experimental import pallas as pl
from jax.experimental.pallas import tpu as pltpu


# MXU-operand dtype on all generations (f32 accumulation everywhere).
CD = jnp.bfloat16


# ---------------------------------------------------------------------------
# In-kernel helpers (traced inside the Pallas kernel; pure jnp on VMEM arrays).
# ---------------------------------------------------------------------------
def _conv3_taps(h, w_taps, sh_prev, sh_next):
    """Conv1d kernel_size=3, padding=1.  Boundary behaviour (zero vs circular)
    is baked into the host-precomputed shift matrices.

      h       : (Cin, L)      bf16   (channels on sublanes, length on lanes)
      w_taps  : (3, Cout, Cin) bf16  (tap k weights, k=0 -> x[l-1])
      sh_prev : (L, L) bf16 0/1 so that (h @ sh_prev)[:, l] == h[:, l-1]
      sh_next : (L, L) bf16 0/1 so that (h @ sh_next)[:, l] == h[:, l+1]
    -> (Cout, L) f32
    """
    hp = jnp.dot(h, sh_prev, preferred_element_type=jnp.float32).astype(CD)
    hn = jnp.dot(h, sh_next, preferred_element_type=jnp.float32).astype(CD)
    y = jnp.dot(w_taps[0], hp, preferred_element_type=jnp.float32)
    y = y + jnp.dot(w_taps[1], h, preferred_element_type=jnp.float32)
    y = y + jnp.dot(w_taps[2], hn, preferred_element_type=jnp.float32)
    return y


def _deconv4(h, wt, b, sh, il):
    """ConvTranspose1d(kernel_size=4, stride=2, padding=1) in even/odd form.

      h  : (Cin, L)          bf16
      wt : (4, Cout, Cin)    bf16   (tap k slice W[:, :, k].T of PyTorch weight)
      b  : (Cout, 1)         f32
      sh : (2, L, L)         bf16   [0]=prev shift, [1]=next shift (zero bound.)
      il : (2, L, 2L)        bf16   [0] places col m -> 2m, [1] -> 2m+1
    -> (Cout, 2L) f32
    """
    hp = jnp.dot(h, sh[0], preferred_element_type=jnp.float32).astype(CD)
    hn = jnp.dot(h, sh[1], preferred_element_type=jnp.float32).astype(CD)
    y_e = (jnp.dot(wt[1], h, preferred_element_type=jnp.float32)
           + jnp.dot(wt[3], hp, preferred_element_type=jnp.float32))
    y_o = (jnp.dot(wt[2], h, preferred_element_type=jnp.float32)
           + jnp.dot(wt[0], hn, preferred_element_type=jnp.float32))
    y = (jnp.dot(y_e.astype(CD), il[0], preferred_element_type=jnp.float32)
         + jnp.dot(y_o.astype(CD), il[1], preferred_element_type=jnp.float32))
    return y + b


# ---------------------------------------------------------------------------
# The fused decoder kernel: `batch_tile` lane-folded samples per grid step,
# all resident in VMEM, zero intermediate HBM round trips.
# ---------------------------------------------------------------------------
def decoder_kernel(x_ref, w_init_ref, b_init_ref, w_res1_ref, w_res2_ref,
                   circ_ref,
                   wt0_ref, bt0_ref, sh0_ref, il0_ref,
                   wt1_ref, bt1_ref, sh1_ref, il1_ref,
                   wt2_ref, bt2_ref, sh2_ref, il2_ref,
                   wt3_ref, bt3_ref, sh3_ref, il3_ref,
                   o_ref):
    x = x_ref[0]                      # (Cin, Lf) bf16, lane-folded batch tile
    sh0 = sh0_ref[...]                # (2, Lf, Lf) zero-boundary shifts @ Lf
    circ = circ_ref[...]              # (2, Lf, Lf) circular (per-sample) shifts

    # conv_init: Conv1d(Cin -> H, k=3, zero pad, bias).  Reuses stage-0 shifts.
    h = _conv3_taps(x, w_init_ref[...], sh0[0], sh0[1]) + b_init_ref[...]

    # Residual stack (circular-shift matrices hoisted once above the unrolled
    # loop): h += Conv1x1(ReLU(Conv3_circular(ReLU(h))));  final ReLU.
    n_res = w_res1_ref.shape[0]
    for i in range(n_res):
        w1 = w_res1_ref[i]            # (3, R, H) bf16
        w2 = w_res2_ref[i]            # (H, R)    bf16
        r = jnp.maximum(h, 0.0).astype(CD)
        r = _conv3_taps(r, w1, circ[0], circ[1])
        r = jnp.maximum(r, 0.0).astype(CD)
        h = h + jnp.dot(w2, r, preferred_element_type=jnp.float32)
    h = jnp.maximum(h, 0.0)

    # Four ConvTranspose1d(k=4, s=2, p=1) stages; ReLU after the first three.
    h = jnp.maximum(
        _deconv4(h.astype(CD), wt0_ref[...], bt0_ref[...], sh0, il0_ref[...]), 0.0)
    h = jnp.maximum(
        _deconv4(h.astype(CD), wt1_ref[...], bt1_ref[...], sh1_ref[...], il1_ref[...]), 0.0)
    h = jnp.maximum(
        _deconv4(h.astype(CD), wt2_ref[...], bt2_ref[...], sh2_ref[...], il2_ref[...]), 0.0)
    h = _deconv4(h.astype(CD), wt3_ref[...], bt3_ref[...], sh3_ref[...], il3_ref[...])

    o_ref[0] = h.astype(o_ref.dtype)  # (1, 16*Lf), lane-dense


# ---------------------------------------------------------------------------
# Host-side constant builders (tiny, run once under jit/XLA outside the kernel).
# ---------------------------------------------------------------------------
def _shift_mats(L, circular):
    """(L,L) 0/1 matrices: (x@prev)[:,l]=x[:,l-1], (x@next)[:,l]=x[:,l+1]."""
    i = jnp.arange(L)
    prev = (i[:, None] + 1 == i[None, :]).astype(jnp.float32)
    nxt = (i[:, None] - 1 == i[None, :]).astype(jnp.float32)
    if circular:
        prev = prev.at[L - 1, 0].set(1.0)
        nxt = nxt.at[0, L - 1].set(1.0)
    return prev, nxt


def _interleave_mats(L):
    """(L,2L) 0/1 matrices: even places col m at 2m, odd at 2m+1."""
    r = jnp.arange(L)
    c = jnp.arange(2 * L)
    even = (2 * r[:, None] == c[None, :]).astype(jnp.float32)
    odd = (2 * r[:, None] + 1 == c[None, :]).astype(jnp.float32)
    return even, odd


def _blockdiag(m, reps):
    """Block-diagonal replication (sample independence when batch is lane-folded)."""
    return jnp.kron(jnp.eye(reps, dtype=m.dtype), m)


# ---------------------------------------------------------------------------
# Wrapper: weight re-packing, batch lane-folding, pallas_call.
# ---------------------------------------------------------------------------
def decoder_forward(x, params, *, batch_tile=None):
    """x: (B, Cin, L) float32 (PyTorch NCL layout).  Returns (B, 1, 16*L) f32.

    params = {
      "conv_init": (w (H, Cin, 3), b (H,)),
      "residual" : [(w1 (R, H, 3), w2 (H, R, 1)), ...],
      "conv_trans": [(w (Cin_i, Cout_i, 4), b (Cout_i,)) x 4],
    }
    """
    B, Cin, L = x.shape
    w_init, b_init = params["conv_init"]
    residual = params["residual"]
    trans = params["conv_trans"]
    assert len(trans) == 4, "Decoder has exactly four ConvTranspose1d stages"
    H = w_init.shape[0]

    # Fold batch into lanes, but keep >= 2 grid steps so both v7x TCs get work
    # (on v5e/v6e the grid is a serial loop, so this costs nothing).
    if batch_tile is None:
        batch_tile = max(1, B // 2) if B % 2 == 0 else 1
        while batch_tile > 1 and 16 * batch_tile * L > 8192:  # lane-width cap
            batch_tile //= 2
    assert B % batch_tile == 0
    n_steps = B // batch_tile
    Lf = batch_tile * L

    # ---- weight re-packing (per-tap, bf16 MXU operands) ----
    w_init_t = jnp.transpose(w_init, (2, 0, 1)).astype(CD)             # (3, H, Cin)
    b_init_c = b_init.reshape(H, 1).astype(jnp.float32)
    w_res1 = jnp.stack([jnp.transpose(w1, (2, 0, 1)) for w1, _ in residual]
                       ).astype(CD)                                     # (nl, 3, R, H)
    w_res2 = jnp.stack([w2[:, :, 0] for _, w2 in residual]).astype(CD)  # (nl, H, R)

    wt_list, bt_list, sh_list, il_list = [], [], [], []
    for s, (w, b) in enumerate(trans):
        wt_list.append(jnp.transpose(w, (2, 1, 0)).astype(CD))          # (4, Cout, Cin)
        bt_list.append(b.reshape(-1, 1).astype(jnp.float32))            # (Cout, 1)
        Ls = L * (2 ** s)
        p, n = _shift_mats(Ls, circular=False)
        e, o = _interleave_mats(Ls)
        sh_list.append(jnp.stack([_blockdiag(p, batch_tile),
                                  _blockdiag(n, batch_tile)]).astype(CD))
        il_list.append(jnp.stack([_blockdiag(e, batch_tile),
                                  _blockdiag(o, batch_tile)]).astype(CD))

    pc, nc = _shift_mats(L, circular=True)
    circ = jnp.stack([_blockdiag(pc, batch_tile),
                      _blockdiag(nc, batch_tile)]).astype(CD)            # (2, Lf, Lf)

    # ---- fold batch into the lane axis: (B, Cin, L) -> (n_steps, Cin, Lf) ----
    x_f = (x.reshape(n_steps, batch_tile, Cin, L)
            .transpose(0, 2, 1, 3)
            .reshape(n_steps, Cin, Lf)
            .astype(CD))

    out_C = trans[-1][0].shape[1]            # == 1
    out_Lf = 16 * Lf
    out_L = 16 * L

    def const_spec(a):                       # resident block, same every step
        nd = a.ndim
        return pl.BlockSpec(a.shape, lambda b, nd=nd: (0,) * nd)

    operands = [x_f, w_init_t, b_init_c, w_res1, w_res2, circ]
    in_specs = [pl.BlockSpec((1, Cin, Lf), lambda b: (b, 0, 0))]
    in_specs += [const_spec(a) for a in operands[1:]]
    for s in range(4):
        stage_ops = [wt_list[s], bt_list[s], sh_list[s], il_list[s]]
        operands += stage_ops
        in_specs += [const_spec(a) for a in stage_ops]

    out_f = pl.pallas_call(
        decoder_kernel,
        out_shape=jax.ShapeDtypeStruct((n_steps, out_C, out_Lf), jnp.float32),
        grid_spec=pltpu.PrefetchScalarGridSpec(
            num_scalar_prefetch=0,
            grid=(n_steps,),
            in_specs=in_specs,
            out_specs=pl.BlockSpec((1, out_C, out_Lf), lambda b: (b, 0, 0)),
        ),
        compiler_params=pltpu.CompilerParams(
            dimension_semantics=("parallel",)),
    )(*operands)

    # Un-fold the lane axis back to per-sample rows (metadata-cheap reshapes).
    out = (out_f.reshape(n_steps, out_C, batch_tile, out_L)
                 .transpose(0, 2, 1, 3)
                 .reshape(B, out_C, out_L))
    return out


# ---------------------------------------------------------------------------
# Pure-JAX reference reproducing the PyTorch module exactly (f32).
# ---------------------------------------------------------------------------
def _ref_conv1d_k3(x, w, b, circular):
    mode = "wrap" if circular else "constant"
    xp = jnp.pad(x, ((0, 0), (0, 0), (1, 1)), mode=mode)
    y = lax.conv_general_dilated(
        xp, w, window_strides=(1,), padding="VALID",
        dimension_numbers=("NCH", "OIH", "NCH"))
    if b is not None:
        y = y + b[None, :, None]
    return y


def _ref_conv1d_k1(x, w):
    return lax.conv_general_dilated(
        x, w, window_strides=(1,), padding="VALID",
        dimension_numbers=("NCH", "OIH", "NCH"))


def _ref_conv_transpose1d(x, w, b):
    # PyTorch ConvTranspose1d(k=4, stride=2, padding=1), weight (Cin, Cout, 4)
    # == zero-insertion (lhs_dilation=2), pad k-1-p=2 each side, flipped kernel.
    w_oih = jnp.flip(w, axis=2).transpose(1, 0, 2)       # (Cout, Cin, 4)
    y = lax.conv_general_dilated(
        x, w_oih, window_strides=(1,), padding=[(2, 2)], lhs_dilation=(2,),
        dimension_numbers=("NCH", "OIH", "NCH"))
    return y + b[None, :, None]


def decoder_reference(x, params):
    w_init, b_init = params["conv_init"]
    h = _ref_conv1d_k3(x, w_init, b_init, circular=False)
    for w1, w2 in params["residual"]:
        r = jnp.maximum(h, 0.0)
        r = _ref_conv1d_k3(r, w1, None, circular=True)
        r = jnp.maximum(r, 0.0)
        h = h + _ref_conv1d_k1(r, w2)
    h = jnp.maximum(h, 0.0)
    n = len(params["conv_trans"])
    for i, (w, b) in enumerate(params["conv_trans"]):
        h = _ref_conv_transpose1d(h, w, b)
        if i < n - 1:
            h = jnp.maximum(h, 0.0)
    return h


# ---------------------------------------------------------------------------
# Test harness.
# ---------------------------------------------------------------------------
if __name__ == "__main__":
    # B=4 exercises both batch lane-folding (batch_tile=2) and a 2-step
    # "parallel" grid (feeds both v7x TensorCores).
    B, Cin, L = 4, 32, 16            # batch, decoder input channels, length
    H, R, n_res = 32, 16, 2          # num_hiddens, num_residual_hiddens, layers

    key = jax.random.PRNGKey(0)
    ks = list(jax.random.split(key, 16))

    def nrm(k, shape, scale):
        return scale * jax.random.normal(k, shape, dtype=jnp.float32)

    params = {
        "conv_init": (nrm(ks[0], (H, Cin, 3), (3 * Cin) ** -0.5),
                      nrm(ks[1], (H,), 0.1)),
        "residual": [
            (nrm(ks[2 + 2 * i], (R, H, 3), (3 * H) ** -0.5),
             nrm(ks[3 + 2 * i], (H, R, 1), R ** -0.5))
            for i in range(n_res)
        ],
        "conv_trans": [],
    }
    tchans = [(H, H), (H, H), (H, H // 2), (H // 2, 1)]
    for i, (ci, co) in enumerate(tchans):
        params["conv_trans"].append(
            (nrm(ks[6 + 2 * i], (ci, co, 4), (2 * ci) ** -0.5),
             nrm(ks[7 + 2 * i], (co,), 0.05)))

    x = nrm(ks[14], (B, Cin, L), 1.0)

    out = jax.block_until_ready(decoder_forward(x, params))
    ref = jax.block_until_ready(decoder_reference(x, params))

    assert out.shape == (B, 1, 16 * L), out.shape
    err = float(jnp.max(jnp.abs(out - ref)))
    scale = float(jnp.max(jnp.abs(ref)))
    # bf16 matmul operands across ~7 chained conv stages -> allow a few percent
    # of the output range vs the f32 reference.
    assert err <= 5e-2 * max(1.0, scale), (err, scale)

    print("KERNEL_OK")
</pallas_src>

<mosaic_0001>
module attributes {stable_mosaic.version = 11 : i64} {
  func.func @decoder_kernel(%arg0: i32, %arg1: memref<1x32x32xbf16, #tpu.memory_space<vmem>>, %arg2: memref<3x32x32xbf16, #tpu.memory_space<vmem>>, %arg3: memref<32x1xf32, #tpu.memory_space<vmem>>, %arg4: memref<2x3x16x32xbf16, #tpu.memory_space<vmem>>, %arg5: memref<2x32x16xbf16, #tpu.memory_space<vmem>>, %arg6: memref<2x32x32xbf16, #tpu.memory_space<vmem>>, %arg7: memref<4x32x32xbf16, #tpu.memory_space<vmem>>, %arg8: memref<32x1xf32, #tpu.memory_space<vmem>>, %arg9: memref<2x32x32xbf16, #tpu.memory_space<vmem>>, %arg10: memref<2x32x64xbf16, #tpu.memory_space<vmem>>, %arg11: memref<4x32x32xbf16, #tpu.memory_space<vmem>>, %arg12: memref<32x1xf32, #tpu.memory_space<vmem>>, %arg13: memref<2x64x64xbf16, #tpu.memory_space<vmem>>, %arg14: memref<2x64x128xbf16, #tpu.memory_space<vmem>>, %arg15: memref<4x16x32xbf16, #tpu.memory_space<vmem>>, %arg16: memref<16x1xf32, #tpu.memory_space<vmem>>, %arg17: memref<2x128x128xbf16, #tpu.memory_space<vmem>>, %arg18: memref<2x128x256xbf16, #tpu.memory_space<vmem>>, %arg19: memref<4x1x16xbf16, #tpu.memory_space<vmem>>, %arg20: memref<1x1xf32, #tpu.memory_space<vmem>>, %arg21: memref<2x256x256xbf16, #tpu.memory_space<vmem>>, %arg22: memref<2x256x512xbf16, #tpu.memory_space<vmem>>, %arg23: memref<1x1x512xf32, #tpu.memory_space<vmem>>) attributes {dimension_semantics = [#tpu.dimension_semantics<parallel>], iteration_bounds = array<i64: 2>, scalar_prefetch = 0 : i64, scratch_operands = 0 : i64, tpu.core_type = #tpu.core_type<tc>, window_params = [{transform_indices = @transform_0, window_bounds = array<i64: 1, 32, 32>}, {pipeline_mode = #tpu.pipeline_mode<synchronous>, transform_indices = @transform_1, window_bounds = array<i64: 3, 32, 32>}, {pipeline_mode = #tpu.pipeline_mode<synchronous>, transform_indices = @transform_2, window_bounds = array<i64: 32, 1>}, {pipeline_mode = #tpu.pipeline_mode<synchronous>, transform_indices = @transform_3, window_bounds = array<i64: 2, 3, 16, 32>}, {pipeline_mode = #tpu.pipeline_mode<synchronous>, transform_indices = @transform_4, window_bounds = array<i64: 2, 32, 16>}, {pipeline_mode = #tpu.pipeline_mode<synchronous>, transform_indices = @transform_5, window_bounds = array<i64: 2, 32, 32>}, {pipeline_mode = #tpu.pipeline_mode<synchronous>, transform_indices = @transform_6, window_bounds = array<i64: 4, 32, 32>}, {pipeline_mode = #tpu.pipeline_mode<synchronous>, transform_indices = @transform_7, window_bounds = array<i64: 32, 1>}, {pipeline_mode = #tpu.pipeline_mode<synchronous>, transform_indices = @transform_8, window_bounds = array<i64: 2, 32, 32>}, {pipeline_mode = #tpu.pipeline_mode<synchronous>, transform_indices = @transform_9, window_bounds = array<i64: 2, 32, 64>}, {pipeline_mode = #tpu.pipeline_mode<synchronous>, transform_indices = @transform_10, window_bounds = array<i64: 4, 32, 32>}, {pipeline_mode = #tpu.pipeline_mode<synchronous>, transform_indices = @transform_11, window_bounds = array<i64: 32, 1>}, {pipeline_mode = #tpu.pipeline_mode<synchronous>, transform_indices = @transform_12, window_bounds = array<i64: 2, 64, 64>}, {pipeline_mode = #tpu.pipeline_mode<synchronous>, transform_indices = @transform_13, window_bounds = array<i64: 2, 64, 128>}, {pipeline_mode = #tpu.pipeline_mode<synchronous>, transform_indices = @transform_14, window_bounds = array<i64: 4, 16, 32>}, {pipeline_mode = #tpu.pipeline_mode<synchronous>, transform_indices = @transform_15, window_bounds = array<i64: 16, 1>}, {pipeline_mode = #tpu.pipeline_mode<synchronous>, transform_indices = @transform_16, window_bounds = array<i64: 2, 128, 128>}, {pipeline_mode = #tpu.pipeline_mode<synchronous>, transform_indices = @transform_17, window_bounds = array<i64: 2, 128, 256>}, {pipeline_mode = #tpu.pipeline_mode<synchronous>, transform_indices = @transform_18, window_bounds = array<i64: 4, 1, 16>}, {pipeline_mode = #tpu.pipeline_mode<synchronous>, transform_indices = @transform_19, window_bounds = array<i64: 1, 1>}, {pipeline_mode = #tpu.pipeline_mode<synchronous>, transform_indices = @transform_20, window_bounds = array<i64: 2, 256, 256>}, {pipeline_mode = #tpu.pipeline_mode<synchronous>, transform_indices = @transform_21, window_bounds = array<i64: 2, 256, 512>}, {transform_indices = @transform_22, window_bounds = array<i64: 1, 1, 512>}]} {
    %c0 = arith.constant 0 : index
    %c0_0 = arith.constant 0 : index
    %c0_1 = arith.constant 0 : index
    %0 = vector.load %arg1[%c0, %c0_0, %c0_1] : memref<1x32x32xbf16, #tpu.memory_space<vmem>>, vector<1x32x32xbf16>
    %1 = vector.shape_cast %0 : vector<1x32x32xbf16> to vector<32x32xbf16>
    %c0_2 = arith.constant 0 : index
    %c0_3 = arith.constant 0 : index
    %c0_4 = arith.constant 0 : index
    %2 = vector.load %arg9[%c0_2, %c0_3, %c0_4] : memref<2x32x32xbf16, #tpu.memory_space<vmem>>, vector<2x32x32xbf16>
    %c0_5 = arith.constant 0 : index
    %c0_6 = arith.constant 0 : index
    %c0_7 = arith.constant 0 : index
    %3 = vector.load %arg6[%c0_5, %c0_6, %c0_7] : memref<2x32x32xbf16, #tpu.memory_space<vmem>>, vector<2x32x32xbf16>
    %c0_8 = arith.constant 0 : index
    %c0_9 = arith.constant 0 : index
    %c0_10 = arith.constant 0 : index
    %4 = vector.load %arg2[%c0_8, %c0_9, %c0_10] : memref<3x32x32xbf16, #tpu.memory_space<vmem>>, vector<3x32x32xbf16>
    %5 = vector.extract_strided_slice %2 {offsets = [0, 0, 0], sizes = [1, 32, 32], strides = [1, 1, 1]} : vector<2x32x32xbf16> to vector<1x32x32xbf16>
    %6 = vector.shape_cast %5 : vector<1x32x32xbf16> to vector<32x32xbf16>
    %7 = vector.extract_strided_slice %2 {offsets = [1, 0, 0], sizes = [1, 32, 32], strides = [1, 1, 1]} : vector<2x32x32xbf16> to vector<1x32x32xbf16>
    %8 = vector.shape_cast %7 : vector<1x32x32xbf16> to vector<32x32xbf16>
    %cst = arith.constant dense<0.000000e+00> : vector<32x32xf32>
    %9 = tpu.matmul %1, %6, %cst {dimension_numbers = #tpu.dot_dimension_numbers<[1], [0], [0], [1], [0, 0, 1, 1], [], []>} : vector<32x32xbf16>, vector<32x32xbf16>, vector<32x32xf32> -> vector<32x32xf32>
    %10 = arith.truncf %9 : vector<32x32xf32> to vector<32x32xbf16>
    %cst_11 = arith.constant dense<0.000000e+00> : vector<32x32xf32>
    %11 = tpu.matmul %1, %8, %cst_11 {dimension_numbers = #tpu.dot_dimension_numbers<[1], [0], [0], [1], [0, 0, 1, 1], [], []>} : vector<32x32xbf16>, vector<32x32xbf16>, vector<32x32xf32> -> vector<32x32xf32>
    %12 = arith.truncf %11 : vector<32x32xf32> to vector<32x32xbf16>
    %13 = vector.extract_strided_slice %4 {offsets = [0, 0, 0], sizes = [1, 32, 32], strides = [1, 1, 1]} : vector<3x32x32xbf16> to vector<1x32x32xbf16>
    %14 = vector.shape_cast %13 : vector<1x32x32xbf16> to vector<32x32xbf16>
    %cst_12 = arith.constant dense<0.000000e+00> : vector<32x32xf32>
    %15 = tpu.matmul %14, %10, %cst_12 {dimension_numbers = #tpu.dot_dimension_numbers<[1], [0], [0], [1], [0, 0, 1, 1], [], []>} : vector<32x32xbf16>, vector<32x32xbf16>, vector<32x32xf32> -> vector<32x32xf32>
    %16 = vector.extract_strided_slice %4 {offsets = [1, 0, 0], sizes = [1, 32, 32], strides = [1, 1, 1]} : vector<3x32x32xbf16> to vector<1x32x32xbf16>
    %17 = vector.shape_cast %16 : vector<1x32x32xbf16> to vector<32x32xbf16>
    %cst_13 = arith.constant dense<0.000000e+00> : vector<32x32xf32>
    %18 = tpu.matmul %17, %1, %cst_13 {dimension_numbers = #tpu.dot_dimension_numbers<[1], [0], [0], [1], [0, 0, 1, 1], [], []>} : vector<32x32xbf16>, vector<32x32xbf16>, vector<32x32xf32> -> vector<32x32xf32>
    %19 = arith.addf %15, %18 : vector<32x32xf32>
    %20 = vector.extract_strided_slice %4 {offsets = [2, 0, 0], sizes = [1, 32, 32], strides = [1, 1, 1]} : vector<3x32x32xbf16> to vector<1x32x32xbf16>
    %21 = vector.shape_cast %20 : vector<1x32x32xbf16> to vector<32x32xbf16>
    %cst_14 = arith.constant dense<0.000000e+00> : vector<32x32xf32>
    %22 = tpu.matmul %21, %12, %cst_14 {dimension_numbers = #tpu.dot_dimension_numbers<[1], [0], [0], [1], [0, 0, 1, 1], [], []>} : vector<32x32xbf16>, vector<32x32xbf16>, vector<32x32xf32> -> vector<32x32xf32>
    %23 = arith.addf %19, %22 : vector<32x32xf32>
    %c0_15 = arith.constant 0 : index
    %c0_16 = arith.constant 0 : index
    %24 = vector.load %arg3[%c0_15, %c0_16] : memref<32x1xf32, #tpu.memory_space<vmem>>, vector<32x1xf32>
    %25 = vector.broadcast %24 : vector<32x1xf32> to vector<32x32xf32>
    %26 = arith.addf %23, %25 : vector<32x32xf32>
    %c0_17 = arith.constant 0 : index
    %c0_18 = arith.constant 0 : index
    %c0_19 = arith.constant 0 : index
    %c0_20 = arith.constant 0 : index
    %27 = vector.load %arg4[%c0_17, %c0_18, %c0_19, %c0_20] : memref<2x3x16x32xbf16, #tpu.memory_space<vmem>>, vector<1x3x16x32xbf16>
    %28 = vector.shape_cast %27 : vector<1x3x16x32xbf16> to vector<3x16x32xbf16>
    %c0_21 = arith.constant 0 : index
    %c0_22 = arith.constant 0 : index
    %c0_23 = arith.constant 0 : index
    %29 = vector.load %arg5[%c0_21, %c0_22, %c0_23] : memref<2x32x16xbf16, #tpu.memory_space<vmem>>, vector<1x32x16xbf16>
    %30 = vector.shape_cast %29 : vector<1x32x16xbf16> to vector<32x16xbf16>
    %cst_24 = arith.constant 0.000000e+00 : f32
    %31 = vector.broadcast %cst_24 : f32 to vector<32x32xf32>
    %32 = arith.maximumf %26, %31 : vector<32x32xf32>
    %33 = arith.truncf %32 : vector<32x32xf32> to vector<32x32xbf16>
    %34 = vector.extract_strided_slice %3 {offsets = [0, 0, 0], sizes = [1, 32, 32], strides = [1, 1, 1]} : vector<2x32x32xbf16> to vector<1x32x32xbf16>
    %35 = vector.shape_cast %34 : vector<1x32x32xbf16> to vector<32x32xbf16>
    %36 = vector.extract_strided_slice %3 {offsets = [1, 0, 0], sizes = [1, 32, 32], strides = [1, 1, 1]} : vector<2x32x32xbf16> to vector<1x32x32xbf16>
    %37 = vector.shape_cast %36 : vector<1x32x32xbf16> to vector<32x32xbf16>
    %cst_25 = arith.constant dense<0.000000e+00> : vector<32x32xf32>
    %38 = tpu.matmul %33, %35, %cst_25 {dimension_numbers = #tpu.dot_dimension_numbers<[1], [0], [0], [1], [0, 0, 1, 1], [], []>} : vector<32x32xbf16>, vector<32x32xbf16>, vector<32x32xf32> -> vector<32x32xf32>
    %39 = arith.truncf %38 : vector<32x32xf32> to vector<32x32xbf16>
    %cst_26 = arith.constant dense<0.000000e+00> : vector<32x32xf32>
    %40 = tpu.matmul %33, %37, %cst_26 {dimension_numbers = #tpu.dot_dimension_numbers<[1], [0], [0], [1], [0, 0, 1, 1], [], []>} : vector<32x32xbf16>, vector<32x32xbf16>, vector<32x32xf32> -> vector<32x32xf32>
    %41 = arith.truncf %40 : vector<32x32xf32> to vector<32x32xbf16>
    %42 = vector.extract_strided_slice %28 {offsets = [0, 0, 0], sizes = [1, 16, 32], strides = [1, 1, 1]} : vector<3x16x32xbf16> to vector<1x16x32xbf16>
    %43 = vector.shape_cast %42 : vector<1x16x32xbf16> to vector<16x32xbf16>
    %cst_27 = arith.constant dense<0.000000e+00> : vector<16x32xf32>
    %44 = tpu.matmul %43, %39, %cst_27 {dimension_numbers = #tpu.dot_dimension_numbers<[1], [0], [0], [1], [0, 0, 1, 1], [], []>} : vector<16x32xbf16>, vector<32x32xbf16>, vector<16x32xf32> -> vector<16x32xf32>
    %45 = vector.extract_strided_slice %28 {offsets = [1, 0, 0], sizes = [1, 16, 32], strides = [1, 1, 1]} : vector<3x16x32xbf16> to vector<1x16x32xbf16>
    %46 = vector.shape_cast %45 : vector<1x16x32xbf16> to vector<16x32xbf16>
    %cst_28 = arith.constant dense<0.000000e+00> : vector<16x32xf32>
    %47 = tpu.matmul %46, %33, %cst_28 {dimension_numbers = #tpu.dot_dimension_numbers<[1], [0], [0], [1], [0, 0, 1, 1], [], []>} : vector<16x32xbf16>, vector<32x32xbf16>, vector<16x32xf32> -> vector<16x32xf32>
    %48 = arith.addf %44, %47 : vector<16x32xf32>
    %49 = vector.extract_strided_slice %28 {offsets = [2, 0, 0], sizes = [1, 16, 32], strides = [1, 1, 1]} : vector<3x16x32xbf16> to vector<1x16x32xbf16>
    %50 = vector.shape_cast %49 : vector<1x16x32xbf16> to vector<16x32xbf16>
    %cst_29 = arith.constant dense<0.000000e+00> : vector<16x32xf32>
    %51 = tpu.matmul %50, %41, %cst_29 {dimension_numbers = #tpu.dot_dimension_numbers<[1], [0], [0], [1], [0, 0, 1, 1], [], []>} : vector<16x32xbf16>, vector<32x32xbf16>, vector<16x32xf32> -> vector<16x32xf32>
    %52 = arith.addf %48, %51 : vector<16x32xf32>
    %cst_30 = arith.constant 0.000000e+00 : f32
    %53 = vector.broadcast %cst_30 : f32 to vector<16x32xf32>
    %54 = arith.maximumf %52, %53 : vector<16x32xf32>
    %55 = arith.truncf %54 : vector<16x32xf32> to vector<16x32xbf16>
    %cst_31 = arith.constant dense<0.000000e+00> : vector<32x32xf32>
    %56 = tpu.matmul %30, %55, %cst_31 {dimension_numbers = #tpu.dot_dimension_numbers<[1], [0], [0], [1], [0, 0, 1, 1], [], []>} : vector<32x16xbf16>, vector<16x32xbf16>, vector<32x32xf32> -> vector<32x32xf32>
    %57 = arith.addf %26, %56 : vector<32x32xf32>
    %c1 = arith.constant 1 : index
    %c0_32 = arith.constant 0 : index
    %c0_33 = arith.constant 0 : index
    %c0_34 = arith.constant 0 : index
    %58 = vector.load %arg4[%c1, %c0_32, %c0_33, %c0_34] : memref<2x3x16x32xbf16, #tpu.memory_space<vmem>>, vector<1x3x16x32xbf16>
    %59 = vector.shape_cast %58 : vector<1x3x16x32xbf16> to vector<3x16x32xbf16>
    %c1_35 = arith.constant 1 : index
    %c0_36 = arith.constant 0 : index
    %c0_37 = arith.constant 0 : index
    %60 = vector.load %arg5[%c1_35, %c0_36, %c0_37] : memref<2x32x16xbf16, #tpu.memory_space<vmem>>, vector<1x32x16xbf16>
    %61 = vector.shape_cast %60 : vector<1x32x16xbf16> to vector<32x16xbf16>
    %cst_38 = arith.constant 0.000000e+00 : f32
    %62 = vector.broadcast %cst_38 : f32 to vector<32x32xf32>
    %63 = arith.maximumf %57, %62 : vector<32x32xf32>
    %64 = arith.truncf %63 : vector<32x32xf32> to vector<32x32xbf16>
    %65 = vector.extract_strided_slice %3 {offsets = [0, 0, 0], sizes = [1, 32, 32], strides = [1, 1, 1]} : vector<2x32x32xbf16> to vector<1x32x32xbf16>
    %66 = vector.shape_cast %65 : vector<1x32x32xbf16> to vector<32x32xbf16>
    %67 = vector.extract_strided_slice %3 {offsets = [1, 0, 0], sizes = [1, 32, 32], strides = [1, 1, 1]} : vector<2x32x32xbf16> to vector<1x32x32xbf16>
    %68 = vector.shape_cast %67 : vector<1x32x32xbf16> to vector<32x32xbf16>
    %cst_39 = arith.constant dense<0.000000e+00> : vector<32x32xf32>
    %69 = tpu.matmul %64, %66, %cst_39 {dimension_numbers = #tpu.dot_dimension_numbers<[1], [0], [0], [1], [0, 0, 1, 1], [], []>} : vector<32x32xbf16>, vector<32x32xbf16>, vector<32x32xf32> -> vector<32x32xf32>
    %70 = arith.truncf %69 : vector<32x32xf32> to vector<32x32xbf16>
    %cst_40 = arith.constant dense<0.000000e+00> : vector<32x32xf32>
    %71 = tpu.matmul %64, %68, %cst_40 {dimension_numbers = #tpu.dot_dimension_numbers<[1], [0], [0], [1], [0, 0, 1, 1], [], []>} : vector<32x32xbf16>, vector<32x32xbf16>, vector<32x32xf32> -> vector<32x32xf32>
    %72 = arith.truncf %71 : vector<32x32xf32> to vector<32x32xbf16>
    %73 = vector.extract_strided_slice %59 {offsets = [0, 0, 0], sizes = [1, 16, 32], strides = [1, 1, 1]} : vector<3x16x32xbf16> to vector<1x16x32xbf16>
    %74 = vector.shape_cast %73 : vector<1x16x32xbf16> to vector<16x32xbf16>
    %cst_41 = arith.constant dense<0.000000e+00> : vector<16x32xf32>
    %75 = tpu.matmul %74, %70, %cst_41 {dimension_numbers = #tpu.dot_dimension_numbers<[1], [0], [0], [1], [0, 0, 1, 1], [], []>} : vector<16x32xbf16>, vector<32x32xbf16>, vector<16x32xf32> -> vector<16x32xf32>
    %76 = vector.extract_strided_slice %59 {offsets = [1, 0, 0], sizes = [1, 16, 32], strides = [1, 1, 1]} : vector<3x16x32xbf16> to vector<1x16x32xbf16>
    %77 = vector.shape_cast %76 : vector<1x16x32xbf16> to vector<16x32xbf16>
    %cst_42 = arith.constant dense<0.000000e+00> : vector<16x32xf32>
    %78 = tpu.matmul %77, %64, %cst_42 {dimension_numbers = #tpu.dot_dimension_numbers<[1], [0], [0], [1], [0, 0, 1, 1], [], []>} : vector<16x32xbf16>, vector<32x32xbf16>, vector<16x32xf32> -> vector<16x32xf32>
    %79 = arith.addf %75, %78 : vector<16x32xf32>
    %80 = vector.extract_strided_slice %59 {offsets = [2, 0, 0], sizes = [1, 16, 32], strides = [1, 1, 1]} : vector<3x16x32xbf16> to vector<1x16x32xbf16>
    %81 = vector.shape_cast %80 : vector<1x16x32xbf16> to vector<16x32xbf16>
    %cst_43 = arith.constant dense<0.000000e+00> : vector<16x32xf32>
    %82 = tpu.matmul %81, %72, %cst_43 {dimension_numbers = #tpu.dot_dimension_numbers<[1], [0], [0], [1], [0, 0, 1, 1], [], []>} : vector<16x32xbf16>, vector<32x32xbf16>, vector<16x32xf32> -> vector<16x32xf32>
    %83 = arith.addf %79, %82 : vector<16x32xf32>
    %cst_44 = arith.constant 0.000000e+00 : f32
    %84 = vector.broadcast %cst_44 : f32 to vector<16x32xf32>
    %85 = arith.maximumf %83, %84 : vector<16x32xf32>
    %86 = arith.truncf %85 : vector<16x32xf32> to vector<16x32xbf16>
    %cst_45 = arith.constant dense<0.000000e+00> : vector<32x32xf32>
    %87 = tpu.matmul %61, %86, %cst_45 {dimension_numbers = #tpu.dot_dimension_numbers<[1], [0], [0], [1], [0, 0, 1, 1], [], []>} : vector<32x16xbf16>, vector<16x32xbf16>, vector<32x32xf32> -> vector<32x32xf32>
    %88 = arith.addf %57, %87 : vector<32x32xf32>
    %cst_46 = arith.constant 0.000000e+00 : f32
    %89 = vector.broadcast %cst_46 : f32 to vector<32x32xf32>
    %90 = arith.maximumf %88, %89 : vector<32x32xf32>
    %91 = arith.truncf %90 : vector<32x32xf32> to vector<32x32xbf16>
    %c0_47 = arith.constant 0 : index
    %c0_48 = arith.constant 0 : index
    %c0_49 = arith.constant 0 : index
    %92 = vector.load %arg7[%c0_47, %c0_48, %c0_49] : memref<4x32x32xbf16, #tpu.memory_space<vmem>>, vector<4x32x32xbf16>
    %c0_50 = arith.constant 0 : index
    %c0_51 = arith.constant 0 : index
    %93 = vector.load %arg8[%c0_50, %c0_51] : memref<32x1xf32, #tpu.memory_space<vmem>>, vector<32x1xf32>
    %c0_52 = arith.constant 0 : index
    %c0_53 = arith.constant 0 : index
    %c0_54 = arith.constant 0 : index
    %94 = vector.load %arg10[%c0_52, %c0_53, %c0_54] : memref<2x32x64xbf16, #tpu.memory_space<vmem>>, vector<2x32x64xbf16>
    %95 = vector.extract_strided_slice %2 {offsets = [0, 0, 0], sizes = [1, 32, 32], strides = [1, 1, 1]} : vector<2x32x32xbf16> to vector<1x32x32xbf16>
    %96 = vector.shape_cast %95 : vector<1x32x32xbf16> to vector<32x32xbf16>
    %cst_55 = arith.constant dense<0.000000e+00> : vector<32x32xf32>
    %97 = tpu.matmul %91, %96, %cst_55 {dimension_numbers = #tpu.dot_dimension_numbers<[1], [0], [0], [1], [0, 0, 1, 1], [], []>} : vector<32x32xbf16>, vector<32x32xbf16>, vector<32x32xf32> -> vector<32x32xf32>
    %98 = arith.truncf %97 : vector<32x32xf32> to vector<32x32xbf16>
    %99 = vector.extract_strided_slice %2 {offsets = [1, 0, 0], sizes = [1, 32, 32], strides = [1, 1, 1]} : vector<2x32x32xbf16> to vector<1x32x32xbf16>
    %100 = vector.shape_cast %99 : vector<1x32x32xbf16> to vector<32x32xbf16>
    %cst_56 = arith.constant dense<0.000000e+00> : vector<32x32xf32>
    %101 = tpu.matmul %91, %100, %cst_56 {dimension_numbers = #tpu.dot_dimension_numbers<[1], [0], [0], [1], [0, 0, 1, 1], [], []>} : vector<32x32xbf16>, vector<32x32xbf16>, vector<32x32xf32> -> vector<32x32xf32>
    %102 = arith.truncf %101 : vector<32x32xf32> to vector<32x32xbf16>
    %103 = vector.extract_strided_slice %92 {offsets = [1, 0, 0], sizes = [1, 32, 32], strides = [1, 1, 1]} : vector<4x32x32xbf16> to vector<1x32x32xbf16>
    %104 = vector.shape_cast %103 : vector<1x32x32xbf16> to vector<32x32xbf16>
    %cst_57 = arith.constant dense<0.000000e+00> : vector<32x32xf32>
    %105 = tpu.matmul %104, %91, %cst_57 {dimension_numbers = #tpu.dot_dimension_numbers<[1], [0], [0], [1], [0, 0, 1, 1], [], []>} : vector<32x32xbf16>, vector<32x32xbf16>, vector<32x32xf32> -> vector<32x32xf32>
    %106 = vector.extract_strided_slice %92 {offsets = [3, 0, 0], sizes = [1, 32, 32], strides = [1, 1, 1]} : vector<4x32x32xbf16> to vector<1x32x32xbf16>
    %107 = vector.shape_cast %106 : vector<1x32x32xbf16> to vector<32x32xbf16>
    %cst_58 = arith.constant dense<0.000000e+00> : vector<32x32xf32>
    %108 = tpu.matmul %107, %98, %cst_58 {dimension_numbers = #tpu.dot_dimension_numbers<[1], [0], [0], [1], [0, 0, 1, 1], [], []>} : vector<32x32xbf16>, vector<32x32xbf16>, vector<32x32xf32> -> vector<32x32xf32>
    %109 = arith.addf %105, %108 : vector<32x32xf32>
    %110 = vector.extract_strided_slice %92 {offsets = [2, 0, 0], sizes = [1, 32, 32], strides = [1, 1, 1]} : vector<4x32x32xbf16> to vector<1x32x32xbf16>
    %111 = vector.shape_cast %110 : vector<1x32x32xbf16> to vector<32x32xbf16>
    %cst_59 = arith.constant dense<0.000000e+00> : vector<32x32xf32>
    %112 = tpu.matmul %111, %91, %cst_59 {dimension_numbers = #tpu.dot_dimension_numbers<[1], [0], [0], [1], [0, 0, 1, 1], [], []>} : vector<32x32xbf16>, vector<32x32xbf16>, vector<32x32xf32> -> vector<32x32xf32>
    %113 = vector.extract_strided_slice %92 {offsets = [0, 0, 0], sizes = [1, 32, 32], strides = [1, 1, 1]} : vector<4x32x32xbf16> to vector<1x32x32xbf16>
    %114 = vector.shape_cast %113 : vector<1x32x32xbf16> to vector<32x32xbf16>
    %cst_60 = arith.constant dense<0.000000e+00> : vector<32x32xf32>
    %115 = tpu.matmul %114, %102, %cst_60 {dimension_numbers = #tpu.dot_dimension_numbers<[1], [0], [0], [1], [0, 0, 1, 1], [], []>} : vector<32x32xbf16>, vector<32x32xbf16>, vector<32x32xf32> -> vector<32x32xf32>
    %116 = arith.addf %112, %115 : vector<32x32xf32>
    %117 = arith.truncf %109 : vector<32x32xf32> to vector<32x32xbf16>
    %118 = vector.extract_strided_slice %94 {offsets = [0, 0, 0], sizes = [1, 32, 64], strides = [1, 1, 1]} : vector<2x32x64xbf16> to vector<1x32x64xbf16>
    %119 = vector.shape_cast %118 : vector<1x32x64xbf16> to vector<32x64xbf16>
    %cst_61 = arith.constant dense<0.000000e+00> : vector<32x64xf32>
    %120 = tpu.matmul %117, %119, %cst_61 {dimension_numbers = #tpu.dot_dimension_numbers<[1], [0], [0], [1], [0, 0, 1, 1], [], []>} : vector<32x32xbf16>, vector<32x64xbf16>, vector<32x64xf32> -> vector<32x64xf32>
    %121 = arith.truncf %116 : vector<32x32xf32> to vector<32x32xbf16>
    %122 = vector.extract_strided_slice %94 {offsets = [1, 0, 0], sizes = [1, 32, 64], strides = [1, 1, 1]} : vector<2x32x64xbf16> to vector<1x32x64xbf16>
    %123 = vector.shape_cast %122 : vector<1x32x64xbf16> to vector<32x64xbf16>
    %cst_62 = arith.constant dense<0.000000e+00> : vector<32x64xf32>
    %124 = tpu.matmul %121, %123, %cst_62 {dimension_numbers = #tpu.dot_dimension_numbers<[1], [0], [0], [1], [0, 0, 1, 1], [], []>} : vector<32x32xbf16>, vector<32x64xbf16>, vector<32x64xf32> -> vector<32x64xf32>
    %125 = arith.addf %120, %124 : vector<32x64xf32>
    %126 = vector.broadcast %93 : vector<32x1xf32> to vector<32x64xf32>
    %127 = arith.addf %125, %126 : vector<32x64xf32>
    %cst_63 = arith.constant 0.000000e+00 : f32
    %128 = vector.broadcast %cst_63 : f32 to vector<32x64xf32>
    %129 = arith.maximumf %127, %128 : vector<32x64xf32>
    %130 = arith.truncf %129 : vector<32x64xf32> to vector<32x64xbf16>
    %c0_64 = arith.constant 0 : index
    %c0_65 = arith.constant 0 : index
    %c0_66 = arith.constant 0 : index
    %131 = vector.load %arg11[%c0_64, %c0_65, %c0_66] : memref<4x32x32xbf16, #tpu.memory_space<vmem>>, vector<4x32x32xbf16>
    %c0_67 = arith.constant 0 : index
    %c0_68 = arith.constant 0 : index
    %132 = vector.load %arg12[%c0_67, %c0_68] : memref<32x1xf32, #tpu.memory_space<vmem>>, vector<32x1xf32>
    %c0_69 = arith.constant 0 : index
    %c0_70 = arith.constant 0 : index
    %c0_71 = arith.constant 0 : index
    %133 = vector.load %arg13[%c0_69, %c0_70, %c0_71] : memref<2x64x64xbf16, #tpu.memory_space<vmem>>, vector<2x64x64xbf16>
    %c0_72 = arith.constant 0 : index
    %c0_73 = arith.constant 0 : index
    %c0_74 = arith.constant 0 : index
    %134 = vector.load %arg14[%c0_72, %c0_73, %c0_74] : memref<2x64x128xbf16, #tpu.memory_space<vmem>>, vector<2x64x128xbf16>
    %135 = vector.extract_strided_slice %133 {offsets = [0, 0, 0], sizes = [1, 64, 64], strides = [1, 1, 1]} : vector<2x64x64xbf16> to vector<1x64x64xbf16>
    %136 = vector.shape_cast %135 : vector<1x64x64xbf16> to vector<64x64xbf16>
    %cst_75 = arith.constant dense<0.000000e+00> : vector<32x64xf32>
    %137 = tpu.matmul %130, %136, %cst_75 {dimension_numbers = #tpu.dot_dimension_numbers<[1], [0], [0], [1], [0, 0, 1, 1], [], []>} : vector<32x64xbf16>, vector<64x64xbf16>, vector<32x64xf32> -> vector<32x64xf32>
    %138 = arith.truncf %137 : vector<32x64xf32> to vector<32x64xbf16>
    %139 = vector.extract_strided_slice %133 {offsets = [1, 0, 0], sizes = [1, 64, 64], strides = [1, 1, 1]} : vector<2x64x64xbf16> to vector<1x64x64xbf16>
    %140 = vector.shape_cast %139 : vector<1x64x64xbf16> to vector<64x64xbf16>
    %cst_76 = arith.constant dense<0.000000e+00> : vector<32x64xf32>
    %141 = tpu.matmul %130, %140, %cst_76 {dimension_numbers = #tpu.dot_dimension_numbers<[1], [0], [0], [1], [0, 0, 1, 1], [], []>} : vector<32x64xbf16>, vector<64x64xbf16>, vector<32x64xf32> -> vector<32x64xf32>
    %142 = arith.truncf %141 : vector<32x64xf32> to vector<32x64xbf16>
    %143 = vector.extract_strided_slice %131 {offsets = [1, 0, 0], sizes = [1, 32, 32], strides = [1, 1, 1]} : vector<4x32x32xbf16> to vector<1x32x32xbf16>
    %144 = vector.shape_cast %143 : vector<1x32x32xbf16> to vector<32x32xbf16>
    %cst_77 = arith.constant dense<0.000000e+00> : vector<32x64xf32>
    %145 = tpu.matmul %144, %130, %cst_77 {dimension_numbers = #tpu.dot_dimension_numbers<[1], [0], [0], [1], [0, 0, 1, 1], [], []>} : vector<32x32xbf16>, vector<32x64xbf16>, vector<32x64xf32> -> vector<32x64xf32>
    %146 = vector.extract_strided_slice %131 {offsets = [3, 0, 0], sizes = [1, 32, 32], strides = [1, 1, 1]} : vector<4x32x32xbf16> to vector<1x32x32xbf16>
    %147 = vector.shape_cast %146 : vector<1x32x32xbf16> to vector<32x32xbf16>
    %cst_78 = arith.constant dense<0.000000e+00> : vector<32x64xf32>
    %148 = tpu.matmul %147, %138, %cst_78 {dimension_numbers = #tpu.dot_dimension_numbers<[1], [0], [0], [1], [0, 0, 1, 1], [], []>} : vector<32x32xbf16>, vector<32x64xbf16>, vector<32x64xf32> -> vector<32x64xf32>
    %149 = arith.addf %145, %148 : vector<32x64xf32>
    %150 = vector.extract_strided_slice %131 {offsets = [2, 0, 0], sizes = [1, 32, 32], strides = [1, 1, 1]} : vector<4x32x32xbf16> to vector<1x32x32xbf16>
    %151 = vector.shape_cast %150 : vector<1x32x32xbf16> to vector<32x32xbf16>
    %cst_79 = arith.constant dense<0.000000e+00> : vector<32x64xf32>
    %152 = tpu.matmul %151, %130, %cst_79 {dimension_numbers = #tpu.dot_dimension_numbers<[1], [0], [0], [1], [0, 0, 1, 1], [], []>} : vector<32x32xbf16>, vector<32x64xbf16>, vector<32x64xf32> -> vector<32x64xf32>
    %153 = vector.extract_strided_slice %131 {offsets = [0, 0, 0], sizes = [1, 32, 32], strides = [1, 1, 1]} : vector<4x32x32xbf16> to vector<1x32x32xbf16>
    %154 = vector.shape_cast %153 : vector<1x32x32xbf16> to vector<32x32xbf16>
    %cst_80 = arith.constant dense<0.000000e+00> : vector<32x64xf32>
    %155 = tpu.matmul %154, %142, %cst_80 {dimension_numbers = #tpu.dot_dimension_numbers<[1], [0], [0], [1], [0, 0, 1, 1], [], []>} : vector<32x32xbf16>, vector<32x64xbf16>, vector<32x64xf32> -> vector<32x64xf32>
    %156 = arith.addf %152, %155 : vector<32x64xf32>
    %157 = arith.truncf %149 : vector<32x64xf32> to vector<32x64xbf16>
    %158 = vector.extract_strided_slice %134 {offsets = [0, 0, 0], sizes = [1, 64, 128], strides = [1, 1, 1]} : vector<2x64x128xbf16> to vector<1x64x128xbf16>
    %159 = vector.shape_cast %158 : vector<1x64x128xbf16> to vector<64x128xbf16>
    %cst_81 = arith.constant dense<0.000000e+00> : vector<32x128xf32>
    %160 = tpu.matmul %157, %159, %cst_81 {dimension_numbers = #tpu.dot_dimension_numbers<[1], [0], [0], [1], [0, 0, 1, 1], [], []>} : vector<32x64xbf16>, vector<64x128xbf16>, vector<32x128xf32> -> vector<32x128xf32>
    %161 = arith.truncf %156 : vector<32x64xf32> to vector<32x64xbf16>
    %162 = vector.extract_strided_slice %134 {offsets = [1, 0, 0], sizes = [1, 64, 128], strides = [1, 1, 1]} : vector<2x64x128xbf16> to vector<1x64x128xbf16>
    %163 = vector.shape_cast %162 : vector<1x64x128xbf16> to vector<64x128xbf16>
    %cst_82 = arith.constant dense<0.000000e+00> : vector<32x128xf32>
    %164 = tpu.matmul %161, %163, %cst_82 {dimension_numbers = #tpu.dot_dimension_numbers<[1], [0], [0], [1], [0, 0, 1, 1], [], []>} : vector<32x64xbf16>, vector<64x128xbf16>, vector<32x128xf32> -> vector<32x128xf32>
    %165 = arith.addf %160, %164 : vector<32x128xf32>
    %166 = vector.broadcast %132 : vector<32x1xf32> to vector<32x128xf32>
    %167 = arith.addf %165, %166 : vector<32x128xf32>
    %cst_83 = arith.constant 0.000000e+00 : f32
    %168 = vector.broadcast %cst_83 : f32 to vector<32x128xf32>
    %169 = arith.maximumf %167, %168 : vector<32x128xf32>
    %170 = arith.truncf %169 : vector<32x128xf32> to vector<32x128xbf16>
    %c0_84 = arith.constant 0 : index
    %c0_85 = arith.constant 0 : index
    %c0_86 = arith.constant 0 : index
    %171 = vector.load %arg15[%c0_84, %c0_85, %c0_86] : memref<4x16x32xbf16, #tpu.memory_space<vmem>>, vector<4x16x32xbf16>
    %c0_87 = arith.constant 0 : index
    %c0_88 = arith.constant 0 : index
    %172 = vector.load %arg16[%c0_87, %c0_88] : memref<16x1xf32, #tpu.memory_space<vmem>>, vector<16x1xf32>
    %c0_89 = arith.constant 0 : index
    %c0_90 = arith.constant 0 : index
    %c0_91 = arith.constant 0 : index
    %173 = vector.load %arg17[%c0_89, %c0_90, %c0_91] : memref<2x128x128xbf16, #tpu.memory_space<vmem>>, vector<2x128x128xbf16>
    %c0_92 = arith.constant 0 : index
    %c0_93 = arith.constant 0 : index
    %c0_94 = arith.constant 0 : index
    %174 = vector.load %arg18[%c0_92, %c0_93, %c0_94] : memref<2x128x256xbf16, #tpu.memory_space<vmem>>, vector<2x128x256xbf16>
    %175 = vector.extract_strided_slice %173 {offsets = [0, 0, 0], sizes = [1, 128, 128], strides = [1, 1, 1]} : vector<2x128x128xbf16> to vector<1x128x128xbf16>
    %176 = vector.shape_cast %175 : vector<1x128x128xbf16> to vector<128x128xbf16>
    %cst_95 = arith.constant dense<0.000000e+00> : vector<32x128xf32>
    %177 = tpu.matmul %170, %176, %cst_95 {dimension_numbers = #tpu.dot_dimension_numbers<[1], [0], [0], [1], [0, 0, 1, 1], [], []>} : vector<32x128xbf16>, vector<128x128xbf16>, vector<32x128xf32> -> vector<32x128xf32>
    %178 = arith.truncf %177 : vector<32x128xf32> to vector<32x128xbf16>
    %179 = vector.extract_strided_slice %173 {offsets = [1, 0, 0], sizes = [1, 128, 128], strides = [1, 1, 1]} : vector<2x128x128xbf16> to vector<1x128x128xbf16>
    %180 = vector.shape_cast %179 : vector<1x128x128xbf16> to vector<128x128xbf16>
    %cst_96 = arith.constant dense<0.000000e+00> : vector<32x128xf32>
    %181 = tpu.matmul %170, %180, %cst_96 {dimension_numbers = #tpu.dot_dimension_numbers<[1], [0], [0], [1], [0, 0, 1, 1], [], []>} : vector<32x128xbf16>, vector<128x128xbf16>, vector<32x128xf32> -> vector<32x128xf32>
    %182 = arith.truncf %181 : vector<32x128xf32> to vector<32x128xbf16>
    %183 = vector.extract_strided_slice %171 {offsets = [1, 0, 0], sizes = [1, 16, 32], strides = [1, 1, 1]} : vector<4x16x32xbf16> to vector<1x16x32xbf16>
    %184 = vector.shape_cast %183 : vector<1x16x32xbf16> to vector<16x32xbf16>
    %cst_97 = arith.constant dense<0.000000e+00> : vector<16x128xf32>
    %185 = tpu.matmul %184, %170, %cst_97 {dimension_numbers = #tpu.dot_dimension_numbers<[1], [0], [0], [1], [0, 0, 1, 1], [], []>} : vector<16x32xbf16>, vector<32x128xbf16>, vector<16x128xf32> -> vector<16x128xf32>
    %186 = vector.extract_strided_slice %171 {offsets = [3, 0, 0], sizes = [1, 16, 32], strides = [1, 1, 1]} : vector<4x16x32xbf16> to vector<1x16x32xbf16>
    %187 = vector.shape_cast %186 : vector<1x16x32xbf16> to vector<16x32xbf16>
    %cst_98 = arith.constant dense<0.000000e+00> : vector<16x128xf32>
    %188 = tpu.matmul %187, %178, %cst_98 {dimension_numbers = #tpu.dot_dimension_numbers<[1], [0], [0], [1], [0, 0, 1, 1], [], []>} : vector<16x32xbf16>, vector<32x128xbf16>, vector<16x128xf32> -> vector<16x128xf32>
    %189 = arith.addf %185, %188 : vector<16x128xf32>
    %190 = vector.extract_strided_slice %171 {offsets = [2, 0, 0], sizes = [1, 16, 32], strides = [1, 1, 1]} : vector<4x16x32xbf16> to vector<1x16x32xbf16>
    %191 = vector.shape_cast %190 : vector<1x16x32xbf16> to vector<16x32xbf16>
    %cst_99 = arith.constant dense<0.000000e+00> : vector<16x128xf32>
    %192 = tpu.matmul %191, %170, %cst_99 {dimension_numbers = #tpu.dot_dimension_numbers<[1], [0], [0], [1], [0, 0, 1, 1], [], []>} : vector<16x32xbf16>, vector<32x128xbf16>, vector<16x128xf32> -> vector<16x128xf32>
    %193 = vector.extract_strided_slice %171 {offsets = [0, 0, 0], sizes = [1, 16, 32], strides = [1, 1, 1]} : vector<4x16x32xbf16> to vector<1x16x32xbf16>
    %194 = vector.shape_cast %193 : vector<1x16x32xbf16> to vector<16x32xbf16>
    %cst_100 = arith.constant dense<0.000000e+00> : vector<16x128xf32>
    %195 = tpu.matmul %194, %182, %cst_100 {dimension_numbers = #tpu.dot_dimension_numbers<[1], [0], [0], [1], [0, 0, 1, 1], [], []>} : vector<16x32xbf16>, vector<32x128xbf16>, vector<16x128xf32> -> vector<16x128xf32>
    %196 = arith.addf %192, %195 : vector<16x128xf32>
    %197 = arith.truncf %189 : vector<16x128xf32> to vector<16x128xbf16>
    %198 = vector.extract_strided_slice %174 {offsets = [0, 0, 0], sizes = [1, 128, 256], strides = [1, 1, 1]} : vector<2x128x256xbf16> to vector<1x128x256xbf16>
    %199 = vector.shape_cast %198 : vector<1x128x256xbf16> to vector<128x256xbf16>
    %cst_101 = arith.constant dense<0.000000e+00> : vector<16x256xf32>
    %200 = tpu.matmul %197, %199, %cst_101 {dimension_numbers = #tpu.dot_dimension_numbers<[1], [0], [0], [1], [0, 0, 1, 1], [], []>} : vector<16x128xbf16>, vector<128x256xbf16>, vector<16x256xf32> -> vector<16x256xf32>
    %201 = arith.truncf %196 : vector<16x128xf32> to vector<16x128xbf16>
    %202 = vector.extract_strided_slice %174 {offsets = [1, 0, 0], sizes = [1, 128, 256], strides = [1, 1, 1]} : vector<2x128x256xbf16> to vector<1x128x256xbf16>
    %203 = vector.shape_cast %202 : vector<1x128x256xbf16> to vector<128x256xbf16>
    %cst_102 = arith.constant dense<0.000000e+00> : vector<16x256xf32>
    %204 = tpu.matmul %201, %203, %cst_102 {dimension_numbers = #tpu.dot_dimension_numbers<[1], [0], [0], [1], [0, 0, 1, 1], [], []>} : vector<16x128xbf16>, vector<128x256xbf16>, vector<16x256xf32> -> vector<16x256xf32>
    %205 = arith.addf %200, %204 : vector<16x256xf32>
    %206 = vector.broadcast %172 : vector<16x1xf32> to vector<16x256xf32>
    %207 = arith.addf %205, %206 : vector<16x256xf32>
    %cst_103 = arith.constant 0.000000e+00 : f32
    %208 = vector.broadcast %cst_103 : f32 to vector<16x256xf32>
    %209 = arith.maximumf %207, %208 : vector<16x256xf32>
    %210 = arith.truncf %209 : vector<16x256xf32> to vector<16x256xbf16>
    %c0_104 = arith.constant 0 : index
    %c0_105 = arith.constant 0 : index
    %c0_106 = arith.constant 0 : index
    %211 = vector.load %arg19[%c0_104, %c0_105, %c0_106] : memref<4x1x16xbf16, #tpu.memory_space<vmem>>, vector<4x1x16xbf16>
    %c0_107 = arith.constant 0 : index
    %c0_108 = arith.constant 0 : index
    %212 = vector.load %arg20[%c0_107, %c0_108] : memref<1x1xf32, #tpu.memory_space<vmem>>, vector<1x1xf32>
    %c0_109 = arith.constant 0 : index
    %c0_110 = arith.constant 0 : index
    %c0_111 = arith.constant 0 : index
    %213 = vector.load %arg21[%c0_109, %c0_110, %c0_111] : memref<2x256x256xbf16, #tpu.memory_space<vmem>>, vector<2x256x256xbf16>
    %c0_112 = arith.constant 0 : index
    %c0_113 = arith.constant 0 : index
    %c0_114 = arith.constant 0 : index
    %214 = vector.load %arg22[%c0_112, %c0_113, %c0_114] : memref<2x256x512xbf16, #tpu.memory_space<vmem>>, vector<2x256x512xbf16>
    %215 = vector.extract_strided_slice %213 {offsets = [0, 0, 0], sizes = [1, 256, 256], strides = [1, 1, 1]} : vector<2x256x256xbf16> to vector<1x256x256xbf16>
    %216 = vector.shape_cast %215 : vector<1x256x256xbf16> to vector<256x256xbf16>
    %cst_115 = arith.constant dense<0.000000e+00> : vector<16x256xf32>
    %217 = tpu.matmul %210, %216, %cst_115 {dimension_numbers = #tpu.dot_dimension_numbers<[1], [0], [0], [1], [0, 0, 1, 1], [], []>} : vector<16x256xbf16>, vector<256x256xbf16>, vector<16x256xf32> -> vector<16x256xf32>
    %218 = arith.truncf %217 : vector<16x256xf32> to vector<16x256xbf16>
    %219 = vector.extract_strided_slice %213 {offsets = [1, 0, 0], sizes = [1, 256, 256], strides = [1, 1, 1]} : vector<2x256x256xbf16> to vector<1x256x256xbf16>
    %220 = vector.shape_cast %219 : vector<1x256x256xbf16> to vector<256x256xbf16>
    %cst_116 = arith.constant dense<0.000000e+00> : vector<16x256xf32>
    %221 = tpu.matmul %210, %220, %cst_116 {dimension_numbers = #tpu.dot_dimension_numbers<[1], [0], [0], [1], [0, 0, 1, 1], [], []>} : vector<16x256xbf16>, vector<256x256xbf16>, vector<16x256xf32> -> vector<16x256xf32>
    %222 = arith.truncf %221 : vector<16x256xf32> to vector<16x256xbf16>
    %223 = vector.extract_strided_slice %211 {offsets = [1, 0, 0], sizes = [1, 1, 16], strides = [1, 1, 1]} : vector<4x1x16xbf16> to vector<1x1x16xbf16>
    %224 = vector.shape_cast %223 : vector<1x1x16xbf16> to vector<1x16xbf16>
    %cst_117 = arith.constant dense<0.000000e+00> : vector<1x256xf32>
    %225 = tpu.matmul %224, %210, %cst_117 {dimension_numbers = #tpu.dot_dimension_numbers<[1], [0], [0], [1], [0, 0, 1, 1], [], []>} : vector<1x16xbf16>, vector<16x256xbf16>, vector<1x256xf32> -> vector<1x256xf32>
    %226 = vector.extract_strided_slice %211 {offsets = [3, 0, 0], sizes = [1, 1, 16], strides = [1, 1, 1]} : vector<4x1x16xbf16> to vector<1x1x16xbf16>
    %227 = vector.shape_cast %226 : vector<1x1x16xbf16> to vector<1x16xbf16>
    %cst_118 = arith.constant dense<0.000000e+00> : vector<1x256xf32>
    %228 = tpu.matmul %227, %218, %cst_118 {dimension_numbers = #tpu.dot_dimension_numbers<[1], [0], [0], [1], [0, 0, 1, 1], [], []>} : vector<1x16xbf16>, vector<16x256xbf16>, vector<1x256xf32> -> vector<1x256xf32>
    %229 = arith.addf %225, %228 : vector<1x256xf32>
    %230 = vector.extract_strided_slice %211 {offsets = [2, 0, 0], sizes = [1, 1, 16], strides = [1, 1, 1]} : vector<4x1x16xbf16> to vector<1x1x16xbf16>
    %231 = vector.shape_cast %230 : vector<1x1x16xbf16> to vector<1x16xbf16>
    %cst_119 = arith.constant dense<0.000000e+00> : vector<1x256xf32>
    %232 = tpu.matmul %231, %210, %cst_119 {dimension_numbers = #tpu.dot_dimension_numbers<[1], [0], [0], [1], [0, 0, 1, 1], [], []>} : vector<1x16xbf16>, vector<16x256xbf16>, vector<1x256xf32> -> vector<1x256xf32>
    %233 = vector.extract_strided_slice %211 {offsets = [0, 0, 0], sizes = [1, 1, 16], strides = [1, 1, 1]} : vector<4x1x16xbf16> to vector<1x1x16xbf16>
    %234 = vector.shape_cast %233 : vector<1x1x16xbf16> to vector<1x16xbf16>
    %cst_120 = arith.constant dense<0.000000e+00> : vector<1x256xf32>
    %235 = tpu.matmul %234, %222, %cst_120 {dimension_numbers = #tpu.dot_dimension_numbers<[1], [0], [0], [1], [0, 0, 1, 1], [], []>} : vector<1x16xbf16>, vector<16x256xbf16>, vector<1x256xf32> -> vector<1x256xf32>
    %236 = arith.addf %232, %235 : vector<1x256xf32>
    %237 = arith.truncf %229 : vector<1x256xf32> to vector<1x256xbf16>
    %238 = vector.extract_strided_slice %214 {offsets = [0, 0, 0], sizes = [1, 256, 512], strides = [1, 1, 1]} : vector<2x256x512xbf16> to vector<1x256x512xbf16>
    %239 = vector.shape_cast %238 : vector<1x256x512xbf16> to vector<256x512xbf16>
    %cst_121 = arith.constant dense<0.000000e+00> : vector<1x512xf32>
    %240 = tpu.matmul %237, %239, %cst_121 {dimension_numbers = #tpu.dot_dimension_numbers<[1], [0], [0], [1], [0, 0, 1, 1], [], []>} : vector<1x256xbf16>, vector<256x512xbf16>, vector<1x512xf32> -> vector<1x512xf32>
    %241 = arith.truncf %236 : vector<1x256xf32> to vector<1x256xbf16>
    %242 = vector.extract_strided_slice %214 {offsets = [1, 0, 0], sizes = [1, 256, 512], strides = [1, 1, 1]} : vector<2x256x512xbf16> to vector<1x256x512xbf16>
    %243 = vector.shape_cast %242 : vector<1x256x512xbf16> to vector<256x512xbf16>
    %cst_122 = arith.constant dense<0.000000e+00> : vector<1x512xf32>
    %244 = tpu.matmul %241, %243, %cst_122 {dimension_numbers = #tpu.dot_dimension_numbers<[1], [0], [0], [1], [0, 0, 1, 1], [], []>} : vector<1x256xbf16>, vector<256x512xbf16>, vector<1x512xf32> -> vector<1x512xf32>
    %245 = arith.addf %240, %244 : vector<1x512xf32>
    %246 = vector.broadcast %212 : vector<1x1xf32> to vector<1x512xf32>
    %247 = arith.addf %245, %246 : vector<1x512xf32>
    %c0_123 = arith.constant 0 : index
    %c0_124 = arith.constant 0 : index
    %c0_125 = arith.constant 0 : index
    %248 = vector.load %arg23[%c0_123, %c0_124, %c0_125] : memref<1x1x512xf32, #tpu.memory_space<vmem>>, vector<1x1x512xf32>
    %249 = vector.shape_cast %248 : vector<1x1x512xf32> to vector<1x512xf32>
    %250 = vector.shape_cast %247 : vector<1x512xf32> to vector<1x1x512xf32>
    tpu.vector_store %arg23[%c0_123, %c0_124, %c0_125], %250 {strides = array<i32>} : memref<1x1x512xf32, #tpu.memory_space<vmem>>, vector<1x1x512xf32>,
    return
  }
  func.func @transform_0(%arg0: i32) -> (i32, i32, i32) {
    %c0_i32 = arith.constant 0 : i32
    %c0_i32_0 = arith.constant 0 : i32
    %c0_i32_1 = arith.constant 0 : i32
    return %arg0, %c0_i32, %c0_i32_0 : i32, i32, i32
  }
  func.func @transform_1(%arg0: i32) -> (i32, i32, i32) {
    %c0_i32 = arith.constant 0 : i32
    %c0_i32_0 = arith.constant 0 : i32
    %c0_i32_1 = arith.constant 0 : i32
    %c0_i32_2 = arith.constant 0 : i32
    return %c0_i32, %c0_i32_0, %c0_i32_1 : i32, i32, i32
  }
  func.func @transform_2(%arg0: i32) -> (i32, i32) {
    %c0_i32 = arith.constant 0 : i32
    %c0_i32_0 = arith.constant 0 : i32
    %c0_i32_1 = arith.constant 0 : i32
    return %c0_i32, %c0_i32_0 : i32, i32
  }
  func.func @transform_3(%arg0: i32) -> (i32, i32, i32, i32) {
    %c0_i32 = arith.constant 0 : i32
    %c0_i32_0 = arith.constant 0 : i32
    %c0_i32_1 = arith.constant 0 : i32
    %c0_i32_2 = arith.constant 0 : i32
    %c0_i32_3 = arith.constant 0 : i32
    return %c0_i32, %c0_i32_0, %c0_i32_1, %c0_i32_2 : i32, i32, i32, i32
  }
  func.func @transform_4(%arg0: i32) -> (i32, i32, i32) {
    %c0_i32 = arith.constant 0 : i32
    %c0_i32_0 = arith.constant 0 : i32
    %c0_i32_1 = arith.constant 0 : i32
    %c0_i32_2 = arith.constant 0 : i32
    return %c0_i32, %c0_i32_0, %c0_i32_1 : i32, i32, i32
  }
  func.func @transform_5(%arg0: i32) -> (i32, i32, i32) {
    %c0_i32 = arith.constant 0 : i32
    %c0_i32_0 = arith.constant 0 : i32
    %c0_i32_1 = arith.constant 0 : i32
    %c0_i32_2 = arith.constant 0 : i32
    return %c0_i32, %c0_i32_0, %c0_i32_1 : i32, i32, i32
  }
  func.func @transform_6(%arg0: i32) -> (i32, i32, i32) {
    %c0_i32 = arith.constant 0 : i32
    %c0_i32_0 = arith.constant 0 : i32
    %c0_i32_1 = arith.constant 0 : i32
    %c0_i32_2 = arith.constant 0 : i32
    return %c0_i32, %c0_i32_0, %c0_i32_1 : i32, i32, i32
  }
  func.func @transform_7(%arg0: i32) -> (i32, i32) {
    %c0_i32 = arith.constant 0 : i32
    %c0_i32_0 = arith.constant 0 : i32
    %c0_i32_1 = arith.constant 0 : i32
    return %c0_i32, %c0_i32_0 : i32, i32
  }
  func.func @transform_8(%arg0: i32) -> (i32, i32, i32) {
    %c0_i32 = arith.constant 0 : i32
    %c0_i32_0 = arith.constant 0 : i32
    %c0_i32_1 = arith.constant 0 : i32
    %c0_i32_2 = arith.constant 0 : i32
    return %c0_i32, %c0_i32_0, %c0_i32_1 : i32, i32, i32
  }
  func.func @transform_9(%arg0: i32) -> (i32, i32, i32) {
    %c0_i32 = arith.constant 0 : i32
    %c0_i32_0 = arith.constant 0 : i32
    %c0_i32_1 = arith.constant 0 : i32
    %c0_i32_2 = arith.constant 0 : i32
    return %c0_i32, %c0_i32_0, %c0_i32_1 : i32, i32, i32
  }
  func.func @transform_10(%arg0: i32) -> (i32, i32, i32) {
    %c0_i32 = arith.constant 0 : i32
    %c0_i32_0 = arith.constant 0 : i32
    %c0_i32_1 = arith.constant 0 : i32
    %c0_i32_2 = arith.constant 0 : i32
    return %c0_i32, %c0_i32_0, %c0_i32_1 : i32, i32, i32
  }
  func.func @transform_11(%arg0: i32) -> (i32, i32) {
    %c0_i32 = arith.constant 0 : i32
    %c0_i32_0 = arith.constant 0 : i32
    %c0_i32_1 = arith.constant 0 : i32
    return %c0_i32, %c0_i32_0 : i32, i32
  }
  func.func @transform_12(%arg0: i32) -> (i32, i32, i32) {
    %c0_i32 = arith.constant 0 : i32
    %c0_i32_0 = arith.constant 0 : i32
    %c0_i32_1 = arith.constant 0 : i32
    %c0_i32_2 = arith.constant 0 : i32
    return %c0_i32, %c0_i32_0, %c0_i32_1 : i32, i32, i32
  }
  func.func @transform_13(%arg0: i32) -> (i32, i32, i32) {
    %c0_i32 = arith.constant 0 : i32
    %c0_i32_0 = arith.constant 0 : i32
    %c0_i32_1 = arith.constant 0 : i32
    %c0_i32_2 = arith.constant 0 : i32
    return %c0_i32, %c0_i32_0, %c0_i32_1 : i32, i32, i32
  }
  func.func @transform_14(%arg0: i32) -> (i32, i32, i32) {
    %c0_i32 = arith.constant 0 : i32
    %c0_i32_0 = arith.constant 0 : i32
    %c0_i32_1 = arith.constant 0 : i32
    %c0_i32_2 = arith.constant 0 : i32
    return %c0_i32, %c0_i32_0, %c0_i32_1 : i32, i32, i32
  }
  func.func @transform_15(%arg0: i32) -> (i32, i32) {
    %c0_i32 = arith.constant 0 : i32
    %c0_i32_0 = arith.constant 0 : i32
    %c0_i32_1 = arith.constant 0 : i32
    return %c0_i32, %c0_i32_0 : i32, i32
  }
  func.func @transform_16(%arg0: i32) -> (i32, i32, i32) {
    %c0_i32 = arith.constant 0 : i32
    %c0_i32_0 = arith.constant 0 : i32
    %c0_i32_1 = arith.constant 0 : i32
    %c0_i32_2 = arith.constant 0 : i32
    return %c0_i32, %c0_i32_0, %c0_i32_1 : i32, i32, i32
  }
  func.func @transform_17(%arg0: i32) -> (i32, i32, i32) {
    %c0_i32 = arith.constant 0 : i32
    %c0_i32_0 = arith.constant 0 : i32
    %c0_i32_1 = arith.constant 0 : i32
    %c0_i32_2 = arith.constant 0 : i32
    return %c0_i32, %c0_i32_0, %c0_i32_1 : i32, i32, i32
  }
  func.func @transform_18(%arg0: i32) -> (i32, i32, i32) {
    %c0_i32 = arith.constant 0 : i32
    %c0_i32_0 = arith.constant 0 : i32
    %c0_i32_1 = arith.constant 0 : i32
    %c0_i32_2 = arith.constant 0 : i32
    return %c0_i32, %c0_i32_0, %c0_i32_1 : i32, i32, i32
  }
  func.func @transform_19(%arg0: i32) -> (i32, i32) {
    %c0_i32 = arith.constant 0 : i32
    %c0_i32_0 = arith.constant 0 : i32
    %c0_i32_1 = arith.constant 0 : i32
    return %c0_i32, %c0_i32_0 : i32, i32
  }
  func.func @transform_20(%arg0: i32) -> (i32, i32, i32) {
    %c0_i32 = arith.constant 0 : i32
    %c0_i32_0 = arith.constant 0 : i32
    %c0_i32_1 = arith.constant 0 : i32
    %c0_i32_2 = arith.constant 0 : i32
    return %c0_i32, %c0_i32_0, %c0_i32_1 : i32, i32, i32
  }
  func.func @transform_21(%arg0: i32) -> (i32, i32, i32) {
    %c0_i32 = arith.constant 0 : i32
    %c0_i32_0 = arith.constant 0 : i32
    %c0_i32_1 = arith.constant 0 : i32
    %c0_i32_2 = arith.constant 0 : i32
    return %c0_i32, %c0_i32_0, %c0_i32_1 : i32, i32, i32
  }
  func.func @transform_22(%arg0: i32) -> (i32, i32, i32) {
    %c0_i32 = arith.constant 0 : i32
    %c0_i32_0 = arith.constant 0 : i32
    %c0_i32_1 = arith.constant 0 : i32
    return %arg0, %c0_i32, %c0_i32_0 : i32, i32, i32
  }
}

</mosaic_0001>

<llo_original>
// kernel: tpu_custom_call.1
$region0: #{tpu_custom_call.1}
  #allocation0 [shape = 'u32[]', space=smem, size = 0x4, offset = 0x4, fixed_abs, tag = 'smem constant byte address 0x4 - core index']
  #allocation1 [shape = 'u32[144,128]{1,0:T(1,128)}', space=vmem, size = 0x12000, scoped, tag = 'internal scratch']
  #allocation2 [shape = 'f32[1,1]{1,0:T(1,128)S(1)}', space=vmem, size = 0x200, scoped, tag = 'scoped memory for tpu_custom_call.1']
  %s0 = inlined_call_operand.hbm [shape: bf16[2,32,32], index: 0, kind: input, shape index: {}]
  %s1 = inlined_call_operand.hbm [shape: bf16[3,32,32], index: 1, kind: input, shape index: {}]
  %s2 = inlined_call_operand.vmem [shape: f32[32,1], index: 2, kind: input, shape index: {}]
  %s3 = inlined_call_operand.hbm [shape: bf16[2,3,16,32], index: 3, kind: input, shape index: {}]
  %s4 = inlined_call_operand.vmem [shape: bf16[2,32,16], index: 4, kind: input, shape index: {}]
  %s5 = inlined_call_operand.hbm [shape: bf16[2,32,32], index: 5, kind: input, shape index: {}]
  %s6 = inlined_call_operand.vmem [shape: bf16[4,32,32], index: 6, kind: input, shape index: {}]
  %s7 = inlined_call_operand.vmem [shape: f32[32,1], index: 7, kind: input, shape index: {}]
  %s8 = inlined_call_operand.hbm [shape: bf16[2,32,32], index: 8, kind: input, shape index: {}]
  %s9 = inlined_call_operand.hbm [shape: bf16[2,32,64], index: 9, kind: input, shape index: {}]
  %s10 = inlined_call_operand.hbm [shape: bf16[4,32,32], index: 10, kind: input, shape index: {}]
  %s11 = inlined_call_operand.vmem [shape: f32[32,1], index: 11, kind: input, shape index: {}]
  %s12 = inlined_call_operand.hbm [shape: bf16[2,64,64], index: 12, kind: input, shape index: {}]
  %s13 = inlined_call_operand.hbm [shape: bf16[2,64,128], index: 13, kind: input, shape index: {}]
  %s14 = inlined_call_operand.hbm [shape: bf16[4,16,32], index: 14, kind: input, shape index: {}]
  %s15 = inlined_call_operand.vmem [shape: f32[16,1], index: 15, kind: input, shape index: {}]
  %s16 = inlined_call_operand.vmem [shape: bf16[2,128,128], index: 16, kind: input, shape index: {}]
  %s17 = inlined_call_operand.hbm [shape: bf16[2,128,256], index: 17, kind: input, shape index: {}]
  %s18 = inlined_call_operand.vmem [shape: bf16[4,1,16], index: 18, kind: input, shape index: {}]
  %s19 = inlined_call_operand.<no memory space> [shape: f32[1,1], index: 19, kind: input, shape index: {}]
  %s20 = inlined_call_operand.hbm [shape: bf16[2,256,256], index: 20, kind: input, shape index: {}]
  %s21 = inlined_call_operand.hbm [shape: bf16[2,256,512], index: 21, kind: input, shape index: {}]
  %s22 = inlined_call_operand.hbm [shape: f32[2,1,512], index: 22, kind: output, shape index: {}]
  %s23 = sld [smem:[#allocation0]]
  $region173: #{tpu_custom_call.1} parent=0
    _
  %s25 = ssub.s32 1, %s23
  %s26 = scalar_select 0, %s25, %s23
  %v27 = vstv %s19
  %28 = vst [vmem:[#allocation2] sm:$0x1] %v27
  $region1: #{tpu_custom_call.1} parent=0
    #allocation3 [shape = 'u8[16384]{0}', space=vmem, size = 0x4000, scoped, tag = 'input window, operand 0']
    #allocation4 [shape = 's32[2]{0}', space=sflag, size = 0x8, scoped, tag = 'scoped memory for tpu_custom_call.1']
    #allocation5 [shape = 's32[2]{0}', space=sflag, size = 0x8, scoped, tag = 'scoped memory for tpu_custom_call.1']
    #allocation6 [shape = 'u8[24576]{0}', space=vmem, size = 0x6000, scoped, tag = 'input window, operand 1, single buffered']
    #allocation7 [shape = 's32[1]{0}', space=sflag, size = 0x4, scoped, tag = 'scoped memory for tpu_custom_call.1']
    #allocation8 [shape = 'u8[24576]{0}', space=vmem, size = 0x6000, scoped, tag = 'input window, operand 3, single buffered']
    #allocation9 [shape = 'u8[16384]{0}', space=vmem, size = 0x4000, scoped, tag = 'input window, operand 5, single buffered']
    #allocation10 [shape = 's32[1]{0}', space=sflag, size = 0x4, scoped, tag = 'scoped memory for tpu_custom_call.1']
    #allocation11 [shape = 'u8[16384]{0}', space=vmem, size = 0x4000, scoped, tag = 'input window, operand 8, single buffered']
    #allocation12 [shape = 'u8[16384]{0}', space=vmem, size = 0x4000, scoped, tag = 'input window, operand 9, single buffered']
    #allocation13 [shape = 's32[1]{0}', space=sflag, size = 0x4, scoped, tag = 'scoped memory for tpu_custom_call.1']
    #allocation14 [shape = 'u8[32768]{0}', space=vmem, size = 0x8000, scoped, tag = 'input window, operand 10, single buffered']
    #allocation15 [shape = 'u8[32768]{0}', space=vmem, size = 0x8000, scoped, tag = 'input window, operand 12, single buffered']
    #allocation16 [shape = 's32[1]{0}', space=sflag, size = 0x4, scoped, tag = 'scoped memory for tpu_custom_call.1']
    #allocation17 [shape = 'u8[32768]{0}', space=vmem, size = 0x8000, scoped, tag = 'input window, operand 13, single buffered']
    #allocation18 [shape = 'u8[16384]{0}', space=vmem, size = 0x4000, scoped, tag = 'input window, operand 14, single buffered']
    #allocation19 [shape = 's32[1]{0}', space=sflag, size = 0x4, scoped, tag = 'scoped memory for tpu_custom_call.1']
    #allocation20 [shape = 'u8[131072]{0}', space=vmem, size = 0x20000, scoped, tag = 'input window, operand 17, single buffered']
    #allocation21 [shape = 'u8[262144]{0}', space=vmem, size = 0x40000, scoped, tag = 'input window, operand 20, single buffered']
    #allocation22 [shape = 's32[1]{0}', space=sflag, size = 0x4, scoped, tag = 'scoped memory for tpu_custom_call.1']
    #allocation23 [shape = 'u8[524288]{0}', space=vmem, size = 0x80000, scoped, tag = 'input window, operand 21, single buffered']
    #allocation24 [shape = 'u8[4096]{0}', space=vmem, size = 0x1000, scoped, tag = 'output window, operand 0']
    %29 = vsyncpa [#allocation4], 0
    %s30 = scalar_lea.sflag [#allocation4], 1
    %31 = vsyncpa %s30, 0
    %32 = vsyncpa [#allocation7], 0
    %33 = vsyncpa [#allocation10], 0
    %34 = vsyncpa [#allocation13], 0
    %35 = vsyncpa [#allocation16], 0
    %36 = vsyncpa [#allocation19], 0
    %37 = vsyncpa [#allocation22], 0
    %38 = vsyncpa [#allocation5], 0
    %s39 = scalar_lea.sflag [#allocation5], 1
    %40 = vsyncpa %s39, 0
    loop: start=0, step=1, limit=4
    $region2: #{tpu_custom_call.1} parent=1 // loop_pre_header
      _
    $region3: #{tpu_custom_call.1} parent=1 // loop_header
      %s42 = sphi 0, %s46
      %p43 = scmp.ge.s32.totalorder %s42, 4
      %s52 = sphi 0, %s54
      %s55 = sphi 0, %s52
      %s56 = sphi 0, %s55
      %s72 = sphi 0, %s56
      %s76 = sphi 0, %s76
      %s78 = sphi 0, %s76
      %s79 = sphi 0, %s78
      %s93 = sphi 0, %s79
      %s97 = sphi 0, %s97
      %s99 = sphi 0, %s97
      %s100 = sphi 0, %s99
      %s114 = sphi 0, %s100
      %s118 = sphi 0, %s118
      %s120 = sphi 0, %s118
      %s121 = sphi 0, %s120
      %s135 = sphi 0, %s121
      %s139 = sphi 0, %s139
      %s141 = sphi 0, %s139
      %s142 = sphi 0, %s141
      %s156 = sphi 0, %s142
      %s160 = sphi 0, %s160
      %s162 = sphi 0, %s160
      %s163 = sphi 0, %s162
      %s177 = sphi 0, %s163
      %s181 = sphi 0, %s181
      %s183 = sphi 0, %s181
      %s184 = sphi 0, %s183
      %s198 = sphi 0, %s184
      %s202 = sphi 0, %s202
      %s204 = sphi 0, %s202
      %s205 = sphi 0, %s204
      %s219 = sphi 0, %s205
      %s223 = sphi 0, %s223
      %s225 = sphi 0, %s223
      %s226 = sphi 0, %s225
      %s240 = sphi 0, %s226
      %s244 = sphi 0, %s244
      %s246 = sphi 0, %s244
      %s247 = sphi 0, %s246
      %s261 = sphi 0, %s247
      %s265 = sphi 0, %s265
      %s267 = sphi 0, %s265
      %s268 = sphi 0, %s267
      %s282 = sphi 0, %s268
      %s286 = sphi 0, %s286
      %s288 = sphi 0, %s286
      %s289 = sphi 0, %s288
      %s303 = sphi 0, %s289
      %s307 = sphi 0, %s307
      %s309 = sphi 0, %s307
      %s310 = sphi 0, %s309
      %s324 = sphi 0, %s310
      %s328 = sphi 0, %s328
      %s330 = sphi 0, %s328
      %s331 = sphi 0, %s330
      %s345 = sphi 0, %s331
      %s349 = sphi 0, %s349
      %s351 = sphi 0, %s349
      %s352 = sphi 0, %s351
      %s366 = sphi 0, %s352
      %s370 = sphi 0, %s370
      %s372 = sphi 0, %s370
      %s373 = sphi 0, %s372
      %s387 = sphi 0, %s373
      %s391 = sphi 0, %s391
      %s393 = sphi 0, %s391
      %s394 = sphi 0, %s393
      %s408 = sphi 0, %s394
      %s412 = sphi 0, %s412
      %s414 = sphi 0, %s412
      %s415 = sphi 0, %s414
      %s429 = sphi 0, %s415
      %s433 = sphi 0, %s433
      %s435 = sphi 0, %s433
      %s436 = sphi 0, %s435
      %s450 = sphi 0, %s436
      %s454 = sphi 0, %s454
      %s456 = sphi 0, %s454
      %s457 = sphi 0, %s456
      %s471 = sphi 0, %s457
      %s475 = sphi 0, %s475
      %s477 = sphi 0, %s475
      %s478 = sphi 0, %s477
      %s492 = sphi 0, %s478
      %s496 = sphi 0, %s496
      %s498 = sphi 0, %s496
      %s499 = sphi 0, %s498
      %s513 = sphi 0, %s499
      %s519 = sphi 0, %s521
      %s522 = sphi 0, %s519
      %s523 = sphi 0, %s522
      %s539 = sphi 0, %s523
    $region4: #{tpu_custom_call.1} parent=1 // loop_header_branch
      %45 = sbr.rel (%p43) target = $region8
    $region5: #{tpu_custom_call.1} parent=1 // loop_body
      %s47 = ssub.s32 %s42, 1
      %s48 = ssub.s32 %s42, 2
      %s49 = sadd.s32 %s42, 1
      %s50 = ssub.s32 %s42, %s49
      %p51 = scmp.eq.s32.totalorder %s50, 0
      %s53 = sadd.s32 %s52, 1
      %s54 = scalar_select %p51, %s52, %s53
      %p57 = pneg %p51
      %p58 = scmp.eq.s32.totalorder %s42, 1
      %p59 = por %p57, %p58
      %p60 = scmp.ne.s32.totalorder %s52, %s55
      %p61 = scmp.eq.s32.totalorder %s42, 0
      %p62 = por %p60, %p61
      %p63 = scmp.ne.s32.totalorder %s52, %s55
      %p64 = scmp.eq.s32.totalorder %s47, 1
      %p65 = por %p63, %p64
      %p66 = scmp.ne.s32.totalorder %s55, %s56
      %p67 = scmp.eq.s32.totalorder %s47, 0
      %p68 = por %p66, %p67
      %p69 = scmp.ne.s32.totalorder %s55, %s56
      %p70 = scmp.eq.s32.totalorder %s48, 1
      %p71 = por %p69, %p70
      %p73 = scmp.ne.s32.totalorder %s56, %s72
      %p74 = scmp.eq.s32.totalorder %s48, 0
      %p75 = por %p73, %p74
      %s77 = sadd.s32 %s76, 1
      %p80 = scmp.eq.s32.totalorder %s42, 1
      %p81 = scmp.ne.s32.totalorder %s76, %s78
      %p82 = scmp.eq.s32.totalorder %s42, 0
      %p83 = por %p81, %p82
      %p84 = scmp.ne.s32.totalorder %s76, %s78
      %p85 = scmp.eq.s32.totalorder %s47, 1
      %p86 = por %p84, %p85
      %p87 = scmp.ne.s32.totalorder %s78, %s79
      %p88 = scmp.eq.s32.totalorder %s47, 0
      %p89 = por %p87, %p88
      %p90 = scmp.ne.s32.totalorder %s78, %s79
      %p91 = scmp.eq.s32.totalorder %s48, 1
      %p92 = por %p90, %p91
      %p94 = scmp.ne.s32.totalorder %s79, %s93
      %p95 = scmp.eq.s32.totalorder %s48, 0
      %p96 = por %p94, %p95
      %s98 = sadd.s32 %s97, 1
      %p101 = scmp.eq.s32.totalorder %s42, 1
      %p102 = scmp.ne.s32.totalorder %s97, %s99
      %p103 = scmp.eq.s32.totalorder %s42, 0
      %p104 = por %p102, %p103
      %p105 = scmp.ne.s32.totalorder %s97, %s99
      %p106 = scmp.eq.s32.totalorder %s47, 1
      %p107 = por %p105, %p106
      %p108 = scmp.ne.s32.totalorder %s99, %s100
      %p109 = scmp.eq.s32.totalorder %s47, 0
      %p110 = por %p108, %p109
      %p111 = scmp.ne.s32.totalorder %s99, %s100
      %p112 = scmp.eq.s32.totalorder %s48, 1
      %p113 = por %p111, %p112
      %p115 = scmp.ne.s32.totalorder %s100, %s114
      %p116 = scmp.eq.s32.totalorder %s48, 0
      %p117 = por %p115, %p116
      %s119 = sadd.s32 %s118, 1
      %p122 = scmp.eq.s32.totalorder %s42, 1
      %p123 = scmp.ne.s32.totalorder %s118, %s120
      %p124 = scmp.eq.s32.totalorder %s42, 0
      %p125 = por %p123, %p124
      %p126 = scmp.ne.s32.totalorder %s118, %s120
      %p127 = scmp.eq.s32.totalorder %s47, 1
      %p128 = por %p126, %p127
      %p129 = scmp.ne.s32.totalorder %s120, %s121
      %p130 = scmp.eq.s32.totalorder %s47, 0
      %p131 = por %p129, %p130
      %p132 = scmp.ne.s32.totalorder %s120, %s121
      %p133 = scmp.eq.s32.totalorder %s48, 1
      %p134 = por %p132, %p133
      %p136 = scmp.ne.s32.totalorder %s121, %s135
      %p137 = scmp.eq.s32.totalorder %s48, 0
      %p138 = por %p136, %p137
      %s140 = sadd.s32 %s139, 1
      %p143 = scmp.eq.s32.totalorder %s42, 1
      %p144 = scmp.ne.s32.totalorder %s139, %s141
      %p145 = scmp.eq.s32.totalorder %s42, 0
      %p146 = por %p144, %p145
      %p147 = scmp.ne.s32.totalorder %s139, %s141
      %p148 = scmp.eq.s32.totalorder %s47, 1
      %p149 = por %p147, %p148
      %p150 = scmp.ne.s32.totalorder %s141, %s142
      %p151 = scmp.eq.s32.totalorder %s47, 0
      %p152 = por %p150, %p151
      %p153 = scmp.ne.s32.totalorder %s141, %s142
      %p154 = scmp.eq.s32.totalorder %s48, 1
      %p155 = por %p153, %p154
      %p157 = scmp.ne.s32.totalorder %s142, %s156
      %p158 = scmp.eq.s32.totalorder %s48, 0
      %p159 = por %p157, %p158
      %s161 = sadd.s32 %s160, 1
      %p164 = scmp.eq.s32.totalorder %s42, 1
      %p165 = scmp.ne.s32.totalorder %s160, %s162
      %p166 = scmp.eq.s32.totalorder %s42, 0
      %p167 = por %p165, %p166
      %p168 = scmp.ne.s32.totalorder %s160, %s162
      %p169 = scmp.eq.s32.totalorder %s47, 1
      %p170 = por %p168, %p169
      %p171 = scmp.ne.s32.totalorder %s162, %s163
      %p172 = scmp.eq.s32.totalorder %s47, 0
      %p173 = por %p171, %p172
      %p174 = scmp.ne.s32.totalorder %s162, %s163
      %p175 = scmp.eq.s32.totalorder %s48, 1
      %p176 = por %p174, %p175
      %p178 = scmp.ne.s32.totalorder %s163, %s177
      %p179 = scmp.eq.s32.totalorder %s48, 0
      %p180 = por %p178, %p179
      %s182 = sadd.s32 %s181, 1
      %p185 = scmp.eq.s32.totalorder %s42, 1
      %p186 = scmp.ne.s32.totalorder %s181, %s183
      %p187 = scmp.eq.s32.totalorder %s42, 0
      %p188 = por %p186, %p187
      %p189 = scmp.ne.s32.totalorder %s181, %s183
      %p190 = scmp.eq.s32.totalorder %s47, 1
      %p191 = por %p189, %p190
      %p192 = scmp.ne.s32.totalorder %s183, %s184
      %p193 = scmp.eq.s32.totalorder %s47, 0
      %p194 = por %p192, %p193
      %p195 = scmp.ne.s32.totalorder %s183, %s184
      %p196 = scmp.eq.s32.totalorder %s48, 1
      %p197 = por %p195, %p196
      %p199 = scmp.ne.s32.totalorder %s184, %s198
      %p200 = scmp.eq.s32.totalorder %s48, 0
      %p201 = por %p199, %p200
      %s203 = sadd.s32 %s202, 1
      %p206 = scmp.eq.s32.totalorder %s42, 1
      %p207 = scmp.ne.s32.totalorder %s202, %s204
      %p208 = scmp.eq.s32.totalorder %s42, 0
      %p209 = por %p207, %p208
      %p210 = scmp.ne.s32.totalorder %s202, %s204
      %p211 = scmp.eq.s32.totalorder %s47, 1
      %p212 = por %p210, %p211
      %p213 = scmp.ne.s32.totalorder %s204, %s205
      %p214 = scmp.eq.s32.totalorder %s47, 0
      %p215 = por %p213, %p214
      %p216 = scmp.ne.s32.totalorder %s204, %s205
      %p217 = scmp.eq.s32.totalorder %s48, 1
      %p218 = por %p216, %p217
      %p220 = scmp.ne.s32.totalorder %s205, %s219
      %p221 = scmp.eq.s32.totalorder %s48, 0
      %p222 = por %p220, %p221
      %s224 = sadd.s32 %s223, 1
      %p227 = scmp.eq.s32.totalorder %s42, 1
      %p228 = scmp.ne.s32.totalorder %s223, %s225
      %p229 = scmp.eq.s32.totalorder %s42, 0
      %p230 = por %p228, %p229
      %p231 = scmp.ne.s32.totalorder %s223, %s225
      %p232 = scmp.eq.s32.totalorder %s47, 1
      %p233 = por %p231, %p232
      %p234 = scmp.ne.s32.totalorder %s225, %s226
      %p235 = scmp.eq.s32.totalorder %s47, 0
      %p236 = por %p234, %p235
      %p237 = scmp.ne.s32.totalorder %s225, %s226
      %p238 = scmp.eq.s32.totalorder %s48, 1
      %p239 = por %p237, %p238
      %p241 = scmp.ne.s32.totalorder %s226, %s240
      %p242 = scmp.eq.s32.totalorder %s48, 0
      %p243 = por %p241, %p242
      %s245 = sadd.s32 %s244, 1
      %p248 = scmp.eq.s32.totalorder %s42, 1
      %p249 = scmp.ne.s32.totalorder %s244, %s246
      %p250 = scmp.eq.s32.totalorder %s42, 0
      %p251 = por %p249, %p250
      %p252 = scmp.ne.s32.totalorder %s244, %s246
      %p253 = scmp.eq.s32.totalorder %s47, 1
      %p254 = por %p252, %p253
      %p255 = scmp.ne.s32.totalorder %s246, %s247
      %p256 = scmp.eq.s32.totalorder %s47, 0
      %p257 = por %p255, %p256
      %p258 = scmp.ne.s32.totalorder %s246, %s247
      %p259 = scmp.eq.s32.totalorder %s48, 1
      %p260 = por %p258, %p259
      %p262 = scmp.ne.s32.totalorder %s247, %s261
      %p263 = scmp.eq.s32.totalorder %s48, 0
      %p264 = por %p262, %p263
      %s266 = sadd.s32 %s265, 1
      %p269 = scmp.eq.s32.totalorder %s42, 1
      %p270 = scmp.ne.s32.totalorder %s265, %s267
      %p271 = scmp.eq.s32.totalorder %s42, 0
      %p272 = por %p270, %p271
      %p273 = scmp.ne.s32.totalorder %s265, %s267
      %p274 = scmp.eq.s32.totalorder %s47, 1
      %p275 = por %p273, %p274
      %p276 = scmp.ne.s32.totalorder %s267, %s268
      %p277 = scmp.eq.s32.totalorder %s47, 0
      %p278 = por %p276, %p277
      %p279 = scmp.ne.s32.totalorder %s267, %s268
      %p280 = scmp.eq.s32.totalorder %s48, 1
      %p281 = por %p279, %p280
      %p283 = scmp.ne.s32.totalorder %s268, %s282
      %p284 = scmp.eq.s32.totalorder %s48, 0
      %p285 = por %p283, %p284
      %s287 = sadd.s32 %s286, 1
      %p290 = scmp.eq.s32.totalorder %s42, 1
      %p291 = scmp.ne.s32.totalorder %s286, %s288
      %p292 = scmp.eq.s32.totalorder %s42, 0
      %p293 = por %p291, %p292
      %p294 = scmp.ne.s32.totalorder %s286, %s288
      %p295 = scmp.eq.s32.totalorder %s47, 1
      %p296 = por %p294, %p295
      %p297 = scmp.ne.s32.totalorder %s288, %s289
      %p298 = scmp.eq.s32.totalorder %s47, 0
      %p299 = por %p297, %p298
      %p300 = scmp.ne.s32.totalorder %s288, %s289
      %p301 = scmp.eq.s32.totalorder %s48, 1
      %p302 = por %p300, %p301
      %p304 = scmp.ne.s32.totalorder %s289, %s303
      %p305 = scmp.eq.s32.totalorder %s48, 0
      %p306 = por %p304, %p305
      %s308 = sadd.s32 %s307, 1
      %p311 = scmp.eq.s32.totalorder %s42, 1
      %p312 = scmp.ne.s32.totalorder %s307, %s309
      %p313 = scmp.eq.s32.totalorder %s42, 0
      %p314 = por %p312, %p313
      %p315 = scmp.ne.s32.totalorder %s307, %s309
      %p316 = scmp.eq.s32.totalorder %s47, 1
      %p317 = por %p315, %p316
      %p318 = scmp.ne.s32.totalorder %s309, %s310
      %p319 = scmp.eq.s32.totalorder %s47, 0
      %p320 = por %p318, %p319
      %p321 = scmp.ne.s32.totalorder %s309, %s310
      %p322 = scmp.eq.s32.totalorder %s48, 1
      %p323 = por %p321, %p322
      %p325 = scmp.ne.s32.totalorder %s310, %s324
      %p326 = scmp.eq.s32.totalorder %s48, 0
      %p327 = por %p325, %p326
      %s329 = sadd.s32 %s328, 1
      %p332 = scmp.eq.s32.totalorder %s42, 1
      %p333 = scmp.ne.s32.totalorder %s328, %s330
      %p334 = scmp.eq.s32.totalorder %s42, 0
      %p335 = por %p333, %p334
      %p336 = scmp.ne.s32.totalorder %s328, %s330
      %p337 = scmp.eq.s32.totalorder %s47, 1
      %p338 = por %p336, %p337
      %p339 = scmp.ne.s32.totalorder %s330, %s331
      %p340 = scmp.eq.s32.totalorder %s47, 0
      %p341 = por %p339, %p340
      %p342 = scmp.ne.s32.totalorder %s330, %s331
      %p343 = scmp.eq.s32.totalorder %s48, 1
      %p344 = por %p342, %p343
      %p346 = scmp.ne.s32.totalorder %s331, %s345
      %p347 = scmp.eq.s32.totalorder %s48, 0
      %p348 = por %p346, %p347
      %s350 = sadd.s32 %s349, 1
      %p353 = scmp.eq.s32.totalorder %s42, 1
      %p354 = scmp.ne.s32.totalorder %s349, %s351
      %p355 = scmp.eq.s32.totalorder %s42, 0
      %p356 = por %p354, %p355
      %p357 = scmp.ne.s32.totalorder %s349, %s351
      %p358 = scmp.eq.s32.totalorder %s47, 1
      %p359 = por %p357, %p358
      %p360 = scmp.ne.s32.totalorder %s351, %s352
      %p361 = scmp.eq.s32.totalorder %s47, 0
      %p362 = por %p360, %p361
      %p363 = scmp.ne.s32.totalorder %s351, %s352
      %p364 = scmp.eq.s32.totalorder %s48, 1
      %p365 = por %p363, %p364
      %p367 = scmp.ne.s32.totalorder %s352, %s366
      %p368 = scmp.eq.s32.totalorder %s48, 0
      %p369 = por %p367, %p368
      %s371 = sadd.s32 %s370, 1
      %p374 = scmp.eq.s32.totalorder %s42, 1
      %p375 = scmp.ne.s32.totalorder %s370, %s372
      %p376 = scmp.eq.s32.totalorder %s42, 0
      %p377 = por %p375, %p376
      %p378 = scmp.ne.s32.totalorder %s370, %s372
      %p379 = scmp.eq.s32.totalorder %s47, 1
      %p380 = por %p378, %p379
      %p381 = scmp.ne.s32.totalorder %s372, %s373
      %p382 = scmp.eq.s32.totalorder %s47, 0
      %p383 = por %p381, %p382
      %p384 = scmp.ne.s32.totalorder %s372, %s373
      %p385 = scmp.eq.s32.totalorder %s48, 1
      %p386 = por %p384, %p385
      %p388 = scmp.ne.s32.totalorder %s373, %s387
      %p389 = scmp.eq.s32.totalorder %s48, 0
      %p390 = por %p388, %p389
      %s392 = sadd.s32 %s391, 1
      %p395 = scmp.eq.s32.totalorder %s42, 1
      %p396 = scmp.ne.s32.totalorder %s391, %s393
      %p397 = scmp.eq.s32.totalorder %s42, 0
      %p398 = por %p396, %p397
      %p399 = scmp.ne.s32.totalorder %s391, %s393
      %p400 = scmp.eq.s32.totalorder %s47, 1
      %p401 = por %p399, %p400
      %p402 = scmp.ne.s32.totalorder %s393, %s394
      %p403 = scmp.eq.s32.totalorder %s47, 0
      %p404 = por %p402, %p403
      %p405 = scmp.ne.s32.totalorder %s393, %s394
      %p406 = scmp.eq.s32.totalorder %s48, 1
      %p407 = por %p405, %p406
      %p409 = scmp.ne.s32.totalorder %s394, %s408
      %p410 = scmp.eq.s32.totalorder %s48, 0
      %p411 = por %p409, %p410
      %s413 = sadd.s32 %s412, 1
      %p416 = scmp.eq.s32.totalorder %s42, 1
      %p417 = scmp.ne.s32.totalorder %s412, %s414
      %p418 = scmp.eq.s32.totalorder %s42, 0
      %p419 = por %p417, %p418
      %p420 = scmp.ne.s32.totalorder %s412, %s414
      %p421 = scmp.eq.s32.totalorder %s47, 1
      %p422 = por %p420, %p421
      %p423 = scmp.ne.s32.totalorder %s414, %s415
      %p424 = scmp.eq.s32.totalorder %s47, 0
      %p425 = por %p423, %p424
      %p426 = scmp.ne.s32.totalorder %s414, %s415
      %p427 = scmp.eq.s32.totalorder %s48, 1
      %p428 = por %p426, %p427
      %p430 = scmp.ne.s32.totalorder %s415, %s429
      %p431 = scmp.eq.s32.totalorder %s48, 0
      %p432 = por %p430, %p431
      %s434 = sadd.s32 %s433, 1
      %p437 = scmp.eq.s32.totalorder %s42, 1
      %p438 = scmp.ne.s32.totalorder %s433, %s435
      %p439 = scmp.eq.s32.totalorder %s42, 0
      %p440 = por %p438, %p439
      %p441 = scmp.ne.s32.totalorder %s433, %s435
      %p442 = scmp.eq.s32.totalorder %s47, 1
      %p443 = por %p441, %p442
      %p444 = scmp.ne.s32.totalorder %s435, %s436
      %p445 = scmp.eq.s32.totalorder %s47, 0
      %p446 = por %p444, %p445
      %p447 = scmp.ne.s32.totalorder %s435, %s436
      %p448 = scmp.eq.s32.totalorder %s48, 1
      %p449 = por %p447, %p448
      %p451 = scmp.ne.s32.totalorder %s436, %s450
      %p452 = scmp.eq.s32.totalorder %s48, 0
      %p453 = por %p451, %p452
      %s455 = sadd.s32 %s454, 1
      %p458 = scmp.eq.s32.totalorder %s42, 1
      %p459 = scmp.ne.s32.totalorder %s454, %s456
      %p460 = scmp.eq.s32.totalorder %s42, 0
      %p461 = por %p459, %p460
      %p462 = scmp.ne.s32.totalorder %s454, %s456
      %p463 = scmp.eq.s32.totalorder %s47, 1
      %p464 = por %p462, %p463
      %p465 = scmp.ne.s32.totalorder %s456, %s457
      %p466 = scmp.eq.s32.totalorder %s47, 0
      %p467 = por %p465, %p466
      %p468 = scmp.ne.s32.totalorder %s456, %s457
      %p469 = scmp.eq.s32.totalorder %s48, 1
      %p470 = por %p468, %p469
      %p472 = scmp.ne.s32.totalorder %s457, %s471
      %p473 = scmp.eq.s32.totalorder %s48, 0
      %p474 = por %p472, %p473
      %s476 = sadd.s32 %s475, 1
      %p479 = scmp.eq.s32.totalorder %s42, 1
      %p480 = scmp.ne.s32.totalorder %s475, %s477
      %p481 = scmp.eq.s32.totalorder %s42, 0
      %p482 = por %p480, %p481
      %p483 = scmp.ne.s32.totalorder %s475, %s477
      %p484 = scmp.eq.s32.totalorder %s47, 1
      %p485 = por %p483, %p484
      %p486 = scmp.ne.s32.totalorder %s477, %s478
      %p487 = scmp.eq.s32.totalorder %s47, 0
      %p488 = por %p486, %p487
      %p489 = scmp.ne.s32.totalorder %s477, %s478
      %p490 = scmp.eq.s32.totalorder %s48, 1
      %p491 = por %p489, %p490
      %p493 = scmp.ne.s32.totalorder %s478, %s492
      %p494 = scmp.eq.s32.totalorder %s48, 0
      %p495 = por %p493, %p494
      %s497 = sadd.s32 %s496, 1
      %p500 = scmp.eq.s32.totalorder %s42, 1
      %p501 = scmp.ne.s32.totalorder %s496, %s498
      %p502 = scmp.eq.s32.totalorder %s42, 0
      %p503 = por %p501, %p502
      %p504 = scmp.ne.s32.totalorder %s496, %s498
      %p505 = scmp.eq.s32.totalorder %s47, 1
      %p506 = por %p504, %p505
      %p507 = scmp.ne.s32.totalorder %s498, %s499
      %p508 = scmp.eq.s32.totalorder %s47, 0
      %p509 = por %p507, %p508
      %p510 = scmp.ne.s32.totalorder %s498, %s499
      %p511 = scmp.eq.s32.totalorder %s48, 1
      %p512 = por %p510, %p511
      %p514 = scmp.ne.s32.totalorder %s499, %s513
      %p515 = scmp.eq.s32.totalorder %s48, 0
      %p516 = por %p514, %p515
      %s517 = ssub.s32 %s42, %s49
      %p518 = scmp.eq.s32.totalorder %s517, 0
      %s520 = sadd.s32 %s519, 1
      %s521 = scalar_select %p518, %s519, %s520
      %p524 = pneg %p518
      %p525 = scmp.eq.s32.totalorder %s42, 1
      %p526 = por %p524, %p525
      %p527 = scmp.ne.s32.totalorder %s519, %s522
      %p528 = scmp.eq.s32.totalorder %s42, 0
      %p529 = por %p527, %p528
      %p530 = scmp.ne.s32.totalorder %s519, %s522
      %p531 = scmp.eq.s32.totalorder %s47, 1
      %p532 = por %p530, %p531
      %p533 = scmp.ne.s32.totalorder %s522, %s523
      %p534 = scmp.eq.s32.totalorder %s47, 0
      %p535 = por %p533, %p534
      %p536 = scmp.ne.s32.totalorder %s522, %s523
      %p537 = scmp.eq.s32.totalorder %s48, 1
      %p538 = por %p536, %p537
      %p540 = scmp.ne.s32.totalorder %s523, %s539
      %p541 = scmp.eq.s32.totalorder %s48, 0
      %p542 = por %p540, %p541
      %p543 = scmp.le.s32.totalorder 1, %s42
      %p544 = scmp.lt.s32.totalorder %s42, 3
      %p545 = pnand %p543, %p544
      %p546 = pneg %p545
      // Predicated region
      $region9: #{tpu_custom_call.1} parent=5 // pred_check
        _
      $region10: #{tpu_custom_call.1} parent=5 // pred_check_branch
        %548 = sbr.rel (%p545) target = $region12
      $region11: #{tpu_custom_call.1} parent=5 // pred_region
        %s549 = ssub.s32 %s42, 1
        // Predicated region
        $region13: #{tpu_custom_call.1} parent=11 // pred_check
          %p550 = pneg %p89
        $region14: #{tpu_custom_call.1} parent=11 // pred_check_branch
          %552 = sbr.rel (%p550) target = $region16
        $region15: #{tpu_custom_call.1} parent=11 // pred_region
          %s554 = ssub.s32 768, 768
          %555 = vsyncadd [#allocation7], %s554
          %s556 = sshll.u32 [#allocation6], 4
          %s557 = int_to_ptr.vmem [resolvable:$true] %s556
          %562 = dma.hbm_to_vmem [thread:$0]  %s1, 768, %s557, [#allocation7], 64, 64, 4
        $region16: #{tpu_custom_call.1} parent=11 // pred_fallthru
          _
        // Predicated region
        $region17: #{tpu_custom_call.1} parent=11 // pred_check
          %p563 = pneg %p110
        $region18: #{tpu_custom_call.1} parent=11 // pred_check_branch
          %565 = sbr.rel (%p563) target = $region20
        $region19: #{tpu_custom_call.1} parent=11 // pred_region
          _
        $region20: #{tpu_custom_call.1} parent=11 // pred_fallthru
          _
        // Predicated region
        $region21: #{tpu_custom_call.1} parent=11 // pred_check
          %p566 = pneg %p131
        $region22: #{tpu_custom_call.1} parent=11 // pred_check_branch
          %568 = sbr.rel (%p566) target = $region24
        $region23: #{tpu_custom_call.1} parent=11 // pred_region
          %s570 = ssub.s32 768, 768
          %571 = vsyncadd [#allocation7], %s570
          %s572 = sshll.u32 [#allocation8], 4
          %s573 = int_to_ptr.vmem [resolvable:$true] %s572
          %578 = dma.hbm_to_vmem [thread:$0]  %s3, 768, %s573, [#allocation7], 64, 64, 4
        $region24: #{tpu_custom_call.1} parent=11 // pred_fallthru
          _
        // Predicated region
        $region25: #{tpu_custom_call.1} parent=11 // pred_check
          %p579 = pneg %p152
        $region26: #{tpu_custom_call.1} parent=11 // pred_check_branch
          %581 = sbr.rel (%p579) target = $region28
        $region27: #{tpu_custom_call.1} parent=11 // pred_region
          _
        $region28: #{tpu_custom_call.1} parent=11 // pred_fallthru
          _
        // Predicated region
        $region29: #{tpu_custom_call.1} parent=11 // pred_check
          %p582 = pneg %p173
        $region30: #{tpu_custom_call.1} parent=11 // pred_check_branch
          %584 = sbr.rel (%p582) target = $region32
        $region31: #{tpu_custom_call.1} parent=11 // pred_region
          %s586 = ssub.s32 512, 512
          %587 = vsyncadd [#allocation10], %s586
          %s588 = sshll.u32 [#allocation9], 4
          %s589 = int_to_ptr.vmem [resolvable:$true] %s588
          %594 = dma.hbm_to_vmem [thread:$0]  %s5, 512, %s589, [#allocation10], 64, 64, 4
        $region32: #{tpu_custom_call.1} parent=11 // pred_fallthru
          _
        // Predicated region
        $region33: #{tpu_custom_call.1} parent=11 // pred_check
          %p595 = pneg %p194
        $region34: #{tpu_custom_call.1} parent=11 // pred_check_branch
          %597 = sbr.rel (%p595) target = $region36
        $region35: #{tpu_custom_call.1} parent=11 // pred_region
          _
        $region36: #{tpu_custom_call.1} parent=11 // pred_fallthru
          _
        // Predicated region
        $region37: #{tpu_custom_call.1} parent=11 // pred_check
          %p598 = pneg %p215
        $region38: #{tpu_custom_call.1} parent=11 // pred_check_branch
          %600 = sbr.rel (%p598) target = $region40
        $region39: #{tpu_custom_call.1} parent=11 // pred_region
          _
        $region40: #{tpu_custom_call.1} parent=11 // pred_fallthru
          _
        // Predicated region
        $region41: #{tpu_custom_call.1} parent=11 // pred_check
          %p601 = pneg %p236
        $region42: #{tpu_custom_call.1} parent=11 // pred_check_branch
          %603 = sbr.rel (%p601) target = $region44
        $region43: #{tpu_custom_call.1} parent=11 // pred_region
          %s605 = ssub.s32 512, 512
          %606 = vsyncadd [#allocation10], %s605
          %s607 = sshll.u32 [#allocation11], 4
          %s608 = int_to_ptr.vmem [resolvable:$true] %s607
          %613 = dma.hbm_to_vmem [thread:$0]  %s8, 512, %s608, [#allocation10], 64, 64, 4
        $region44: #{tpu_custom_call.1} parent=11 // pred_fallthru
          _
        // Predicated region
        $region45: #{tpu_custom_call.1} parent=11 // pred_check
          %p614 = pneg %p257
        $region46: #{tpu_custom_call.1} parent=11 // pred_check_branch
          %616 = sbr.rel (%p614) target = $region48
        $region47: #{tpu_custom_call.1} parent=11 // pred_region
          %s618 = ssub.s32 512, 512
          %619 = vsyncadd [#allocation13], %s618
          %s620 = sshll.u32 [#allocation12], 4
          %s621 = int_to_ptr.vmem [resolvable:$true] %s620
          %626 = dma.hbm_to_vmem [thread:$0]  %s9, 512, %s621, [#allocation13], 64, 64, 4
        $region48: #{tpu_custom_call.1} parent=11 // pred_fallthru
          _
        // Predicated region
        $region49: #{tpu_custom_call.1} parent=11 // pred_check
          %p627 = pneg %p278
        $region50: #{tpu_custom_call.1} parent=11 // pred_check_branch
          %629 = sbr.rel (%p627) target = $region52
        $region51: #{tpu_custom_call.1} parent=11 // pred_region
          %s631 = ssub.s32 1024, 1024
          %632 = vsyncadd [#allocation13], %s631
          %s633 = sshll.u32 [#allocation14], 4
          %s634 = int_to_ptr.vmem [resolvable:$true] %s633
          %639 = dma.hbm_to_vmem [thread:$0]  %s10, 1024, %s634, [#allocation13], 64, 64, 4
        $region52: #{tpu_custom_call.1} parent=11 // pred_fallthru
          _
        // Predicated region
        $region53: #{tpu_custom_call.1} parent=11 // pred_check
          %p640 = pneg %p299
        $region54: #{tpu_custom_call.1} parent=11 // pred_check_branch
          %642 = sbr.rel (%p640) target = $region56
        $region55: #{tpu_custom_call.1} parent=11 // pred_region
          _
        $region56: #{tpu_custom_call.1} parent=11 // pred_fallthru
          _
        // Predicated region
        $region57: #{tpu_custom_call.1} parent=11 // pred_check
          %p643 = pneg %p320
        $region58: #{tpu_custom_call.1} parent=11 // pred_check_branch
          %645 = sbr.rel (%p643) target = $region60
        $region59: #{tpu_custom_call.1} parent=11 // pred_region
          %s647 = ssub.s32 1024, 1024
          %648 = vsyncadd [#allocation16], %s647
          %s649 = sshll.u32 [#allocation15], 4
          %s650 = int_to_ptr.vmem [resolvable:$true] %s649
          %655 = dma.hbm_to_vmem [thread:$0]  %s12, 1024, %s650, [#allocation16], 64, 64, 4
        $region60: #{tpu_custom_call.1} parent=11 // pred_fallthru
          _
        // Predicated region
        $region61: #{tpu_custom_call.1} parent=11 // pred_check
          %p656 = pneg %p341
        $region62: #{tpu_custom_call.1} parent=11 // pred_check_branch
          %658 = sbr.rel (%p656) target = $region64
        $region63: #{tpu_custom_call.1} parent=11 // pred_region
          %s660 = ssub.s32 1024, 1024
          %661 = vsyncadd [#allocation16], %s660
          %s662 = sshll.u32 [#allocation17], 4
          %s663 = int_to_ptr.vmem [resolvable:$true] %s662
          %668 = dma.hbm_to_vmem [thread:$0]  %s13, 1024, %s663, [#allocation16], 64, 64, 4
        $region64: #{tpu_custom_call.1} parent=11 // pred_fallthru
          _
        // Predicated region
        $region65: #{tpu_custom_call.1} parent=11 // pred_check
          %p669 = pneg %p362
        $region66: #{tpu_custom_call.1} parent=11 // pred_check_branch
          %671 = sbr.rel (%p669) target = $region68
        $region67: #{tpu_custom_call.1} parent=11 // pred_region
          %s673 = ssub.s32 512, 512
          %674 = vsyncadd [#allocation19], %s673
          %s675 = sshll.u32 [#allocation18], 4
          %s676 = int_to_ptr.vmem [resolvable:$true] %s675
          %681 = dma.hbm_to_vmem [thread:$0]  %s14, 512, %s676, [#allocation19], 64, 64, 4
        $region68: #{tpu_custom_call.1} parent=11 // pred_fallthru
          _
        // Predicated region
        $region69: #{tpu_custom_call.1} parent=11 // pred_check
          %p682 = pneg %p383
        $region70: #{tpu_custom_call.1} parent=11 // pred_check_branch
          %684 = sbr.rel (%p682) target = $region72
        $region71: #{tpu_custom_call.1} parent=11 // pred_region
          _
        $region72: #{tpu_custom_call.1} parent=11 // pred_fallthru
          _
        // Predicated region
        $region73: #{tpu_custom_call.1} parent=11 // pred_check
          %p685 = pneg %p404
        $region74: #{tpu_custom_call.1} parent=11 // pred_check_branch
          %687 = sbr.rel (%p685) target = $region76
        $region75: #{tpu_custom_call.1} parent=11 // pred_region
          _
        $region76: #{tpu_custom_call.1} parent=11 // pred_fallthru
          _
        // Predicated region
        $region77: #{tpu_custom_call.1} parent=11 // pred_check
          %p688 = pneg %p425
        $region78: #{tpu_custom_call.1} parent=11 // pred_check_branch
          %690 = sbr.rel (%p688) target = $region80
        $region79: #{tpu_custom_call.1} parent=11 // pred_region
          %s692 = ssub.s32 4096, 4096
          %693 = vsyncadd [#allocation19], %s692
          %s694 = sshll.u32 [#allocation20], 4
          %s695 = int_to_ptr.vmem [resolvable:$true] %s694
          %700 = dma.hbm_to_vmem [thread:$0]  %s17, 4096, %s695, [#allocation19], 128, 128, 8
        $region80: #{tpu_custom_call.1} parent=11 // pred_fallthru
          _
        // Predicated region
        $region81: #{tpu_custom_call.1} parent=11 // pred_check
          %p701 = pneg %p446
        $region82: #{tpu_custom_call.1} parent=11 // pred_check_branch
          %703 = sbr.rel (%p701) target = $region84
        $region83: #{tpu_custom_call.1} parent=11 // pred_region
          _
        $region84: #{tpu_custom_call.1} parent=11 // pred_fallthru
          _
        // Predicated region
        $region85: #{tpu_custom_call.1} parent=11 // pred_check
          %p704 = pneg %p467
        $region86: #{tpu_custom_call.1} parent=11 // pred_check_branch
          %706 = sbr.rel (%p704) target = $region88
        $region87: #{tpu_custom_call.1} parent=11 // pred_region
          _
        $region88: #{tpu_custom_call.1} parent=11 // pred_fallthru
          _
        // Predicated region
        $region89: #{tpu_custom_call.1} parent=11 // pred_check
          %p707 = pneg %p488
        $region90: #{tpu_custom_call.1} parent=11 // pred_check_branch
          %709 = sbr.rel (%p707) target = $region92
        $region91: #{tpu_custom_call.1} parent=11 // pred_region
          %s711 = ssub.s32 8192, 8192
          %712 = vsyncadd [#allocation22], %s711
          %s713 = sshll.u32 [#allocation21], 4
          %s714 = int_to_ptr.vmem [resolvable:$true] %s713
          %719 = dma.hbm_to_vmem [thread:$0]  %s20, 8192, %s714, [#allocation22], 128, 128, 8
        $region92: #{tpu_custom_call.1} parent=11 // pred_fallthru
          _
        // Predicated region
        $region93: #{tpu_custom_call.1} parent=11 // pred_check
          %p720 = pneg %p509
        $region94: #{tpu_custom_call.1} parent=11 // pred_check_branch
          %722 = sbr.rel (%p720) target = $region96
        $region95: #{tpu_custom_call.1} parent=11 // pred_region
          %s724 = ssub.s32 16384, 16384
          %725 = vsyncadd [#allocation22], %s724
          %s726 = sshll.u32 [#allocation23], 4
          %s727 = int_to_ptr.vmem [resolvable:$true] %s726
          %732 = dma.hbm_to_vmem [thread:$0]  %s21, 16384, %s727, [#allocation22], 256, 256, 16
        $region96: #{tpu_custom_call.1} parent=11 // pred_fallthru
          _
      $region12: #{tpu_custom_call.1} parent=5 // pred_fallthru
        _
      %p733 = scmp.lt.s32.totalorder %s42, 2
      // Predicated region
      $region97: #{tpu_custom_call.1} parent=5 // pred_check
        %p734 = pneg %p733
      $region98: #{tpu_custom_call.1} parent=5 // pred_check_branch
        %736 = sbr.rel (%p734) target = $region100
      $region99: #{tpu_custom_call.1} parent=5 // pred_region
        // Predicated region
        $region101: #{tpu_custom_call.1} parent=99 // pred_check
          %p737 = pneg %p62
        $region102: #{tpu_custom_call.1} parent=99 // pred_check_branch
          %739 = sbr.rel (%p737) target = $region104
        $region103: #{tpu_custom_call.1} parent=99 // pred_region
          %s740 = sand.u32 %s52, 1
          %s741 = scalar_lea.sflag [#allocation4], %s740
          %s742 = sand.u32 %s52, 1
          %s743 = smul.addr %s742, 16
          %s744 = scalar_lea.vmem [#allocation3], %s743
          %s746 = ssub.s32 256, 256
          %747 = vsyncadd %s741, %s746
          %s748 = smul.addr %s42, 4
          %s749 = smul.addr %s748, 64
          %s750 = scalar_lea.hbm %s0, %s749
          %s751 = sshll.u32 %s744, 4
          %s752 = int_to_ptr.vmem [resolvable:$true] %s751
          %757 = dma.hbm_to_vmem [thread:$0]  %s750, 256, %s752, %s741, 64, 64, 4
        $region104: #{tpu_custom_call.1} parent=99 // pred_fallthru
          _
      $region100: #{tpu_custom_call.1} parent=5 // pred_fallthru
        _
      %p758 = scmp.le.s32.totalorder 1, %s42
      %p759 = scmp.lt.s32.totalorder %s42, 3
      %p760 = pnand %p758, %p759
      %p761 = pneg %p760
      // Predicated region
      $region105: #{tpu_custom_call.1} parent=5 // pred_check
        _
      $region106: #{tpu_custom_call.1} parent=5 // pred_check_branch
        %763 = sbr.rel (%p760) target = $region108
      $region107: #{tpu_custom_call.1} parent=5 // pred_region
        %s764 = ssub.s32 %s42, 1
        %s765 = sand.u32 %s55, 1
        %s766 = scalar_lea.sflag [#allocation4], %s765
        %s767 = sand.u32 %s55, 1
        %s768 = smul.addr %s767, 16
        %s769 = scalar_lea.vmem [#allocation3], %s768
        // Predicated region
        $region109: #{tpu_custom_call.1} parent=107 // pred_check
          %p770 = pneg %p68
        $region110: #{tpu_custom_call.1} parent=107 // pred_check_branch
          %772 = sbr.rel (%p770) target = $region112
        $region111: #{tpu_custom_call.1} parent=107 // pred_region
          %773 = dma.done %s766, 256
        $region112: #{tpu_custom_call.1} parent=107 // pred_fallthru
          _
        // Predicated region
        $region113: #{tpu_custom_call.1} parent=107 // pred_check
          %p774 = pneg %p89
        $region114: #{tpu_custom_call.1} parent=107 // pred_check_branch
          %776 = sbr.rel (%p774) target = $region116
        $region115: #{tpu_custom_call.1} parent=107 // pred_region
          %777 = dma.done [#allocation7], 768
        $region116: #{tpu_custom_call.1} parent=107 // pred_fallthru
          _
        // Predicated region
        $region117: #{tpu_custom_call.1} parent=107 // pred_check
          %p778 = pneg %p131
        $region118: #{tpu_custom_call.1} parent=107 // pred_check_branch
          %780 = sbr.rel (%p778) target = $region120
        $region119: #{tpu_custom_call.1} parent=107 // pred_region
          %781 = dma.done [#allocation7], 768
        $region120: #{tpu_custom_call.1} parent=107 // pred_fallthru
          _
        // Predicated region
        $region121: #{tpu_custom_call.1} parent=107 // pred_check
          %p782 = pneg %p173
        $region122: #{tpu_custom_call.1} parent=107 // pred_check_branch
          %784 = sbr.rel (%p782) target = $region124
        $region123: #{tpu_custom_call.1} parent=107 // pred_region
          %785 = dma.done [#allocation10], 512
        $region124: #{tpu_custom_call.1} parent=107 // pred_fallthru
          _
        // Predicated region
        $region125: #{tpu_custom_call.1} parent=107 // pred_check
          %p786 = pneg %p236
        $region126: #{tpu_custom_call.1} parent=107 // pred_check_branch
          %788 = sbr.rel (%p786) target = $region128
        $region127: #{tpu_custom_call.1} parent=107 // pred_region
          %789 = dma.done [#allocation10], 512
        $region128: #{tpu_custom_call.1} parent=107 // pred_fallthru
          _
        // Predicated region
        $region129: #{tpu_custom_call.1} parent=107 // pred_check
          %p790 = pneg %p257
        $region130: #{tpu_custom_call.1} parent=107 // pred_check_branch
          %792 = sbr.rel (%p790) target = $region132
        $region131: #{tpu_custom_call.1} parent=107 // pred_region
          %793 = dma.done [#allocation13], 512
        $region132: #{tpu_custom_call.1} parent=107 // pred_fallthru
          _
        // Predicated region
        $region133: #{tpu_custom_call.1} parent=107 // pred_check
          %p794 = pneg %p278
        $region134: #{tpu_custom_call.1} parent=107 // pred_check_branch
          %796 = sbr.rel (%p794) target = $region136
        $region135: #{tpu_custom_call.1} parent=107 // pred_region
          %797 = dma.done [#allocation13], 1024
        $region136: #{tpu_custom_call.1} parent=107 // pred_fallthru
          _
        // Predicated region
        $region137: #{tpu_custom_call.1} parent=107 // pred_check
          %p798 = pneg %p320
        $region138: #{tpu_custom_call.1} parent=107 // pred_check_branch
          %800 = sbr.rel (%p798) target = $region140
        $region139: #{tpu_custom_call.1} parent=107 // pred_region
          %801 = dma.done [#allocation16], 1024
        $region140: #{tpu_custom_call.1} parent=107 // pred_fallthru
          _
        // Predicated region
        $region141: #{tpu_custom_call.1} parent=107 // pred_check
          %p802 = pneg %p341
        $region142: #{tpu_custom_call.1} parent=107 // pred_check_branch
          %804 = sbr.rel (%p802) target = $region144
        $region143: #{tpu_custom_call.1} parent=107 // pred_region
          %805 = dma.done [#allocation16], 1024
        $region144: #{tpu_custom_call.1} parent=107 // pred_fallthru
          _
        // Predicated region
        $region145: #{tpu_custom_call.1} parent=107 // pred_check
          %p806 = pneg %p362
        $region146: #{tpu_custom_call.1} parent=107 // pred_check_branch
          %808 = sbr.rel (%p806) target = $region148
        $region147: #{tpu_custom_call.1} parent=107 // pred_region
          %809 = dma.done [#allocation19], 512
        $region148: #{tpu_custom_call.1} parent=107 // pred_fallthru
          _
        // Predicated region
        $region149: #{tpu_custom_call.1} parent=107 // pred_check
          %p810 = pneg %p425
        $region150: #{tpu_custom_call.1} parent=107 // pred_check_branch
          %812 = sbr.rel (%p810) target = $region152
        $region151: #{tpu_custom_call.1} parent=107 // pred_region
          %813 = dma.done [#allocation19], 4096
        $region152: #{tpu_custom_call.1} parent=107 // pred_fallthru
          _
        // Predicated region
        $region153: #{tpu_custom_call.1} parent=107 // pred_check
          %p814 = pneg %p488
        $region154: #{tpu_custom_call.1} parent=107 // pred_check_branch
          %816 = sbr.rel (%p814) target = $region156
        $region155: #{tpu_custom_call.1} parent=107 // pred_region
          %817 = dma.done [#allocation22], 8192
        $region156: #{tpu_custom_call.1} parent=107 // pred_fallthru
          _
        // Predicated region
        $region157: #{tpu_custom_call.1} parent=107 // pred_check
          %p818 = pneg %p509
        $region158: #{tpu_custom_call.1} parent=107 // pred_check_branch
          %820 = sbr.rel (%p818) target = $region160
        $region159: #{tpu_custom_call.1} parent=107 // pred_region
          %821 = dma.done [#allocation22], 16384
        $region160: #{tpu_custom_call.1} parent=107 // pred_fallthru
          _
        %s822 = sand.u32 %s55, 1
        %s823 = scalar_lea.sflag [#allocation4], %s822
        %s824 = sand.u32 %s55, 1
        %s825 = smul.addr %s824, 16
        %s826 = scalar_lea.vmem [#allocation3], %s825
        %p827 = pneg %p68
        %p828 = pneg %p65
        %p829 = pneg %p89
        %p830 = pneg %p86
        %p831 = pneg %p110
        %p832 = pneg %p107
        %p833 = pneg %p131
        %p834 = pneg %p128
        %p835 = pneg %p152
        %p836 = pneg %p149
        %p837 = pneg %p173
        %p838 = pneg %p170
        %p839 = pneg %p194
        %p840 = pneg %p191
        %p841 = pneg %p215
        %p842 = pneg %p212
        %p843 = pneg %p236
        %p844 = pneg %p233
        %p845 = pneg %p257
        %p846 = pneg %p254
        %p847 = pneg %p278
        %p848 = pneg %p275
        %p849 = pneg %p299
        %p850 = pneg %p296
        %p851 = pneg %p320
        %p852 = pneg %p317
        %p853 = pneg %p341
        %p854 = pneg %p338
        %p855 = pneg %p362
        %p856 = pneg %p359
        %p857 = pneg %p383
        %p858 = pneg %p380
        %p859 = pneg %p404
        %p860 = pneg %p401
        %p861 = pneg %p425
        %p862 = pneg %p422
        %p863 = pneg %p446
        %p864 = pneg %p443
        %p865 = pneg %p467
        %p866 = pneg %p464
        %p867 = pneg %p488
        %p868 = pneg %p485
        %p869 = pneg %p509
        %p870 = pneg %p506
        %p871 = pneg %p535
        %p872 = pneg %p532
        %s873 = sand.u32 %s522, 1
        %s874 = scalar_lea.sflag [#allocation5], %s873
        %s875 = sand.u32 %s522, 1
        %s876 = smul.addr %s875, 4
        %s877 = scalar_lea.vmem [#allocation24], %s876
        %v879 = vld [vmem:[%s769] sm:$0xf]
        %v880 = vld [vmem:[%s769 + $0x4] sm:$0xf]
        %v881 = vld [vmem:[%s769 + $0x8] sm:$0xf]
        %v882 = vld [vmem:[%s769 + $0xc] sm:$0xf]
        %v883 = vld [vmem:[#allocation11] sm:$0xf]
        %v884 = vld [vmem:[#allocation11 + $0x4] sm:$0xf]
        %v885 = vld [vmem:[#allocation11 + $0x8] sm:$0xf]
        %v886 = vld [vmem:[#allocation11 + $0xc] sm:$0xf]
        %v887 = vld [vmem:[#allocation11 + $0x10] sm:$0xf]
        %v888 = vld [vmem:[#allocation11 + $0x14] sm:$0xf]
        %v889 = vld [vmem:[#allocation11 + $0x18] sm:$0xf]
        %v890 = vld [vmem:[#allocation11 + $0x1c] sm:$0xf]
        %v891 = vld [vmem:[#allocation9] sm:$0xf]
        %v892 = vld [vmem:[#allocation9 + $0x4] sm:$0xf]
        %v893 = vld [vmem:[#allocation9 + $0x8] sm:$0xf]
        %v894 = vld [vmem:[#allocation9 + $0xc] sm:$0xf]
        %v895 = vld [vmem:[#allocation9 + $0x10] sm:$0xf]
        %v896 = vld [vmem:[#allocation9 + $0x14] sm:$0xf]
        %v897 = vld [vmem:[#allocation9 + $0x18] sm:$0xf]
        %v898 = vld [vmem:[#allocation9 + $0x1c] sm:$0xf]
        %v899 = vld [vmem:[#allocation6] sm:$0xf]
        %v900 = vld [vmem:[#allocation6 + $0x4] sm:$0xf]
        %v901 = vld [vmem:[#allocation6 + $0x8] sm:$0xf]
        %v902 = vld [vmem:[#allocation6 + $0xc] sm:$0xf]
        %v903 = vld [vmem:[#allocation6 + $0x10] sm:$0xf]
        %v904 = vld [vmem:[#allocation6 + $0x14] sm:$0xf]
        %v905 = vld [vmem:[#allocation6 + $0x18] sm:$0xf]
        %v906 = vld [vmem:[#allocation6 + $0x1c] sm:$0xf]
        %v907 = vld [vmem:[#allocation6 + $0x20] sm:$0xf]
        %v908 = vld [vmem:[#allocation6 + $0x24] sm:$0xf]
        %v909 = vld [vmem:[#allocation6 + $0x28] sm:$0xf]
        %v910 = vld [vmem:[#allocation6 + $0x2c] sm:$0xf]
        %v915 = vunpack.c.l.b16 %v879
        %v916 = vunpack.c.l.b16 %v880
        %v917 = vunpack.c.l.b16 %v881
        %v918 = vunpack.c.l.b16 %v882
        %v919 = vpack.c.b16 %v916, %v915
        %v920 = vpack.c.b16 %v918, %v917
        %v925 = vunpack.c.l.b16 %v883
        %v926 = vunpack.c.l.b16 %v884
        %v927 = vunpack.c.l.b16 %v885
        %v928 = vunpack.c.l.b16 %v886
        %v929 = vpack.c.b16 %v926, %v925
        %v930 = vpack.c.b16 %v928, %v927
        %vm933 = vcmask 261120
        %v935 = vsel %vm933, %v919, 0
        %v938 = vsel %vm933, %v920, 0
        %940 = vmatprep.subr.bf16.mxu0 0
        %941 = vmatpush1.bf16.msra.mxu0 0
        %942 = vmatprep.subr.bf16.mxu0 0
        %943 = vmatpush1.bf16.msra.mxu0 0
        %944 = vmatprep.subr.bf16.mxu0 0
        %945 = vmatpush1.bf16.msra.mxu0 0
        %946 = vmatprep.subr.bf16.mxu0 0
        %947 = vmatpush1.bf16.msra.mxu0 0
        %948 = vmatprep.subr.bf16.mxu0 0
        %949 = vmatpush1.bf16.msra.mxu0 0
        %950 = vmatprep.subr.bf16.mxu0 0
        %951 = vmatpush1.bf16.msra.mxu0 0
        %952 = vmatprep.subr.bf16.mxu0 0
        %953 = vmatpush1.bf16.msra.mxu0 %v930
        %954 = vmatprep.subr.bf16.mxu0 0
        %955 = vmatpush1.bf16.msra.mxu0 %v929
        %956 = vmatprep.subr.bf16.mxu0 0
        %957 = vmatpush2.bf16.msra.mxu0 0
        %958 = vmatprep.subr.bf16.mxu0 0
        %959 = vmatpush2.bf16.msra.mxu0 0
        %960 = vmatprep.subr.bf16.mxu0 0
        %961 = vmatpush2.bf16.msra.mxu0 0
        %962 = vmatprep.subr.bf16.mxu0 0
        %963 = vmatpush2.bf16.msra.mxu0 0
        %964 = vmatprep.subr.bf16.mxu0 0
        %965 = vmatpush2.bf16.msra.mxu0 0
        %966 = vmatprep.subr.bf16.mxu0 0
        %967 = vmatpush2.bf16.msra.mxu0 0
        %968 = vmatprep.subr.bf16.mxu0 0
        %969 = vmatpush2.bf16.msra.mxu0 0
        %970 = vmatprep.subr.bf16.mxu0 0
        %971 = vmatpush2.bf16.msra.mxu0 0
        %972 = vmatprep.mubr.bf16.mxu0 0
        %973 = vmatmul.mubr.bf16.gmra.mxu0 %v935
        %v974 = vpop.f32.mrf.mxu0
        %v975 = vadd.f32 0.0, %v974
        %v976 = vpop.f32.mrf.mxu0
        %v977 = vpop.f32.mrf.mxu0
        %v978 = vadd.f32 0.0, %v977
        %v979 = vpop.f32.mrf.mxu0
        %980 = vmatprep.mubr.bf16.mxu0 0
        %981 = vmatmul.mubr.bf16.gmra.mxu0 %v938
        %v982 = vpop.f32.mrf.mxu0
        %v983 = vadd.f32 0.0, %v982
        %v984 = vpop.f32.mrf.mxu0
        %v985 = vpop.f32.mrf.mxu0
        %v986 = vadd.f32 0.0, %v985
        %v987 = vpop.f32.mrf.mxu0
        %988 = vdwg.mxu0
        %v989 = vpack.c.bf16 %v978, %v975
        %v990 = vpack.c.bf16 %v986, %v983
        %v995 = vunpack.c.l.b16 %v887
        %v996 = vunpack.c.l.b16 %v888
        %v997 = vunpack.c.l.b16 %v889
        %v998 = vunpack.c.l.b16 %v890
        %v999 = vpack.c.b16 %v996, %v995
        %v1000 = vpack.c.b16 %v998, %v997
        %1003 = vmatprep.subr.bf16.mxu0 0
        %1004 = vmatpush1.bf16.msra.mxu0 0
        %1005 = vmatprep.subr.bf16.mxu0 0
        %1006 = vmatpush1.bf16.msra.mxu0 0
        %1007 = vmatprep.subr.bf16.mxu0 0
        %1008 = vmatpush1.bf16.msra.mxu0 0
        %1009 = vmatprep.subr.bf16.mxu0 0
        %1010 = vmatpush1.bf16.msra.mxu0 0
        %1011 = vmatprep.subr.bf16.mxu0 0
        %1012 = vmatpush1.bf16.msra.mxu0 0
        %1013 = vmatprep.subr.bf16.mxu0 0
        %1014 = vmatpush1.bf16.msra.mxu0 0
        %1015 = vmatprep.subr.bf16.mxu0 0
        %1016 = vmatpush1.bf16.msra.mxu0 %v1000
        %1017 = vmatprep.subr.bf16.mxu0 0
        %1018 = vmatpush1.bf16.msra.mxu0 %v999
        %1019 = vmatprep.subr.bf16.mxu0 0
        %1020 = vmatpush2.bf16.msra.mxu0 0
        %1021 = vmatprep.subr.bf16.mxu0 0
        %1022 = vmatpush2.bf16.msra.mxu0 0
        %1023 = vmatprep.subr.bf16.mxu0 0
        %1024 = vmatpush2.bf16.msra.mxu0 0
        %1025 = vmatprep.subr.bf16.mxu0 0
        %1026 = vmatpush2.bf16.msra.mxu0 0
        %1027 = vmatprep.subr.bf16.mxu0 0
        %1028 = vmatpush2.bf16.msra.mxu0 0
        %1029 = vmatprep.subr.bf16.mxu0 0
        %1030 = vmatpush2.bf16.msra.mxu0 0
        %1031 = vmatprep.subr.bf16.mxu0 0
        %1032 = vmatpush2.bf16.msra.mxu0 0
        %1033 = vmatprep.subr.bf16.mxu0 0
        %1034 = vmatpush2.bf16.msra.mxu0 0
        %1035 = vmatprep.mubr.bf16.mxu0 0
        %1036 = vmatmul.mubr.bf16.gmra.mxu0 %v935
        %v1037 = vpop.f32.mrf.mxu0
        %v1038 = vadd.f32 0.0, %v1037
        %v1039 = vpop.f32.mrf.mxu0
        %v1040 = vpop.f32.mrf.mxu0
        %v1041 = vadd.f32 0.0, %v1040
        %v1042 = vpop.f32.mrf.mxu0
        %1043 = vmatprep.mubr.bf16.mxu0 0
        %1044 = vmatmul.mubr.bf16.gmra.mxu0 %v938
        %v1045 = vpop.f32.mrf.mxu0
        %v1046 = vadd.f32 0.0, %v1045
        %v1047 = vpop.f32.mrf.mxu0
        %v1048 = vpop.f32.mrf.mxu0
        %v1049 = vadd.f32 0.0, %v1048
        %v1050 = vpop.f32.mrf.mxu0
        %1051 = vdwg.mxu0
        %v1052 = vpack.c.bf16 %v1041, %v1038
        %v1053 = vpack.c.bf16 %v1049, %v1046
        %v1058 = vunpack.c.l.b16 %v903
        %v1059 = vunpack.c.l.b16 %v904
        %v1060 = vunpack.c.l.b16 %v905
        %v1061 = vunpack.c.l.b16 %v906
        %v1062 = vpack.c.b16 %v1059, %v1058
        %v1063 = vpack.c.b16 %v1061, %v1060
        %v1067 = vsel %vm933, %v1062, 0
        %v1070 = vsel %vm933, %v1063, 0
        %1072 = vmatprep.subr.bf16.mxu0 0
        %1073 = vmatpush1.bf16.msra.mxu0 0
        %1074 = vmatprep.subr.bf16.mxu0 0
        %1075 = vmatpush1.bf16.msra.mxu0 0
        %1076 = vmatprep.subr.bf16.mxu0 0
        %1077 = vmatpush1.bf16.msra.mxu0 0
        %1078 = vmatprep.subr.bf16.mxu0 0
        %1079 = vmatpush1.bf16.msra.mxu0 0
        %1080 = vmatprep.subr.bf16.mxu0 0
        %1081 = vmatpush1.bf16.msra.mxu0 0
        %1082 = vmatprep.subr.bf16.mxu0 0
        %1083 = vmatpush1.bf16.msra.mxu0 0
        %1084 = vmatprep.subr.bf16.mxu0 0
        %1085 = vmatpush1.bf16.msra.mxu0 %v920
        %1086 = vmatprep.subr.bf16.mxu0 0
        %1087 = vmatpush1.bf16.msra.mxu0 %v919
        %1088 = vmatprep.subr.bf16.mxu0 0
        %1089 = vmatpush2.bf16.msra.mxu0 0
        %1090 = vmatprep.subr.bf16.mxu0 0
        %1091 = vmatpush2.bf16.msra.mxu0 0
        %1092 = vmatprep.subr.bf16.mxu0 0
        %1093 = vmatpush2.bf16.msra.mxu0 0
        %1094 = vmatprep.subr.bf16.mxu0 0
        %1095 = vmatpush2.bf16.msra.mxu0 0
        %1096 = vmatprep.subr.bf16.mxu0 0
        %1097 = vmatpush2.bf16.msra.mxu0 0
        %1098 = vmatprep.subr.bf16.mxu0 0
        %1099 = vmatpush2.bf16.msra.mxu0 0
        %1100 = vmatprep.subr.bf16.mxu0 0
        %1101 = vmatpush2.bf16.msra.mxu0 0
        %1102 = vmatprep.subr.bf16.mxu0 0
        %1103 = vmatpush2.bf16.msra.mxu0 0
        %1104 = vmatprep.mubr.bf16.mxu0 0
        %1105 = vmatmul.mubr.bf16.gmra.mxu0 %v1067
        %v1106 = vpop.f32.mrf.mxu0
        %v1107 = vadd.f32 0.0, %v1106
        %v1108 = vpop.f32.mrf.mxu0
        %v1109 = vpop.f32.mrf.mxu0
        %v1110 = vadd.f32 0.0, %v1109
        %v1111 = vpop.f32.mrf.mxu0
        %1112 = vmatprep.mubr.bf16.mxu0 0
        %1113 = vmatmul.mubr.bf16.gmra.mxu0 %v1070
        %v1114 = vpop.f32.mrf.mxu0
        %v1115 = vadd.f32 0.0, %v1114
        %v1116 = vpop.f32.mrf.mxu0
        %v1117 = vpop.f32.mrf.mxu0
        %v1118 = vadd.f32 0.0, %v1117
        %v1119 = vpop.f32.mrf.mxu0
        %1120 = vdwg.mxu0
        %v1125 = vunpack.c.l.b16 %v899
        %v1126 = vunpack.c.l.b16 %v900
        %v1127 = vunpack.c.l.b16 %v901
        %v1128 = vunpack.c.l.b16 %v902
        %v1129 = vpack.c.b16 %v1126, %v1125
        %v1130 = vpack.c.b16 %v1128, %v1127
        %v1132 = vsel %vm933, %v1129, 0
        %v1135 = vsel %vm933, %v1130, 0
        %1137 = vmatprep.subr.bf16.mxu0 0
        %1138 = vmatpush1.bf16.msra.mxu0 0
        %1139 = vmatprep.subr.bf16.mxu0 0
        %1140 = vmatpush1.bf16.msra.mxu0 0
        %1141 = vmatprep.subr.bf16.mxu0 0
        %1142 = vmatpush1.bf16.msra.mxu0 0
        %1143 = vmatprep.subr.bf16.mxu0 0
        %1144 = vmatpush1.bf16.msra.mxu0 0
        %1145 = vmatprep.subr.bf16.mxu0 0
        %1146 = vmatpush1.bf16.msra.mxu0 0
        %1147 = vmatprep.subr.bf16.mxu0 0
        %1148 = vmatpush1.bf16.msra.mxu0 0
        %1149 = vmatprep.subr.bf16.mxu0 0
        %1150 = vmatpush1.bf16.msra.mxu0 %v990
        %1151 = vmatprep.subr.bf16.mxu0 0
        %1152 = vmatpush1.bf16.msra.mxu0 %v989
        %1153 = vmatprep.subr.bf16.mxu0 0
        %1154 = vmatpush2.bf16.msra.mxu0 0
        %1155 = vmatprep.subr.bf16.mxu0 0
        %1156 = vmatpush2.bf16.msra.mxu0 0
        %1157 = vmatprep.subr.bf16.mxu0 0
        %1158 = vmatpush2.bf16.msra.mxu0 0
        %1159 = vmatprep.subr.bf16.mxu0 0
        %1160 = vmatpush2.bf16.msra.mxu0 0
        %1161 = vmatprep.subr.bf16.mxu0 0
        %1162 = vmatpush2.bf16.msra.mxu0 0
        %1163 = vmatprep.subr.bf16.mxu0 0
        %1164 = vmatpush2.bf16.msra.mxu0 0
        %1165 = vmatprep.subr.bf16.mxu0 0
        %1166 = vmatpush2.bf16.msra.mxu0 0
        %1167 = vmatprep.subr.bf16.mxu0 0
        %1168 = vmatpush2.bf16.msra.mxu0 0
        %1169 = vmatprep.mubr.bf16.mxu0 0
        %1170 = vmatmul.mubr.bf16.gmra.mxu0 %v1132
        %v1171 = vpop.f32.mrf.mxu0
        %v1172 = vadd.f32 %v1107, %v1171
        %v1173 = vpop.f32.mrf.mxu0
        %v1174 = vpop.f32.mrf.mxu0
        %v1175 = vadd.f32 %v1110, %v1174
        %v1176 = vpop.f32.mrf.mxu0
        %1177 = vmatprep.mubr.bf16.mxu0 0
        %1178 = vmatmul.mubr.bf16.gmra.mxu0 %v1135
        %v1179 = vpop.f32.mrf.mxu0
        %v1180 = vadd.f32 %v1115, %v1179
        %v1181 = vpop.f32.mrf.mxu0
        %v1182 = vpop.f32.mrf.mxu0
        %v1183 = vadd.f32 %v1118, %v1182
        %v1184 = vpop.f32.mrf.mxu0
        %1185 = vdwg.mxu0
        %v1190 = vunpack.c.l.b16 %v907
        %v1191 = vunpack.c.l.b16 %v908
        %v1192 = vunpack.c.l.b16 %v909
        %v1193 = vunpack.c.l.b16 %v910
        %v1194 = vpack.c.b16 %v1191, %v1190
        %v1195 = vpack.c.b16 %v1193, %v1192
        %v1197 = vsel %vm933, %v1194, 0
        %v1200 = vsel %vm933, %v1195, 0
        %1202 = vmatprep.subr.bf16.mxu0 0
        %1203 = vmatpush1.bf16.msra.mxu0 0
        %1204 = vmatprep.subr.bf16.mxu0 0
        %1205 = vmatpush1.bf16.msra.mxu0 0
        %1206 = vmatprep.subr.bf16.mxu0 0
        %1207 = vmatpush1.bf16.msra.mxu0 0
        %1208 = vmatprep.subr.bf16.mxu0 0
        %1209 = vmatpush1.bf16.msra.mxu0 0
        %1210 = vmatprep.subr.bf16.mxu0 0
        %1211 = vmatpush1.bf16.msra.mxu0 0
        %1212 = vmatprep.subr.bf16.mxu0 0
        %1213 = vmatpush1.bf16.msra.mxu0 0
        %1214 = vmatprep.subr.bf16.mxu0 0
        %1215 = vmatpush1.bf16.msra.mxu0 %v1053
        %1216 = vmatprep.subr.bf16.mxu0 0
        %1217 = vmatpush1.bf16.msra.mxu0 %v1052
        %1218 = vmatprep.subr.bf16.mxu0 0
        %1219 = vmatpush2.bf16.msra.mxu0 0
        %1220 = vmatprep.subr.bf16.mxu0 0
        %1221 = vmatpush2.bf16.msra.mxu0 0
        %1222 = vmatprep.subr.bf16.mxu0 0
        %1223 = vmatpush2.bf16.msra.mxu0 0
        %1224 = vmatprep.subr.bf16.mxu0 0
        %1225 = vmatpush2.bf16.msra.mxu0 0
        %1226 = vmatprep.subr.bf16.mxu0 0
        %1227 = vmatpush2.bf16.msra.mxu0 0
        %1228 = vmatprep.subr.bf16.mxu0 0
        %1229 = vmatpush2.bf16.msra.mxu0 0
        %1230 = vmatprep.subr.bf16.mxu0 0
        %1231 = vmatpush2.bf16.msra.mxu0 0
        %1232 = vmatprep.subr.bf16.mxu0 0
        %1233 = vmatpush2.bf16.msra.mxu0 0
        %1234 = vmatprep.mubr.bf16.mxu0 0
        %1235 = vmatmul.mubr.bf16.gmra.mxu0 %v1197
        %v1236 = vpop.f32.mrf.mxu0
        %v1237 = vadd.f32 0.0, %v1236
        %v1238 = vpop.f32.mrf.mxu0
        %v1239 = vpop.f32.mrf.mxu0
        %v1240 = vadd.f32 0.0, %v1239
        %v1241 = vpop.f32.mrf.mxu0
        %1242 = vmatprep.mubr.bf16.mxu0 0
        %1243 = vmatmul.mubr.bf16.gmra.mxu0 %v1200
        %v1244 = vpop.f32.mrf.mxu0
        %v1245 = vadd.f32 0.0, %v1244
        %v1246 = vpop.f32.mrf.mxu0
        %v1247 = vpop.f32.mrf.mxu0
        %v1248 = vadd.f32 0.0, %v1247
        %v1249 = vpop.f32.mrf.mxu0
        %1250 = vdwg.mxu0
        %v1251 = vadd.f32 %v1172, %v1237
        %v1252 = vadd.f32 %v1175, %v1240
        %v1253 = vadd.f32 %v1180, %v1245
        %v1254 = vadd.f32 %v1183, %v1248
        %v1255 = vld [vmem:[%s2] sm:$0xff]
        %v1256 = vld [vmem:[%s2 + $0x8] sm:$0xff]
        %v1257 = vld [vmem:[%s2 + $0x10] sm:$0xff]
        %v1258 = vld [vmem:[%s2 + $0x18] sm:$0xff]
        %1260 = vset.pattern.permute.xlu0 0
        %1261 = vperm.xlu0 %1260, %v1255
        %v1262 = vpop.permute.xlu0 %1261
        %1265 = vset.pattern.permute.xlu0 0
        %1266 = vperm.xlu0 %1265, %v1256
        %v1267 = vpop.permute.xlu0 %1266
        %1270 = vset.pattern.permute.xlu0 0
        %1271 = vperm.xlu0 %1270, %v1257
        %v1272 = vpop.permute.xlu0 %1271
        %1275 = vset.pattern.permute.xlu0 0
        %1276 = vperm.xlu0 %1275, %v1258
        %v1277 = vpop.permute.xlu0 %1276
        %v1279 = vadd.f32 %v1251, %v1262
        %v1280 = vadd.f32 %v1252, %v1267
        %v1281 = vadd.f32 %v1253, %v1272
        %v1282 = vadd.f32 %v1254, %v1277
        %v1283 = vld [vmem:[#allocation8] sm:$0xf]
        %v1284 = vld [vmem:[#allocation8 + $0x4] sm:$0xf]
        %v1285 = vld [vmem:[#allocation8 + $0x8] sm:$0xf]
        %v1286 = vld [vmem:[#allocation8 + $0xc] sm:$0xf]
        %v1287 = vld [vmem:[#allocation8 + $0x10] sm:$0xf]
        %v1288 = vld [vmem:[#allocation8 + $0x14] sm:$0xf]
        %v1289 = vld [vmem:[%s4] sm:$0xf]
        %v1290 = vld [vmem:[%s4 + $0x4] sm:$0xf]
        %v1291 = vld [vmem:[%s4 + $0x8] sm:$0xf]
        %v1292 = vld [vmem:[%s4 + $0xc] sm:$0xf]
        %v1293 = vmax.f32 %v1279, 0.0
        %v1294 = vmax.f32 %v1280, 0.0
        %v1295 = vmax.f32 %v1281, 0.0
        %v1296 = vmax.f32 %v1282, 0.0
        %v1297 = vpack.c.bf16 %v1294, %v1293
        %v1298 = vpack.c.bf16 %v1296, %v1295
        %v1303 = vunpack.c.l.b16 %v891
        %v1304 = vunpack.c.l.b16 %v892
        %v1305 = vunpack.c.l.b16 %v893
        %v1306 = vunpack.c.l.b16 %v894
        %v1307 = vpack.c.b16 %v1304, %v1303
        %v1308 = vpack.c.b16 %v1306, %v1305
        %v1312 = vsel %vm933, %v1297, 0
        %v1315 = vsel %vm933, %v1298, 0
        %1317 = vmatprep.subr.bf16.mxu0 0
        %1318 = vmatpush1.bf16.msra.mxu0 0
        %1319 = vmatprep.subr.bf16.mxu0 0
        %1320 = vmatpush1.bf16.msra.mxu0 0
        %1321 = vmatprep.subr.bf16.mxu0 0
        %1322 = vmatpush1.bf16.msra.mxu0 0
        %1323 = vmatprep.subr.bf16.mxu0 0
        %1324 = vmatpush1.bf16.msra.mxu0 0
        %1325 = vmatprep.subr.bf16.mxu0 0
        %1326 = vmatpush1.bf16.msra.mxu0 0
        %1327 = vmatprep.subr.bf16.mxu0 0
        %1328 = vmatpush1.bf16.msra.mxu0 0
        %1329 = vmatprep.subr.bf16.mxu0 0
        %1330 = vmatpush1.bf16.msra.mxu0 %v1308
        %1331 = vmatprep.subr.bf16.mxu0 0
        %1332 = vmatpush1.bf16.msra.mxu0 %v1307
        %1333 = vmatprep.subr.bf16.mxu0 0
        %1334 = vmatpush2.bf16.msra.mxu0 0
        %1335 = vmatprep.subr.bf16.mxu0 0
        %1336 = vmatpush2.bf16.msra.mxu0 0
        %1337 = vmatprep.subr.bf16.mxu0 0
        %1338 = vmatpush2.bf16.msra.mxu0 0
        %1339 = vmatprep.subr.bf16.mxu0 0
        %1340 = vmatpush2.bf16.msra.mxu0 0
        %1341 = vmatprep.subr.bf16.mxu0 0
        %1342 = vmatpush2.bf16.msra.mxu0 0
        %1343 = vmatprep.subr.bf16.mxu0 0
        %1344 = vmatpush2.bf16.msra.mxu0 0
        %1345 = vmatprep.subr.bf16.mxu0 0
        %1346 = vmatpush2.bf16.msra.mxu0 0
        %1347 = vmatprep.subr.bf16.mxu0 0
        %1348 = vmatpush2.bf16.msra.mxu0 0
        %1349 = vmatprep.mubr.bf16.mxu0 0
        %1350 = vmatmul.mubr.bf16.gmra.mxu0 %v1312
        %v1351 = vpop.f32.mrf.mxu0
        %v1352 = vadd.f32 0.0, %v1351
        %v1353 = vpop.f32.mrf.mxu0
        %v1354 = vpop.f32.mrf.mxu0
        %v1355 = vadd.f32 0.0, %v1354
        %v1356 = vpop.f32.mrf.mxu0
        %1357 = vmatprep.mubr.bf16.mxu0 0
        %1358 = vmatmul.mubr.bf16.gmra.mxu0 %v1315
        %v1359 = vpop.f32.mrf.mxu0
        %v1360 = vadd.f32 0.0, %v1359
        %v1361 = vpop.f32.mrf.mxu0
        %v1362 = vpop.f32.mrf.mxu0
        %v1363 = vadd.f32 0.0, %v1362
        %v1364 = vpop.f32.mrf.mxu0
        %1365 = vdwg.mxu0
        %v1366 = vpack.c.bf16 %v1355, %v1352
        %v1367 = vpack.c.bf16 %v1363, %v1360
        %v1372 = vunpack.c.l.b16 %v895
        %v1373 = vunpack.c.l.b16 %v896
        %v1374 = vunpack.c.l.b16 %v897
        %v1375 = vunpack.c.l.b16 %v898
        %v1376 = vpack.c.b16 %v1373, %v1372
        %v1377 = vpack.c.b16 %v1375, %v1374
        %1380 = vmatprep.subr.bf16.mxu0 0
        %1381 = vmatpush1.bf16.msra.mxu0 0
        %1382 = vmatprep.subr.bf16.mxu0 0
        %1383 = vmatpush1.bf16.msra.mxu0 0
        %1384 = vmatprep.subr.bf16.mxu0 0
        %1385 = vmatpush1.bf16.msra.mxu0 0
        %1386 = vmatprep.subr.bf16.mxu0 0
        %1387 = vmatpush1.bf16.msra.mxu0 0
        %1388 = vmatprep.subr.bf16.mxu0 0
        %1389 = vmatpush1.bf16.msra.mxu0 0
        %1390 = vmatprep.subr.bf16.mxu0 0
        %1391 = vmatpush1.bf16.msra.mxu0 0
        %1392 = vmatprep.subr.bf16.mxu0 0
        %1393 = vmatpush1.bf16.msra.mxu0 %v1377
        %1394 = vmatprep.subr.bf16.mxu0 0
        %1395 = vmatpush1.bf16.msra.mxu0 %v1376
        %1396 = vmatprep.subr.bf16.mxu0 0
        %1397 = vmatpush2.bf16.msra.mxu0 0
        %1398 = vmatprep.subr.bf16.mxu0 0
        %1399 = vmatpush2.bf16.msra.mxu0 0
        %1400 = vmatprep.subr.bf16.mxu0 0
        %1401 = vmatpush2.bf16.msra.mxu0 0
        %1402 = vmatprep.subr.bf16.mxu0 0
        %1403 = vmatpush2.bf16.msra.mxu0 0
        %1404 = vmatprep.subr.bf16.mxu0 0
        %1405 = vmatpush2.bf16.msra.mxu0 0
        %1406 = vmatprep.subr.bf16.mxu0 0
        %1407 = vmatpush2.bf16.msra.mxu0 0
        %1408 = vmatprep.subr.bf16.mxu0 0
        %1409 = vmatpush2.bf16.msra.mxu0 0
        %1410 = vmatprep.subr.bf16.mxu0 0
        %1411 = vmatpush2.bf16.msra.mxu0 0
        %1412 = vmatprep.mubr.bf16.mxu0 0
        %1413 = vmatmul.mubr.bf16.gmra.mxu0 %v1312
        %v1414 = vpop.f32.mrf.mxu0
        %v1415 = vadd.f32 0.0, %v1414
        %v1416 = vpop.f32.mrf.mxu0
        %v1417 = vpop.f32.mrf.mxu0
        %v1418 = vadd.f32 0.0, %v1417
        %v1419 = vpop.f32.mrf.mxu0
        %1420 = vmatprep.mubr.bf16.mxu0 0
        %1421 = vmatmul.mubr.bf16.gmra.mxu0 %v1315
        %v1422 = vpop.f32.mrf.mxu0
        %v1423 = vadd.f32 0.0, %v1422
        %v1424 = vpop.f32.mrf.mxu0
        %v1425 = vpop.f32.mrf.mxu0
        %v1426 = vadd.f32 0.0, %v1425
        %v1427 = vpop.f32.mrf.mxu0
        %1428 = vdwg.mxu0
        %v1429 = vpack.c.bf16 %v1418, %v1415
        %v1430 = vpack.c.bf16 %v1426, %v1423
        %v1433 = vunpack.c.l.b16 %v1285
        %v1434 = vunpack.c.l.b16 %v1286
        %v1435 = vpack.c.b16 %v1434, %v1433
        %v1437 = vsel %vm933, %v1435, 0
        %1439 = vmatprep.subr.bf16.mxu0 0
        %1440 = vmatpush1.bf16.msra.mxu0 0
        %1441 = vmatprep.subr.bf16.mxu0 0
        %1442 = vmatpush1.bf16.msra.mxu0 0
        %1443 = vmatprep.subr.bf16.mxu0 0
        %1444 = vmatpush1.bf16.msra.mxu0 0
        %1445 = vmatprep.subr.bf16.mxu0 0
        %1446 = vmatpush1.bf16.msra.mxu0 0
        %1447 = vmatprep.subr.bf16.mxu0 0
        %1448 = vmatpush1.bf16.msra.mxu0 0
        %1449 = vmatprep.subr.bf16.mxu0 0
        %1450 = vmatpush1.bf16.msra.mxu0 0
        %1451 = vmatprep.subr.bf16.mxu0 0
        %1452 = vmatpush1.bf16.msra.mxu0 %v1298
        %1453 = vmatprep.subr.bf16.mxu0 0
        %1454 = vmatpush1.bf16.msra.mxu0 %v1297
        %1455 = vmatprep.subr.bf16.mxu0 0
        %1456 = vmatpush2.bf16.msra.mxu0 0
        %1457 = vmatprep.subr.bf16.mxu0 0
        %1458 = vmatpush2.bf16.msra.mxu0 0
        %1459 = vmatprep.subr.bf16.mxu0 0
        %1460 = vmatpush2.bf16.msra.mxu0 0
        %1461 = vmatprep.subr.bf16.mxu0 0
        %1462 = vmatpush2.bf16.msra.mxu0 0
        %1463 = vmatprep.subr.bf16.mxu0 0
        %1464 = vmatpush2.bf16.msra.mxu0 0
        %1465 = vmatprep.subr.bf16.mxu0 0
        %1466 = vmatpush2.bf16.msra.mxu0 0
        %1467 = vmatprep.subr.bf16.mxu0 0
        %1468 = vmatpush2.bf16.msra.mxu0 0
        %1469 = vmatprep.subr.bf16.mxu0 0
        %1470 = vmatpush2.bf16.msra.mxu0 0
        %1471 = vmatprep.mubr.bf16.mxu0 0
        %1472 = vmatmul.mubr.bf16.gmra.mxu0 %v1437
        %v1473 = vpop.f32.mrf.mxu0
        %v1474 = vadd.f32 0.0, %v1473
        %v1475 = vpop.f32.mrf.mxu0
        %v1476 = vpop.f32.mrf.mxu0
        %v1477 = vadd.f32 0.0, %v1476
        %v1478 = vpop.f32.mrf.mxu0
        %1479 = vdwg.mxu0
        %v1482 = vunpack.c.l.b16 %v1283
        %v1483 = vunpack.c.l.b16 %v1284
        %v1484 = vpack.c.b16 %v1483, %v1482
        %v1486 = vsel %vm933, %v1484, 0
        %1488 = vmatprep.subr.bf16.mxu0 0
        %1489 = vmatpush1.bf16.msra.mxu0 0
        %1490 = vmatprep.subr.bf16.mxu0 0
        %1491 = vmatpush1.bf16.msra.mxu0 0
        %1492 = vmatprep.subr.bf16.mxu0 0
        %1493 = vmatpush1.bf16.msra.mxu0 0
        %1494 = vmatprep.subr.bf16.mxu0 0
        %1495 = vmatpush1.bf16.msra.mxu0 0
        %1496 = vmatprep.subr.bf16.mxu0 0
        %1497 = vmatpush1.bf16.msra.mxu0 0
        %1498 = vmatprep.subr.bf16.mxu0 0
        %1499 = vmatpush1.bf16.msra.mxu0 0
        %1500 = vmatprep.subr.bf16.mxu0 0
        %1501 = vmatpush1.bf16.msra.mxu0 %v1367
        %1502 = vmatprep.subr.bf16.mxu0 0
        %1503 = vmatpush1.bf16.msra.mxu0 %v1366
        %1504 = vmatprep.subr.bf16.mxu0 0
        %1505 = vmatpush2.bf16.msra.mxu0 0
        %1506 = vmatprep.subr.bf16.mxu0 0
        %1507 = vmatpush2.bf16.msra.mxu0 0
        %1508 = vmatprep.subr.bf16.mxu0 0
        %1509 = vmatpush2.bf16.msra.mxu0 0
        %1510 = vmatprep.subr.bf16.mxu0 0
        %1511 = vmatpush2.bf16.msra.mxu0 0
        %1512 = vmatprep.subr.bf16.mxu0 0
        %1513 = vmatpush2.bf16.msra.mxu0 0
        %1514 = vmatprep.subr.bf16.mxu0 0
        %1515 = vmatpush2.bf16.msra.mxu0 0
        %1516 = vmatprep.subr.bf16.mxu0 0
        %1517 = vmatpush2.bf16.msra.mxu0 0
        %1518 = vmatprep.subr.bf16.mxu0 0
        %1519 = vmatpush2.bf16.msra.mxu0 0
        %1520 = vmatprep.mubr.bf16.mxu0 0
        %1521 = vmatmul.mubr.bf16.gmra.mxu0 %v1486
        %v1522 = vpop.f32.mrf.mxu0
        %v1523 = vadd.f32 %v1474, %v1522
        %v1524 = vpop.f32.mrf.mxu0
        %v1525 = vpop.f32.mrf.mxu0
        %v1526 = vadd.f32 %v1477, %v1525
        %v1527 = vpop.f32.mrf.mxu0
        %1528 = vdwg.mxu0
        %v1531 = vunpack.c.l.b16 %v1287
        %v1532 = vunpack.c.l.b16 %v1288
        %v1533 = vpack.c.b16 %v1532, %v1531
        %v1535 = vsel %vm933, %v1533, 0
        %1537 = vmatprep.subr.bf16.mxu0 0
        %1538 = vmatpush1.bf16.msra.mxu0 0
        %1539 = vmatprep.subr.bf16.mxu0 0
        %1540 = vmatpush1.bf16.msra.mxu0 0
        %1541 = vmatprep.subr.bf16.mxu0 0
        %1542 = vmatpush1.bf16.msra.mxu0 0
        %1543 = vmatprep.subr.bf16.mxu0 0
        %1544 = vmatpush1.bf16.msra.mxu0 0
        %1545 = vmatprep.subr.bf16.mxu0 0
        %1546 = vmatpush1.bf16.msra.mxu0 0
        %1547 = vmatprep.subr.bf16.mxu0 0
        %1548 = vmatpush1.bf16.msra.mxu0 0
        %1549 = vmatprep.subr.bf16.mxu0 0
        %1550 = vmatpush1.bf16.msra.mxu0 %v1430
        %1551 = vmatprep.subr.bf16.mxu0 0
        %1552 = vmatpush1.bf16.msra.mxu0 %v1429
        %1553 = vmatprep.subr.bf16.mxu0 0
        %1554 = vmatpush2.bf16.msra.mxu0 0
        %1555 = vmatprep.subr.bf16.mxu0 0
        %1556 = vmatpush2.bf16.msra.mxu0 0
        %1557 = vmatprep.subr.bf16.mxu0 0
        %1558 = vmatpush2.bf16.msra.mxu0 0
        %1559 = vmatprep.subr.bf16.mxu0 0
        %1560 = vmatpush2.bf16.msra.mxu0 0
        %1561 = vmatprep.subr.bf16.mxu0 0
        %1562 = vmatpush2.bf16.msra.mxu0 0
        %1563 = vmatprep.subr.bf16.mxu0 0
        %1564 = vmatpush2.bf16.msra.mxu0 0
        %1565 = vmatprep.subr.bf16.mxu0 0
        %1566 = vmatpush2.bf16.msra.mxu0 0
        %1567 = vmatprep.subr.bf16.mxu0 0
        %1568 = vmatpush2.bf16.msra.mxu0 0
        %1569 = vmatprep.mubr.bf16.mxu0 0
        %1570 = vmatmul.mubr.bf16.gmra.mxu0 %v1535
        %v1571 = vpop.f32.mrf.mxu0
        %v1572 = vadd.f32 0.0, %v1571
        %v1573 = vpop.f32.mrf.mxu0
        %v1574 = vpop.f32.mrf.mxu0
        %v1575 = vadd.f32 0.0, %v1574
        %v1576 = vpop.f32.mrf.mxu0
        %1577 = vdwg.mxu0
        %v1578 = vadd.f32 %v1523, %v1572
        %v1579 = vadd.f32 %v1526, %v1575
        %v1580 = vmax.f32 %v1578, 0.0
        %v1581 = vmax.f32 %v1579, 0.0
        %v1582 = vpack.c.bf16 %v1581, %v1580
        %v1587 = vunpack.c.l.b16 %v1289
        %v1588 = vunpack.c.l.b16 %v1290
        %v1589 = vunpack.c.l.b16 %v1291
        %v1590 = vunpack.c.l.b16 %v1292
        %v1591 = vpack.c.b16 %v1588, %v1587
        %v1592 = vpack.c.b16 %v1590, %v1589
        %vm1593 = vcmask 130048
        %v1595 = vsel %vm1593, %v1591, 0
        %v1598 = vsel %vm1593, %v1592, 0
        %1600 = vmatprep.subr.bf16.mxu0 0
        %1601 = vmatpush1.bf16.msra.mxu0 0
        %1602 = vmatprep.subr.bf16.mxu0 0
        %1603 = vmatpush1.bf16.msra.mxu0 0
        %1604 = vmatprep.subr.bf16.mxu0 0
        %1605 = vmatpush1.bf16.msra.mxu0 0
        %1606 = vmatprep.subr.bf16.mxu0 0
        %1607 = vmatpush1.bf16.msra.mxu0 0
        %1608 = vmatprep.subr.bf16.mxu0 0
        %1609 = vmatpush1.bf16.msra.mxu0 0
        %1610 = vmatprep.subr.bf16.mxu0 0
        %1611 = vmatpush1.bf16.msra.mxu0 0
        %1612 = vmatprep.subr.bf16.mxu0 0
        %1613 = vmatpush1.bf16.msra.mxu0 0
        %1614 = vmatprep.subr.bf16.mxu0 0
        %1615 = vmatpush1.bf16.msra.mxu0 %v1582
        %1616 = vmatprep.subr.bf16.mxu0 0
        %1617 = vmatpush2.bf16.msra.mxu0 0
        %1618 = vmatprep.subr.bf16.mxu0 0
        %1619 = vmatpush2.bf16.msra.mxu0 0
        %1620 = vmatprep.subr.bf16.mxu0 0
        %1621 = vmatpush2.bf16.msra.mxu0 0
        %1622 = vmatprep.subr.bf16.mxu0 0
        %1623 = vmatpush2.bf16.msra.mxu0 0
        %1624 = vmatprep.subr.bf16.mxu0 0
        %1625 = vmatpush2.bf16.msra.mxu0 0
        %1626 = vmatprep.subr.bf16.mxu0 0
        %1627 = vmatpush2.bf16.msra.mxu0 0
        %1628 = vmatprep.subr.bf16.mxu0 0
        %1629 = vmatpush2.bf16.msra.mxu0 0
        %1630 = vmatprep.subr.bf16.mxu0 0
        %1631 = vmatpush2.bf16.msra.mxu0 0
        %1632 = vmatprep.mubr.bf16.mxu0 0
        %1633 = vmatmul.mubr.bf16.gmra.mxu0 %v1595
        %v1634 = vpop.f32.mrf.mxu0
        %v1635 = vadd.f32 0.0, %v1634
        %v1636 = vpop.f32.mrf.mxu0
        %v1637 = vpop.f32.mrf.mxu0
        %v1638 = vadd.f32 0.0, %v1637
        %v1639 = vpop.f32.mrf.mxu0
        %1640 = vmatprep.mubr.bf16.mxu0 0
        %1641 = vmatmul.mubr.bf16.gmra.mxu0 %v1598
        %v1642 = vpop.f32.mrf.mxu0
        %v1643 = vadd.f32 0.0, %v1642
        %v1644 = vpop.f32.mrf.mxu0
        %v1645 = vpop.f32.mrf.mxu0
        %v1646 = vadd.f32 0.0, %v1645
        %v1647 = vpop.f32.mrf.mxu0
        %1648 = vdwg.mxu0
        %v1649 = vadd.f32 %v1279, %v1635
        %v1650 = vadd.f32 %v1280, %v1638
        %v1651 = vadd.f32 %v1281, %v1643
        %v1652 = vadd.f32 %v1282, %v1646
        %s1653 = scalar_lea.vmem [#allocation8], 24
        %v1654 = vld [vmem:[%s1653] sm:$0xf]
        %v1655 = vld [vmem:[%s1653 + $0x4] sm:$0xf]
        %v1656 = vld [vmem:[%s1653 + $0x8] sm:$0xf]
        %v1657 = vld [vmem:[%s1653 + $0xc] sm:$0xf]
        %v1658 = vld [vmem:[%s1653 + $0x10] sm:$0xf]
        %v1659 = vld [vmem:[%s1653 + $0x14] sm:$0xf]
        %s1660 = scalar_lea.vmem %s4, 16
        %v1661 = vld [vmem:[%s1660] sm:$0xf]
        %v1662 = vld [vmem:[%s1660 + $0x4] sm:$0xf]
        %v1663 = vld [vmem:[%s1660 + $0x8] sm:$0xf]
        %v1664 = vld [vmem:[%s1660 + $0xc] sm:$0xf]
        %v1665 = vmax.f32 %v1649, 0.0
        %v1666 = vmax.f32 %v1650, 0.0
        %v1667 = vmax.f32 %v1651, 0.0
        %v1668 = vmax.f32 %v1652, 0.0
        %v1669 = vpack.c.bf16 %v1666, %v1665
        %v1670 = vpack.c.bf16 %v1668, %v1667
        %v1672 = vsel %vm933, %v1669, 0
        %v1675 = vsel %vm933, %v1670, 0
        %1677 = vmatprep.subr.bf16.mxu0 0
        %1678 = vmatpush1.bf16.msra.mxu0 0
        %1679 = vmatprep.subr.bf16.mxu0 0
        %1680 = vmatpush1.bf16.msra.mxu0 0
        %1681 = vmatprep.subr.bf16.mxu0 0
        %1682 = vmatpush1.bf16.msra.mxu0 0
        %1683 = vmatprep.subr.bf16.mxu0 0
        %1684 = vmatpush1.bf16.msra.mxu0 0
        %1685 = vmatprep.subr.bf16.mxu0 0
        %1686 = vmatpush1.bf16.msra.mxu0 0
        %1687 = vmatprep.subr.bf16.mxu0 0
        %1688 = vmatpush1.bf16.msra.mxu0 0
        %1689 = vmatprep.subr.bf16.mxu0 0
        %1690 = vmatpush1.bf16.msra.mxu0 %v1308
        %1691 = vmatprep.subr.bf16.mxu0 0
        %1692 = vmatpush1.bf16.msra.mxu0 %v1307
        %1693 = vmatprep.subr.bf16.mxu0 0
        %1694 = vmatpush2.bf16.msra.mxu0 0
        %1695 = vmatprep.subr.bf16.mxu0 0
        %1696 = vmatpush2.bf16.msra.mxu0 0
        %1697 = vmatprep.subr.bf16.mxu0 0
        %1698 = vmatpush2.bf16.msra.mxu0 0
        %1699 = vmatprep.subr.bf16.mxu0 0
        %1700 = vmatpush2.bf16.msra.mxu0 0
        %1701 = vmatprep.subr.bf16.mxu0 0
        %1702 = vmatpush2.bf16.msra.mxu0 0
        %1703 = vmatprep.subr.bf16.mxu0 0
        %1704 = vmatpush2.bf16.msra.mxu0 0
        %1705 = vmatprep.subr.bf16.mxu0 0
        %1706 = vmatpush2.bf16.msra.mxu0 0
        %1707 = vmatprep.subr.bf16.mxu0 0
        %1708 = vmatpush2.bf16.msra.mxu0 0
        %1709 = vmatprep.mubr.bf16.mxu0 0
        %1710 = vmatmul.mubr.bf16.gmra.mxu0 %v1672
        %v1711 = vpop.f32.mrf.mxu0
        %v1712 = vadd.f32 0.0, %v1711
        %v1713 = vpop.f32.mrf.mxu0
        %v1714 = vpop.f32.mrf.mxu0
        %v1715 = vadd.f32 0.0, %v1714
        %v1716 = vpop.f32.mrf.mxu0
        %1717 = vmatprep.mubr.bf16.mxu0 0
        %1718 = vmatmul.mubr.bf16.gmra.mxu0 %v1675
        %v1719 = vpop.f32.mrf.mxu0
        %v1720 = vadd.f32 0.0, %v1719
        %v1721 = vpop.f32.mrf.mxu0
        %v1722 = vpop.f32.mrf.mxu0
        %v1723 = vadd.f32 0.0, %v1722
        %v1724 = vpop.f32.mrf.mxu0
        %1725 = vdwg.mxu0
        %v1726 = vpack.c.bf16 %v1715, %v1712
        %v1727 = vpack.c.bf16 %v1723, %v1720
        %1728 = vmatprep.subr.bf16.mxu0 0
        %1729 = vmatpush1.bf16.msra.mxu0 0
        %1730 = vmatprep.subr.bf16.mxu0 0
        %1731 = vmatpush1.bf16.msra.mxu0 0
        %1732 = vmatprep.subr.bf16.mxu0 0
        %1733 = vmatpush1.bf16.msra.mxu0 0
        %1734 = vmatprep.subr.bf16.mxu0 0
        %1735 = vmatpush1.bf16.msra.mxu0 0
        %1736 = vmatprep.subr.bf16.mxu0 0
        %1737 = vmatpush1.bf16.msra.mxu0 0
        %1738 = vmatprep.subr.bf16.mxu0 0
        %1739 = vmatpush1.bf16.msra.mxu0 0
        %1740 = vmatprep.subr.bf16.mxu0 0
        %1741 = vmatpush1.bf16.msra.mxu0 %v1377
        %1742 = vmatprep.subr.bf16.mxu0 0
        %1743 = vmatpush1.bf16.msra.mxu0 %v1376
        %1744 = vmatprep.subr.bf16.mxu0 0
        %1745 = vmatpush2.bf16.msra.mxu0 0
        %1746 = vmatprep.subr.bf16.mxu0 0
        %1747 = vmatpush2.bf16.msra.mxu0 0
        %1748 = vmatprep.subr.bf16.mxu0 0
        %1749 = vmatpush2.bf16.msra.mxu0 0
        %1750 = vmatprep.subr.bf16.mxu0 0
        %1751 = vmatpush2.bf16.msra.mxu0 0
        %1752 = vmatprep.subr.bf16.mxu0 0
        %1753 = vmatpush2.bf16.msra.mxu0 0
        %1754 = vmatprep.subr.bf16.mxu0 0
        %1755 = vmatpush2.bf16.msra.mxu0 0
        %1756 = vmatprep.subr.bf16.mxu0 0
        %1757 = vmatpush2.bf16.msra.mxu0 0
        %1758 = vmatprep.subr.bf16.mxu0 0
        %1759 = vmatpush2.bf16.msra.mxu0 0
        %1760 = vmatprep.mubr.bf16.mxu0 0
        %1761 = vmatmul.mubr.bf16.gmra.mxu0 %v1672
        %v1762 = vpop.f32.mrf.mxu0
        %v1763 = vadd.f32 0.0, %v1762
        %v1764 = vpop.f32.mrf.mxu0
        %v1765 = vpop.f32.mrf.mxu0
        %v1766 = vadd.f32 0.0, %v1765
        %v1767 = vpop.f32.mrf.mxu0
        %1768 = vmatprep.mubr.bf16.mxu0 0
        %1769 = vmatmul.mubr.bf16.gmra.mxu0 %v1675
        %v1770 = vpop.f32.mrf.mxu0
        %v1771 = vadd.f32 0.0, %v1770
        %v1772 = vpop.f32.mrf.mxu0
        %v1773 = vpop.f32.mrf.mxu0
        %v1774 = vadd.f32 0.0, %v1773
        %v1775 = vpop.f32.mrf.mxu0
        %1776 = vdwg.mxu0
        %v1777 = vpack.c.bf16 %v1766, %v1763
        %v1778 = vpack.c.bf16 %v1774, %v1771
        %v1781 = vunpack.c.l.b16 %v1656
        %v1782 = vunpack.c.l.b16 %v1657
        %v1783 = vpack.c.b16 %v1782, %v1781
        %v1785 = vsel %vm933, %v1783, 0
        %1787 = vmatprep.subr.bf16.mxu0 0
        %1788 = vmatpush1.bf16.msra.mxu0 0
        %1789 = vmatprep.subr.bf16.mxu0 0
        %1790 = vmatpush1.bf16.msra.mxu0 0
        %1791 = vmatprep.subr.bf16.mxu0 0
        %1792 = vmatpush1.bf16.msra.mxu0 0
        %1793 = vmatprep.subr.bf16.mxu0 0
        %1794 = vmatpush1.bf16.msra.mxu0 0
        %1795 = vmatprep.subr.bf16.mxu0 0
        %1796 = vmatpush1.bf16.msra.mxu0 0
        %1797 = vmatprep.subr.bf16.mxu0 0
        %1798 = vmatpush1.bf16.msra.mxu0 0
        %1799 = vmatprep.subr.bf16.mxu0 0
        %1800 = vmatpush1.bf16.msra.mxu0 %v1670
        %1801 = vmatprep.subr.bf16.mxu0 0
        %1802 = vmatpush1.bf16.msra.mxu0 %v1669
        %1803 = vmatprep.subr.bf16.mxu0 0
        %1804 = vmatpush2.bf16.msra.mxu0 0
        %1805 = vmatprep.subr.bf16.mxu0 0
        %1806 = vmatpush2.bf16.msra.mxu0 0
        %1807 = vmatprep.subr.bf16.mxu0 0
        %1808 = vmatpush2.bf16.msra.mxu0 0
        %1809 = vmatprep.subr.bf16.mxu0 0
        %1810 = vmatpush2.bf16.msra.mxu0 0
        %1811 = vmatprep.subr.bf16.mxu0 0
        %1812 = vmatpush2.bf16.msra.mxu0 0
        %1813 = vmatprep.subr.bf16.mxu0 0
        %1814 = vmatpush2.bf16.msra.mxu0 0
        %1815 = vmatprep.subr.bf16.mxu0 0
        %1816 = vmatpush2.bf16.msra.mxu0 0
        %1817 = vmatprep.subr.bf16.mxu0 0
        %1818 = vmatpush2.bf16.msra.mxu0 0
        %1819 = vmatprep.mubr.bf16.mxu0 0
        %1820 = vmatmul.mubr.bf16.gmra.mxu0 %v1785
        %v1821 = vpop.f32.mrf.mxu0
        %v1822 = vadd.f32 0.0, %v1821
        %v1823 = vpop.f32.mrf.mxu0
        %v1824 = vpop.f32.mrf.mxu0
        %v1825 = vadd.f32 0.0, %v1824
        %v1826 = vpop.f32.mrf.mxu0
        %1827 = vdwg.mxu0
        %v1830 = vunpack.c.l.b16 %v1654
        %v1831 = vunpack.c.l.b16 %v1655
        %v1832 = vpack.c.b16 %v1831, %v1830
        %v1834 = vsel %vm933, %v1832, 0
        %1836 = vmatprep.subr.bf16.mxu0 0
        %1837 = vmatpush1.bf16.msra.mxu0 0
        %1838 = vmatprep.subr.bf16.mxu0 0
        %1839 = vmatpush1.bf16.msra.mxu0 0
        %1840 = vmatprep.subr.bf16.mxu0 0
        %1841 = vmatpush1.bf16.msra.mxu0 0
        %1842 = vmatprep.subr.bf16.mxu0 0
        %1843 = vmatpush1.bf16.msra.mxu0 0
        %1844 = vmatprep.subr.bf16.mxu0 0
        %1845 = vmatpush1.bf16.msra.mxu0 0
        %1846 = vmatprep.subr.bf16.mxu0 0
        %1847 = vmatpush1.bf16.msra.mxu0 0
        %1848 = vmatprep.subr.bf16.mxu0 0
        %1849 = vmatpush1.bf16.msra.mxu0 %v1727
        %1850 = vmatprep.subr.bf16.mxu0 0
        %1851 = vmatpush1.bf16.msra.mxu0 %v1726
        %1852 = vmatprep.subr.bf16.mxu0 0
        %1853 = vmatpush2.bf16.msra.mxu0 0
        %1854 = vmatprep.subr.bf16.mxu0 0
        %1855 = vmatpush2.bf16.msra.mxu0 0
        %1856 = vmatprep.subr.bf16.mxu0 0
        %1857 = vmatpush2.bf16.msra.mxu0 0
        %1858 = vmatprep.subr.bf16.mxu0 0
        %1859 = vmatpush2.bf16.msra.mxu0 0
        %1860 = vmatprep.subr.bf16.mxu0 0
        %1861 = vmatpush2.bf16.msra.mxu0 0
        %1862 = vmatprep.subr.bf16.mxu0 0
        %1863 = vmatpush2.bf16.msra.mxu0 0
        %1864 = vmatprep.subr.bf16.mxu0 0
        %1865 = vmatpush2.bf16.msra.mxu0 0
        %1866 = vmatprep.subr.bf16.mxu0 0
        %1867 = vmatpush2.bf16.msra.mxu0 0
        %1868 = vmatprep.mubr.bf16.mxu0 0
        %1869 = vmatmul.mubr.bf16.gmra.mxu0 %v1834
        %v1870 = vpop.f32.mrf.mxu0
        %v1871 = vadd.f32 %v1822, %v1870
        %v1872 = vpop.f32.mrf.mxu0
        %v1873 = vpop.f32.mrf.mxu0
        %v1874 = vadd.f32 %v1825, %v1873
        %v1875 = vpop.f32.mrf.mxu0
        %1876 = vdwg.mxu0
        %v1879 = vunpack.c.l.b16 %v1658
        %v1880 = vunpack.c.l.b16 %v1659
        %v1881 = vpack.c.b16 %v1880, %v1879
        %v1883 = vsel %vm933, %v1881, 0
        %1885 = vmatprep.subr.bf16.mxu0 0
        %1886 = vmatpush1.bf16.msra.mxu0 0
        %1887 = vmatprep.subr.bf16.mxu0 0
        %1888 = vmatpush1.bf16.msra.mxu0 0
        %1889 = vmatprep.subr.bf16.mxu0 0
        %1890 = vmatpush1.bf16.msra.mxu0 0
        %1891 = vmatprep.subr.bf16.mxu0 0
        %1892 = vmatpush1.bf16.msra.mxu0 0
        %1893 = vmatprep.subr.bf16.mxu0 0
        %1894 = vmatpush1.bf16.msra.mxu0 0
        %1895 = vmatprep.subr.bf16.mxu0 0
        %1896 = vmatpush1.bf16.msra.mxu0 0
        %1897 = vmatprep.subr.bf16.mxu0 0
        %1898 = vmatpush1.bf16.msra.mxu0 %v1778
        %1899 = vmatprep.subr.bf16.mxu0 0
        %1900 = vmatpush1.bf16.msra.mxu0 %v1777
        %1901 = vmatprep.subr.bf16.mxu0 0
        %1902 = vmatpush2.bf16.msra.mxu0 0
        %1903 = vmatprep.subr.bf16.mxu0 0
        %1904 = vmatpush2.bf16.msra.mxu0 0
        %1905 = vmatprep.subr.bf16.mxu0 0
        %1906 = vmatpush2.bf16.msra.mxu0 0
        %1907 = vmatprep.subr.bf16.mxu0 0
        %1908 = vmatpush2.bf16.msra.mxu0 0
        %1909 = vmatprep.subr.bf16.mxu0 0
        %1910 = vmatpush2.bf16.msra.mxu0 0
        %1911 = vmatprep.subr.bf16.mxu0 0
        %1912 = vmatpush2.bf16.msra.mxu0 0
        %1913 = vmatprep.subr.bf16.mxu0 0
        %1914 = vmatpush2.bf16.msra.mxu0 0
        %1915 = vmatprep.subr.bf16.mxu0 0
        %1916 = vmatpush2.bf16.msra.mxu0 0
        %1917 = vmatprep.mubr.bf16.mxu0 0
        %1918 = vmatmul.mubr.bf16.gmra.mxu0 %v1883
        %v1919 = vpop.f32.mrf.mxu0
        %v1920 = vadd.f32 0.0, %v1919
        %v1921 = vpop.f32.mrf.mxu0
        %v1922 = vpop.f32.mrf.mxu0
        %v1923 = vadd.f32 0.0, %v1922
        %v1924 = vpop.f32.mrf.mxu0
        %1925 = vdwg.mxu0
        %v1926 = vadd.f32 %v1871, %v1920
        %v1927 = vadd.f32 %v1874, %v1923
        %v1928 = vmax.f32 %v1926, 0.0
        %v1929 = vmax.f32 %v1927, 0.0
        %v1930 = vpack.c.bf16 %v1929, %v1928
        %v1935 = vunpack.c.l.b16 %v1661
        %v1936 = vunpack.c.l.b16 %v1662
        %v1937 = vunpack.c.l.b16 %v1663
        %v1938 = vunpack.c.l.b16 %v1664
        %v1939 = vpack.c.b16 %v1936, %v1935
        %v1940 = vpack.c.b16 %v1938, %v1937
        %v1942 = vsel %vm1593, %v1939, 0
        %v1945 = vsel %vm1593, %v1940, 0
        %1947 = vmatprep.subr.bf16.mxu0 0
        %1948 = vmatpush1.bf16.msra.mxu0 0
        %1949 = vmatprep.subr.bf16.mxu0 0
        %1950 = vmatpush1.bf16.msra.mxu0 0
        %1951 = vmatprep.subr.bf16.mxu0 0
        %1952 = vmatpush1.bf16.msra.mxu0 0
        %1953 = vmatprep.subr.bf16.mxu0 0
        %1954 = vmatpush1.bf16.msra.mxu0 0
        %1955 = vmatprep.subr.bf16.mxu0 0
        %1956 = vmatpush1.bf16.msra.mxu0 0
        %1957 = vmatprep.subr.bf16.mxu0 0
        %1958 = vmatpush1.bf16.msra.mxu0 0
        %1959 = vmatprep.subr.bf16.mxu0 0
        %1960 = vmatpush1.bf16.msra.mxu0 0
        %1961 = vmatprep.subr.bf16.mxu0 0
        %1962 = vmatpush1.bf16.msra.mxu0 %v1930
        %1963 = vmatprep.subr.bf16.mxu0 0
        %1964 = vmatpush2.bf16.msra.mxu0 0
        %1965 = vmatprep.subr.bf16.mxu0 0
        %1966 = vmatpush2.bf16.msra.mxu0 0
        %1967 = vmatprep.subr.bf16.mxu0 0
        %1968 = vmatpush2.bf16.msra.mxu0 0
        %1969 = vmatprep.subr.bf16.mxu0 0
        %1970 = vmatpush2.bf16.msra.mxu0 0
        %1971 = vmatprep.subr.bf16.mxu0 0
        %1972 = vmatpush2.bf16.msra.mxu0 0
        %1973 = vmatprep.subr.bf16.mxu0 0
        %1974 = vmatpush2.bf16.msra.mxu0 0
        %1975 = vmatprep.subr.bf16.mxu0 0
        %1976 = vmatpush2.bf16.msra.mxu0 0
        %1977 = vmatprep.subr.bf16.mxu0 0
        %1978 = vmatpush2.bf16.msra.mxu0 0
        %1979 = vmatprep.mubr.bf16.mxu0 0
        %1980 = vmatmul.mubr.bf16.gmra.mxu0 %v1942
        %v1981 = vpop.f32.mrf.mxu0
        %v1982 = vadd.f32 0.0, %v1981
        %v1983 = vpop.f32.mrf.mxu0
        %v1984 = vpop.f32.mrf.mxu0
        %v1985 = vadd.f32 0.0, %v1984
        %v1986 = vpop.f32.mrf.mxu0
        %1987 = vmatprep.mubr.bf16.mxu0 0
        %1988 = vmatmul.mubr.bf16.gmra.mxu0 %v1945
        %v1989 = vpop.f32.mrf.mxu0
        %v1990 = vadd.f32 0.0, %v1989
        %v1991 = vpop.f32.mrf.mxu0
        %v1992 = vpop.f32.mrf.mxu0
        %v1993 = vadd.f32 0.0, %v1992
        %v1994 = vpop.f32.mrf.mxu0
        %1995 = vdwg.mxu0
        %v1996 = vadd.f32 %v1649, %v1982
        %v1997 = vadd.f32 %v1650, %v1985
        %v1998 = vadd.f32 %v1651, %v1990
        %v1999 = vadd.f32 %v1652, %v1993
        %v2000 = vmax.f32 %v1996, 0.0
        %v2001 = vmax.f32 %v1997, 0.0
        %v2002 = vmax.f32 %v1998, 0.0
        %v2003 = vmax.f32 %v1999, 0.0
        %v2004 = vpack.c.bf16 %v2001, %v2000
        %v2005 = vpack.c.bf16 %v2003, %v2002
        %v2006 = vld [vmem:[%s6] sm:$0xf]
        %v2007 = vld [vmem:[%s6 + $0x4] sm:$0xf]
        %v2008 = vld [vmem:[%s6 + $0x8] sm:$0xf]
        %v2009 = vld [vmem:[%s6 + $0xc] sm:$0xf]
        %v2010 = vld [vmem:[%s6 + $0x10] sm:$0xf]
        %v2011 = vld [vmem:[%s6 + $0x14] sm:$0xf]
        %v2012 = vld [vmem:[%s6 + $0x18] sm:$0xf]
        %v2013 = vld [vmem:[%s6 + $0x1c] sm:$0xf]
        %v2014 = vld [vmem:[%s6 + $0x20] sm:$0xf]
        %v2015 = vld [vmem:[%s6 + $0x24] sm:$0xf]
        %v2016 = vld [vmem:[%s6 + $0x28] sm:$0xf]
        %v2017 = vld [vmem:[%s6 + $0x2c] sm:$0xf]
        %v2018 = vld [vmem:[%s6 + $0x30] sm:$0xf]
        %v2019 = vld [vmem:[%s6 + $0x34] sm:$0xf]
        %v2020 = vld [vmem:[%s6 + $0x38] sm:$0xf]
        %v2021 = vld [vmem:[%s6 + $0x3c] sm:$0xf]
        %v2022 = vld [vmem:[%s7] sm:$0xff]
        %v2023 = vld [vmem:[%s7 + $0x8] sm:$0xff]
        %v2024 = vld [vmem:[%s7 + $0x10] sm:$0xff]
        %v2025 = vld [vmem:[%s7 + $0x18] sm:$0xff]
        %v2026 = vld [vmem:[#allocation12] sm:$0xf]
        %v2027 = vld [vmem:[#allocation12 + $0x4] sm:$0xf]
        %v2028 = vld [vmem:[#allocation12 + $0x8] sm:$0xf]
        %v2029 = vld [vmem:[#allocation12 + $0xc] sm:$0xf]
        %v2030 = vld [vmem:[#allocation12 + $0x10] sm:$0xf]
        %v2031 = vld [vmem:[#allocation12 + $0x14] sm:$0xf]
        %v2032 = vld [vmem:[#allocation12 + $0x18] sm:$0xf]
        %v2033 = vld [vmem:[#allocation12 + $0x1c] sm:$0xf]
        %v2035 = vsel %vm933, %v2004, 0
        %v2038 = vsel %vm933, %v2005, 0
        %2040 = vmatprep.subr.bf16.mxu0 0
        %2041 = vmatpush1.bf16.msra.mxu0 0
        %2042 = vmatprep.subr.bf16.mxu0 0
        %2043 = vmatpush1.bf16.msra.mxu0 0
        %2044 = vmatprep.subr.bf16.mxu0 0
        %2045 = vmatpush1.bf16.msra.mxu0 0
        %2046 = vmatprep.subr.bf16.mxu0 0
        %2047 = vmatpush1.bf16.msra.mxu0 0
        %2048 = vmatprep.subr.bf16.mxu0 0
        %2049 = vmatpush1.bf16.msra.mxu0 0
        %2050 = vmatprep.subr.bf16.mxu0 0
        %2051 = vmatpush1.bf16.msra.mxu0 0
        %2052 = vmatprep.subr.bf16.mxu0 0
        %2053 = vmatpush1.bf16.msra.mxu0 %v930
        %2054 = vmatprep.subr.bf16.mxu0 0
        %2055 = vmatpush1.bf16.msra.mxu0 %v929
        %2056 = vmatprep.subr.bf16.mxu0 0
        %2057 = vmatpush2.bf16.msra.mxu0 0
        %2058 = vmatprep.subr.bf16.mxu0 0
        %2059 = vmatpush2.bf16.msra.mxu0 0
        %2060 = vmatprep.subr.bf16.mxu0 0
        %2061 = vmatpush2.bf16.msra.mxu0 0
        %2062 = vmatprep.subr.bf16.mxu0 0
        %2063 = vmatpush2.bf16.msra.mxu0 0
        %2064 = vmatprep.subr.bf16.mxu0 0
        %2065 = vmatpush2.bf16.msra.mxu0 0
        %2066 = vmatprep.subr.bf16.mxu0 0
        %2067 = vmatpush2.bf16.msra.mxu0 0
        %2068 = vmatprep.subr.bf16.mxu0 0
        %2069 = vmatpush2.bf16.msra.mxu0 0
        %2070 = vmatprep.subr.bf16.mxu0 0
        %2071 = vmatpush2.bf16.msra.mxu0 0
        %2072 = vmatprep.mubr.bf16.mxu0 0
        %2073 = vmatmul.mubr.bf16.gmra.mxu0 %v2035
        %v2074 = vpop.f32.mrf.mxu0
        %v2075 = vadd.f32 0.0, %v2074
        %v2076 = vpop.f32.mrf.mxu0
        %v2077 = vpop.f32.mrf.mxu0
        %v2078 = vadd.f32 0.0, %v2077
        %v2079 = vpop.f32.mrf.mxu0
        %2080 = vmatprep.mubr.bf16.mxu0 0
        %2081 = vmatmul.mubr.bf16.gmra.mxu0 %v2038
        %v2082 = vpop.f32.mrf.mxu0
        %v2083 = vadd.f32 0.0, %v2082
        %v2084 = vpop.f32.mrf.mxu0
        %v2085 = vpop.f32.mrf.mxu0
        %v2086 = vadd.f32 0.0, %v2085
        %v2087 = vpop.f32.mrf.mxu0
        %2088 = vdwg.mxu0
        %v2089 = vpack.c.bf16 %v2078, %v2075
        %v2090 = vpack.c.bf16 %v2086, %v2083
        %2091 = vmatprep.subr.bf16.mxu0 0
        %2092 = vmatpush1.bf16.msra.mxu0 0
        %2093 = vmatprep.subr.bf16.mxu0 0
        %2094 = vmatpush1.bf16.msra.mxu0 0
        %2095 = vmatprep.subr.bf16.mxu0 0
        %2096 = vmatpush1.bf16.msra.mxu0 0
        %2097 = vmatprep.subr.bf16.mxu0 0
        %2098 = vmatpush1.bf16.msra.mxu0 0
        %2099 = vmatprep.subr.bf16.mxu0 0
        %2100 = vmatpush1.bf16.msra.mxu0 0
        %2101 = vmatprep.subr.bf16.mxu0 0
        %2102 = vmatpush1.bf16.msra.mxu0 0
        %2103 = vmatprep.subr.bf16.mxu0 0
        %2104 = vmatpush1.bf16.msra.mxu0 %v1000
        %2105 = vmatprep.subr.bf16.mxu0 0
        %2106 = vmatpush1.bf16.msra.mxu0 %v999
        %2107 = vmatprep.subr.bf16.mxu0 0
        %2108 = vmatpush2.bf16.msra.mxu0 0
        %2109 = vmatprep.subr.bf16.mxu0 0
        %2110 = vmatpush2.bf16.msra.mxu0 0
        %2111 = vmatprep.subr.bf16.mxu0 0
        %2112 = vmatpush2.bf16.msra.mxu0 0
        %2113 = vmatprep.subr.bf16.mxu0 0
        %2114 = vmatpush2.bf16.msra.mxu0 0
        %2115 = vmatprep.subr.bf16.mxu0 0
        %2116 = vmatpush2.bf16.msra.mxu0 0
        %2117 = vmatprep.subr.bf16.mxu0 0
        %2118 = vmatpush2.bf16.msra.mxu0 0
        %2119 = vmatprep.subr.bf16.mxu0 0
        %2120 = vmatpush2.bf16.msra.mxu0 0
        %2121 = vmatprep.subr.bf16.mxu0 0
        %2122 = vmatpush2.bf16.msra.mxu0 0
        %2123 = vmatprep.mubr.bf16.mxu0 0
        %2124 = vmatmul.mubr.bf16.gmra.mxu0 %v2035
        %v2125 = vpop.f32.mrf.mxu0
        %v2126 = vadd.f32 0.0, %v2125
        %v2127 = vpop.f32.mrf.mxu0
        %v2128 = vpop.f32.mrf.mxu0
        %v2129 = vadd.f32 0.0, %v2128
        %v2130 = vpop.f32.mrf.mxu0
        %2131 = vmatprep.mubr.bf16.mxu0 0
        %2132 = vmatmul.mubr.bf16.gmra.mxu0 %v2038
        %v2133 = vpop.f32.mrf.mxu0
        %v2134 = vadd.f32 0.0, %v2133
        %v2135 = vpop.f32.mrf.mxu0
        %v2136 = vpop.f32.mrf.mxu0
        %v2137 = vadd.f32 0.0, %v2136
        %v2138 = vpop.f32.mrf.mxu0
        %2139 = vdwg.mxu0
        %v2140 = vpack.c.bf16 %v2129, %v2126
        %v2141 = vpack.c.bf16 %v2137, %v2134
        %v2146 = vunpack.c.l.b16 %v2018
        %v2147 = vunpack.c.l.b16 %v2019
        %v2148 = vunpack.c.l.b16 %v2020
        %v2149 = vunpack.c.l.b16 %v2021
        %v2150 = vpack.c.b16 %v2147, %v2146
        %v2151 = vpack.c.b16 %v2149, %v2148
        %v2153 = vsel %vm933, %v2150, 0
        %v2156 = vsel %vm933, %v2151, 0
        %2158 = vmatprep.subr.bf16.mxu0 0
        %2159 = vmatpush1.bf16.msra.mxu0 0
        %2160 = vmatprep.subr.bf16.mxu0 0
        %2161 = vmatpush1.bf16.msra.mxu0 0
        %2162 = vmatprep.subr.bf16.mxu0 0
        %2163 = vmatpush1.bf16.msra.mxu0 0
        %2164 = vmatprep.subr.bf16.mxu0 0
        %2165 = vmatpush1.bf16.msra.mxu0 0
        %2166 = vmatprep.subr.bf16.mxu0 0
        %2167 = vmatpush1.bf16.msra.mxu0 0
        %2168 = vmatprep.subr.bf16.mxu0 0
        %2169 = vmatpush1.bf16.msra.mxu0 0
        %2170 = vmatprep.subr.bf16.mxu0 0
        %2171 = vmatpush1.bf16.msra.mxu0 %v2090
        %2172 = vmatprep.subr.bf16.mxu0 0
        %2173 = vmatpush1.bf16.msra.mxu0 %v2089
        %2174 = vmatprep.subr.bf16.mxu0 0
        %2175 = vmatpush2.bf16.msra.mxu0 0
        %2176 = vmatprep.subr.bf16.mxu0 0
        %2177 = vmatpush2.bf16.msra.mxu0 0
        %2178 = vmatprep.subr.bf16.mxu0 0
        %2179 = vmatpush2.bf16.msra.mxu0 0
        %2180 = vmatprep.subr.bf16.mxu0 0
        %2181 = vmatpush2.bf16.msra.mxu0 0
        %2182 = vmatprep.subr.bf16.mxu0 0
        %2183 = vmatpush2.bf16.msra.mxu0 0
        %2184 = vmatprep.subr.bf16.mxu0 0
        %2185 = vmatpush2.bf16.msra.mxu0 0
        %2186 = vmatprep.subr.bf16.mxu0 0
        %2187 = vmatpush2.bf16.msra.mxu0 0
        %2188 = vmatprep.subr.bf16.mxu0 0
        %2189 = vmatpush2.bf16.msra.mxu0 0
        %2190 = vmatprep.mubr.bf16.mxu0 0
        %2191 = vmatmul.mubr.bf16.gmra.mxu0 %v2153
        %v2192 = vpop.f32.mrf.mxu0
        %v2193 = vadd.f32 0.0, %v2192
        %v2194 = vpop.f32.mrf.mxu0
        %v2195 = vpop.f32.mrf.mxu0
        %v2196 = vadd.f32 0.0, %v2195
        %v2197 = vpop.f32.mrf.mxu0
        %2198 = vmatprep.mubr.bf16.mxu0 0
        %2199 = vmatmul.mubr.bf16.gmra.mxu0 %v2156
        %v2200 = vpop.f32.mrf.mxu0
        %v2201 = vadd.f32 0.0, %v2200
        %v2202 = vpop.f32.mrf.mxu0
        %v2203 = vpop.f32.mrf.mxu0
        %v2204 = vadd.f32 0.0, %v2203
        %v2205 = vpop.f32.mrf.mxu0
        %2206 = vdwg.mxu0
        %v2211 = vunpack.c.l.b16 %v2010
        %v2212 = vunpack.c.l.b16 %v2011
        %v2213 = vunpack.c.l.b16 %v2012
        %v2214 = vunpack.c.l.b16 %v2013
        %v2215 = vpack.c.b16 %v2212, %v2211
        %v2216 = vpack.c.b16 %v2214, %v2213
        %v2218 = vsel %vm933, %v2215, 0
        %v2221 = vsel %vm933, %v2216, 0
        %2223 = vmatprep.subr.bf16.mxu0 0
        %2224 = vmatpush1.bf16.msra.mxu0 0
        %2225 = vmatprep.subr.bf16.mxu0 0
        %2226 = vmatpush1.bf16.msra.mxu0 0
        %2227 = vmatprep.subr.bf16.mxu0 0
        %2228 = vmatpush1.bf16.msra.mxu0 0
        %2229 = vmatprep.subr.bf16.mxu0 0
        %2230 = vmatpush1.bf16.msra.mxu0 0
        %2231 = vmatprep.subr.bf16.mxu0 0
        %2232 = vmatpush1.bf16.msra.mxu0 0
        %2233 = vmatprep.subr.bf16.mxu0 0
        %2234 = vmatpush1.bf16.msra.mxu0 0
        %2235 = vmatprep.subr.bf16.mxu0 0
        %2236 = vmatpush1.bf16.msra.mxu0 %v2005
        %2237 = vmatprep.subr.bf16.mxu0 0
        %2238 = vmatpush1.bf16.msra.mxu0 %v2004
        %2239 = vmatprep.subr.bf16.mxu0 0
        %2240 = vmatpush2.bf16.msra.mxu0 0
        %2241 = vmatprep.subr.bf16.mxu0 0
        %2242 = vmatpush2.bf16.msra.mxu0 0
        %2243 = vmatprep.subr.bf16.mxu0 0
        %2244 = vmatpush2.bf16.msra.mxu0 0
        %2245 = vmatprep.subr.bf16.mxu0 0
        %2246 = vmatpush2.bf16.msra.mxu0 0
        %2247 = vmatprep.subr.bf16.mxu0 0
        %2248 = vmatpush2.bf16.msra.mxu0 0
        %2249 = vmatprep.subr.bf16.mxu0 0
        %2250 = vmatpush2.bf16.msra.mxu0 0
        %2251 = vmatprep.subr.bf16.mxu0 0
        %2252 = vmatpush2.bf16.msra.mxu0 0
        %2253 = vmatprep.subr.bf16.mxu0 0
        %2254 = vmatpush2.bf16.msra.mxu0 0
        %2255 = vmatprep.mubr.bf16.mxu0 0
        %2256 = vmatmul.mubr.bf16.gmra.mxu0 %v2218
        %v2257 = vpop.f32.mrf.mxu0
        %v2258 = vadd.f32 %v2193, %v2257
        %v2259 = vpop.f32.mrf.mxu0
        %v2260 = vpop.f32.mrf.mxu0
        %v2261 = vadd.f32 %v2196, %v2260
        %v2262 = vpop.f32.mrf.mxu0
        %2263 = vmatprep.mubr.bf16.mxu0 0
        %2264 = vmatmul.mubr.bf16.gmra.mxu0 %v2221
        %v2265 = vpop.f32.mrf.mxu0
        %v2266 = vadd.f32 %v2201, %v2265
        %v2267 = vpop.f32.mrf.mxu0
        %v2268 = vpop.f32.mrf.mxu0
        %v2269 = vadd.f32 %v2204, %v2268
        %v2270 = vpop.f32.mrf.mxu0
        %2271 = vdwg.mxu0
        %v2276 = vunpack.c.l.b16 %v2006
        %v2277 = vunpack.c.l.b16 %v2007
        %v2278 = vunpack.c.l.b16 %v2008
        %v2279 = vunpack.c.l.b16 %v2009
        %v2280 = vpack.c.b16 %v2277, %v2276
        %v2281 = vpack.c.b16 %v2279, %v2278
        %v2283 = vsel %vm933, %v2280, 0
        %v2286 = vsel %vm933, %v2281, 0
        %2288 = vmatprep.subr.bf16.mxu0 0
        %2289 = vmatpush1.bf16.msra.mxu0 0
        %2290 = vmatprep.subr.bf16.mxu0 0
        %2291 = vmatpush1.bf16.msra.mxu0 0
        %2292 = vmatprep.subr.bf16.mxu0 0
        %2293 = vmatpush1.bf16.msra.mxu0 0
        %2294 = vmatprep.subr.bf16.mxu0 0
        %2295 = vmatpush1.bf16.msra.mxu0 0
        %2296 = vmatprep.subr.bf16.mxu0 0
        %2297 = vmatpush1.bf16.msra.mxu0 0
        %2298 = vmatprep.subr.bf16.mxu0 0
        %2299 = vmatpush1.bf16.msra.mxu0 0
        %2300 = vmatprep.subr.bf16.mxu0 0
        %2301 = vmatpush1.bf16.msra.mxu0 %v2141
        %2302 = vmatprep.subr.bf16.mxu0 0
        %2303 = vmatpush1.bf16.msra.mxu0 %v2140
        %2304 = vmatprep.subr.bf16.mxu0 0
        %2305 = vmatpush2.bf16.msra.mxu0 0
        %2306 = vmatprep.subr.bf16.mxu0 0
        %2307 = vmatpush2.bf16.msra.mxu0 0
        %2308 = vmatprep.subr.bf16.mxu0 0
        %2309 = vmatpush2.bf16.msra.mxu0 0
        %2310 = vmatprep.subr.bf16.mxu0 0
        %2311 = vmatpush2.bf16.msra.mxu0 0
        %2312 = vmatprep.subr.bf16.mxu0 0
        %2313 = vmatpush2.bf16.msra.mxu0 0
        %2314 = vmatprep.subr.bf16.mxu0 0
        %2315 = vmatpush2.bf16.msra.mxu0 0
        %2316 = vmatprep.subr.bf16.mxu0 0
        %2317 = vmatpush2.bf16.msra.mxu0 0
        %2318 = vmatprep.subr.bf16.mxu0 0
        %2319 = vmatpush2.bf16.msra.mxu0 0
        %2320 = vmatprep.mubr.bf16.mxu0 0
        %2321 = vmatmul.mubr.bf16.gmra.mxu0 %v2283
        %v2322 = vpop.f32.mrf.mxu0
        %v2323 = vadd.f32 0.0, %v2322
        %v2324 = vpop.f32.mrf.mxu0
        %v2325 = vpop.f32.mrf.mxu0
        %v2326 = vadd.f32 0.0, %v2325
        %v2327 = vpop.f32.mrf.mxu0
        %2328 = vmatprep.mubr.bf16.mxu0 0
        %2329 = vmatmul.mubr.bf16.gmra.mxu0 %v2286
        %v2330 = vpop.f32.mrf.mxu0
        %v2331 = vadd.f32 0.0, %v2330
        %v2332 = vpop.f32.mrf.mxu0
        %v2333 = vpop.f32.mrf.mxu0
        %v2334 = vadd.f32 0.0, %v2333
        %v2335 = vpop.f32.mrf.mxu0
        %2336 = vdwg.mxu0
        %v2341 = vunpack.c.l.b16 %v2014
        %v2342 = vunpack.c.l.b16 %v2015
        %v2343 = vunpack.c.l.b16 %v2016
        %v2344 = vunpack.c.l.b16 %v2017
        %v2345 = vpack.c.b16 %v2342, %v2341
        %v2346 = vpack.c.b16 %v2344, %v2343
        %v2348 = vsel %vm933, %v2345, 0
        %v2351 = vsel %vm933, %v2346, 0
        %2353 = vmatprep.subr.bf16.mxu0 0
        %2354 = vmatpush1.bf16.msra.mxu0 0
        %2355 = vmatprep.subr.bf16.mxu0 0
        %2356 = vmatpush1.bf16.msra.mxu0 0
        %2357 = vmatprep.subr.bf16.mxu0 0
        %2358 = vmatpush1.bf16.msra.mxu0 0
        %2359 = vmatprep.subr.bf16.mxu0 0
        %2360 = vmatpush1.bf16.msra.mxu0 0
        %2361 = vmatprep.subr.bf16.mxu0 0
        %2362 = vmatpush1.bf16.msra.mxu0 0
        %2363 = vmatprep.subr.bf16.mxu0 0
        %2364 = vmatpush1.bf16.msra.mxu0 0
        %2365 = vmatprep.subr.bf16.mxu0 0
        %2366 = vmatpush1.bf16.msra.mxu0 %v2005
        %2367 = vmatprep.subr.bf16.mxu0 0
        %2368 = vmatpush1.bf16.msra.mxu0 %v2004
        %2369 = vmatprep.subr.bf16.mxu0 0
        %2370 = vmatpush2.bf16.msra.mxu0 0
        %2371 = vmatprep.subr.bf16.mxu0 0
        %2372 = vmatpush2.bf16.msra.mxu0 0
        %2373 = vmatprep.subr.bf16.mxu0 0
        %2374 = vmatpush2.bf16.msra.mxu0 0
        %2375 = vmatprep.subr.bf16.mxu0 0
        %2376 = vmatpush2.bf16.msra.mxu0 0
        %2377 = vmatprep.subr.bf16.mxu0 0
        %2378 = vmatpush2.bf16.msra.mxu0 0
        %2379 = vmatprep.subr.bf16.mxu0 0
        %2380 = vmatpush2.bf16.msra.mxu0 0
        %2381 = vmatprep.subr.bf16.mxu0 0
        %2382 = vmatpush2.bf16.msra.mxu0 0
        %2383 = vmatprep.subr.bf16.mxu0 0
        %2384 = vmatpush2.bf16.msra.mxu0 0
        %2385 = vmatprep.mubr.bf16.mxu0 0
        %2386 = vmatmul.mubr.bf16.gmra.mxu0 %v2348
        %v2387 = vpop.f32.mrf.mxu0
        %v2388 = vadd.f32 %v2323, %v2387
        %v2389 = vpop.f32.mrf.mxu0
        %v2390 = vpop.f32.mrf.mxu0
        %v2391 = vadd.f32 %v2326, %v2390
        %v2392 = vpop.f32.mrf.mxu0
        %2393 = vmatprep.mubr.bf16.mxu0 0
        %2394 = vmatmul.mubr.bf16.gmra.mxu0 %v2351
        %v2395 = vpop.f32.mrf.mxu0
        %v2396 = vadd.f32 %v2331, %v2395
        %v2397 = vpop.f32.mrf.mxu0
        %v2398 = vpop.f32.mrf.mxu0
        %v2399 = vadd.f32 %v2334, %v2398
        %v2400 = vpop.f32.mrf.mxu0
        %2401 = vdwg.mxu0
        %v2402 = vpack.c.bf16 %v2261, %v2258
        %v2403 = vpack.c.bf16 %v2269, %v2266
        %v2404 = vpack.c.bf16 %v2391, %v2388
        %v2405 = vpack.c.bf16 %v2399, %v2396
        %v2410 = vunpack.c.l.b16 %v2030
        %v2411 = vunpack.c.l.b16 %v2031
        %v2412 = vunpack.c.l.b16 %v2032
        %v2413 = vunpack.c.l.b16 %v2033
        %v2414 = vpack.c.b16 %v2411, %v2410
        %v2415 = vpack.c.b16 %v2413, %v2412
        %v2419 = vsel %vm933, %v2404, 0
        %v2422 = vsel %vm933, %v2405, 0
        %2424 = vmatprep.subr.bf16.mxu0 0
        %2425 = vmatpush1.bf16.msra.mxu0 0
        %2426 = vmatprep.subr.bf16.mxu0 0
        %2427 = vmatpush1.bf16.msra.mxu0 0
        %2428 = vmatprep.subr.bf16.mxu0 0
        %2429 = vmatpush1.bf16.msra.mxu0 0
        %2430 = vmatprep.subr.bf16.mxu0 0
        %2431 = vmatpush1.bf16.msra.mxu0 0
        %2432 = vmatprep.subr.bf16.mxu0 0
        %2433 = vmatpush1.bf16.msra.mxu0 0
        %2434 = vmatprep.subr.bf16.mxu0 0
        %2435 = vmatpush1.bf16.msra.mxu0 0
        %2436 = vmatprep.subr.bf16.mxu0 0
        %2437 = vmatpush1.bf16.msra.mxu0 %v2415
        %2438 = vmatprep.subr.bf16.mxu0 0
        %2439 = vmatpush1.bf16.msra.mxu0 %v2414
        %2440 = vmatprep.subr.bf16.mxu0 0
        %2441 = vmatpush2.bf16.msra.mxu0 0
        %2442 = vmatprep.subr.bf16.mxu0 0
        %2443 = vmatpush2.bf16.msra.mxu0 0
        %2444 = vmatprep.subr.bf16.mxu0 0
        %2445 = vmatpush2.bf16.msra.mxu0 0
        %2446 = vmatprep.subr.bf16.mxu0 0
        %2447 = vmatpush2.bf16.msra.mxu0 0
        %2448 = vmatprep.subr.bf16.mxu0 0
        %2449 = vmatpush2.bf16.msra.mxu0 0
        %2450 = vmatprep.subr.bf16.mxu0 0
        %2451 = vmatpush2.bf16.msra.mxu0 0
        %2452 = vmatprep.subr.bf16.mxu0 0
        %2453 = vmatpush2.bf16.msra.mxu0 0
        %2454 = vmatprep.subr.bf16.mxu0 0
        %2455 = vmatpush2.bf16.msra.mxu0 0
        %2456 = vmatprep.mubr.bf16.mxu0 0
        %2457 = vmatmul.mubr.bf16.gmra.mxu0 %v2419
        %v2458 = vpop.f32.mrf.mxu0
        %v2459 = vadd.f32 0.0, %v2458
        %v2460 = vpop.f32.mrf.mxu0
        %v2461 = vpop.f32.mrf.mxu0
        %v2462 = vadd.f32 0.0, %v2461
        %v2463 = vpop.f32.mrf.mxu0
        %2464 = vmatprep.mubr.bf16.mxu0 0
        %2465 = vmatmul.mubr.bf16.gmra.mxu0 %v2422
        %v2466 = vpop.f32.mrf.mxu0
        %v2467 = vadd.f32 0.0, %v2466
        %v2468 = vpop.f32.mrf.mxu0
        %v2469 = vpop.f32.mrf.mxu0
        %v2470 = vadd.f32 0.0, %v2469
        %v2471 = vpop.f32.mrf.mxu0
        %2472 = vdwg.mxu0
        %v2477 = vunpack.c.l.b16 %v2026
        %v2478 = vunpack.c.l.b16 %v2027
        %v2479 = vunpack.c.l.b16 %v2028
        %v2480 = vunpack.c.l.b16 %v2029
        %v2481 = vpack.c.b16 %v2478, %v2477
        %v2482 = vpack.c.b16 %v2480, %v2479
        %v2486 = vsel %vm933, %v2402, 0
        %v2489 = vsel %vm933, %v2403, 0
        %2491 = vmatprep.subr.bf16.mxu0 0
        %2492 = vmatpush1.bf16.msra.mxu0 0
        %2493 = vmatprep.subr.bf16.mxu0 0
        %2494 = vmatpush1.bf16.msra.mxu0 0
        %2495 = vmatprep.subr.bf16.mxu0 0
        %2496 = vmatpush1.bf16.msra.mxu0 0
        %2497 = vmatprep.subr.bf16.mxu0 0
        %2498 = vmatpush1.bf16.msra.mxu0 0
        %2499 = vmatprep.subr.bf16.mxu0 0
        %2500 = vmatpush1.bf16.msra.mxu0 0
        %2501 = vmatprep.subr.bf16.mxu0 0
        %2502 = vmatpush1.bf16.msra.mxu0 0
        %2503 = vmatprep.subr.bf16.mxu0 0
        %2504 = vmatpush1.bf16.msra.mxu0 %v2482
        %2505 = vmatprep.subr.bf16.mxu0 0
        %2506 = vmatpush1.bf16.msra.mxu0 %v2481
        %2507 = vmatprep.subr.bf16.mxu0 0
        %2508 = vmatpush2.bf16.msra.mxu0 0
        %2509 = vmatprep.subr.bf16.mxu0 0
        %2510 = vmatpush2.bf16.msra.mxu0 0
        %2511 = vmatprep.subr.bf16.mxu0 0
        %2512 = vmatpush2.bf16.msra.mxu0 0
        %2513 = vmatprep.subr.bf16.mxu0 0
        %2514 = vmatpush2.bf16.msra.mxu0 0
        %2515 = vmatprep.subr.bf16.mxu0 0
        %2516 = vmatpush2.bf16.msra.mxu0 0
        %2517 = vmatprep.subr.bf16.mxu0 0
        %2518 = vmatpush2.bf16.msra.mxu0 0
        %2519 = vmatprep.subr.bf16.mxu0 0
        %2520 = vmatpush2.bf16.msra.mxu0 0
        %2521 = vmatprep.subr.bf16.mxu0 0
        %2522 = vmatpush2.bf16.msra.mxu0 0
        %2523 = vmatprep.mubr.bf16.mxu0 0
        %2524 = vmatmul.mubr.bf16.gmra.mxu0 %v2486
        %v2525 = vpop.f32.mrf.mxu0
        %v2526 = vadd.f32 %v2459, %v2525
        %v2527 = vpop.f32.mrf.mxu0
        %v2528 = vpop.f32.mrf.mxu0
        %v2529 = vadd.f32 %v2462, %v2528
        %v2530 = vpop.f32.mrf.mxu0
        %2531 = vmatprep.mubr.bf16.mxu0 0
        %2532 = vmatmul.mubr.bf16.gmra.mxu0 %v2489
        %v2533 = vpop.f32.mrf.mxu0
        %v2534 = vadd.f32 %v2467, %v2533
        %v2535 = vpop.f32.mrf.mxu0
        %v2536 = vpop.f32.mrf.mxu0
        %v2537 = vadd.f32 %v2470, %v2536
        %v2538 = vpop.f32.mrf.mxu0
        %2539 = vdwg.mxu0
        %2541 = vset.pattern.permute.xlu0 0
        %2542 = vperm.xlu0 %2541, %v2022
        %v2543 = vpop.permute.xlu0 %2542
        %2546 = vset.pattern.permute.xlu0 0
        %2547 = vperm.xlu0 %2546, %v2023
        %v2548 = vpop.permute.xlu0 %2547
        %2551 = vset.pattern.permute.xlu0 0
        %2552 = vperm.xlu0 %2551, %v2024
        %v2553 = vpop.permute.xlu0 %2552
        %2556 = vset.pattern.permute.xlu0 0
        %2557 = vperm.xlu0 %2556, %v2025
        %v2558 = vpop.permute.xlu0 %2557
        %v2560 = vadd.f32 %v2526, %v2543
        %v2561 = vadd.f32 %v2529, %v2548
        %v2562 = vadd.f32 %v2534, %v2553
        %v2563 = vadd.f32 %v2537, %v2558
        %v2564 = vmax.f32 %v2560, 0.0
        %v2565 = vmax.f32 %v2561, 0.0
        %v2566 = vmax.f32 %v2562, 0.0
        %v2567 = vmax.f32 %v2563, 0.0
        %v2568 = vpack.c.bf16 %v2565, %v2564
        %v2569 = vpack.c.bf16 %v2567, %v2566
        %v2570 = vld [vmem:[#allocation14] sm:$0xf]
        %v2571 = vld [vmem:[#allocation14 + $0x4] sm:$0xf]
        %v2572 = vld [vmem:[#allocation14 + $0x8] sm:$0xf]
        %v2573 = vld [vmem:[#allocation14 + $0xc] sm:$0xf]
        %v2574 = vld [vmem:[#allocation14 + $0x10] sm:$0xf]
        %v2575 = vld [vmem:[#allocation14 + $0x14] sm:$0xf]
        %v2576 = vld [vmem:[#allocation14 + $0x18] sm:$0xf]
        %v2577 = vld [vmem:[#allocation14 + $0x1c] sm:$0xf]
        %v2578 = vld [vmem:[#allocation14 + $0x20] sm:$0xf]
        %v2579 = vld [vmem:[#allocation14 + $0x24] sm:$0xf]
        %v2580 = vld [vmem:[#allocation14 + $0x28] sm:$0xf]
        %v2581 = vld [vmem:[#allocation14 + $0x2c] sm:$0xf]
        %v2582 = vld [vmem:[#allocation14 + $0x30] sm:$0xf]
        %v2583 = vld [vmem:[#allocation14 + $0x34] sm:$0xf]
        %v2584 = vld [vmem:[#allocation14 + $0x38] sm:$0xf]
        %v2585 = vld [vmem:[#allocation14 + $0x3c] sm:$0xf]
        %v2586 = vld [vmem:[%s11] sm:$0xff]
        %v2587 = vld [vmem:[%s11 + $0x8] sm:$0xff]
        %v2588 = vld [vmem:[%s11 + $0x10] sm:$0xff]
        %v2589 = vld [vmem:[%s11 + $0x18] sm:$0xff]
        %v2590 = vld [vmem:[#allocation15] sm:$0xf]
        %v2591 = vld [vmem:[#allocation15 + $0x4] sm:$0xf]
        %v2592 = vld [vmem:[#allocation15 + $0x8] sm:$0xf]
        %v2593 = vld [vmem:[#allocation15 + $0xc] sm:$0xf]
        %v2594 = vld [vmem:[#allocation15 + $0x10] sm:$0xf]
        %v2595 = vld [vmem:[#allocation15 + $0x14] sm:$0xf]
        %v2596 = vld [vmem:[#allocation15 + $0x18] sm:$0xf]
        %v2597 = vld [vmem:[#allocation15 + $0x1c] sm:$0xf]
        %v2598 = vld [vmem:[#allocation15 + $0x20] sm:$0xf]
        %v2599 = vld [vmem:[#allocation15 + $0x24] sm:$0xf]
        %v2600 = vld [vmem:[#allocation15 + $0x28] sm:$0xf]
        %v2601 = vld [vmem:[#allocation15 + $0x2c] sm:$0xf]
        %v2602 = vld [vmem:[#allocation15 + $0x30] sm:$0xf]
        %v2603 = vld [vmem:[#allocation15 + $0x34] sm:$0xf]
        %v2604 = vld [vmem:[#allocation15 + $0x38] sm:$0xf]
        %v2605 = vld [vmem:[#allocation15 + $0x3c] sm:$0xf]
        %v2606 = vld [vmem:[#allocation17] sm:$0xf]
        %v2607 = vld [vmem:[#allocation17 + $0x4] sm:$0xf]
        %v2608 = vld [vmem:[#allocation17 + $0x8] sm:$0xf]
        %v2609 = vld [vmem:[#allocation17 + $0xc] sm:$0xf]
        %v2610 = vld [vmem:[#allocation17 + $0x10] sm:$0xf]
        %v2611 = vld [vmem:[#allocation17 + $0x14] sm:$0xf]
        %v2612 = vld [vmem:[#allocation17 + $0x18] sm:$0xf]
        %v2613 = vld [vmem:[#allocation17 + $0x1c] sm:$0xf]
        %v2614 = vld [vmem:[#allocation17 + $0x20] sm:$0xf]
        %v2615 = vld [vmem:[#allocation17 + $0x24] sm:$0xf]
        %v2616 = vld [vmem:[#allocation17 + $0x28] sm:$0xf]
        %v2617 = vld [vmem:[#allocation17 + $0x2c] sm:$0xf]
        %v2618 = vld [vmem:[#allocation17 + $0x30] sm:$0xf]
        %v2619 = vld [vmem:[#allocation17 + $0x34] sm:$0xf]
        %v2620 = vld [vmem:[#allocation17 + $0x38] sm:$0xf]
        %v2621 = vld [vmem:[#allocation17 + $0x3c] sm:$0xf]
        %v2630 = vunpack.c.l.b16 %v2590
        %v2631 = vunpack.c.l.b16 %v2591
        %v2632 = vunpack.c.l.b16 %v2592
        %v2633 = vunpack.c.l.b16 %v2593
        %v2634 = vunpack.c.l.b16 %v2594
        %v2635 = vunpack.c.l.b16 %v2595
        %v2636 = vunpack.c.l.b16 %v2596
        %v2637 = vunpack.c.l.b16 %v2597
        %v2638 = vpack.c.b16 %v2631, %v2630
        %v2639 = vpack.c.b16 %v2633, %v2632
        %v2640 = vpack.c.b16 %v2635, %v2634
        %v2641 = vpack.c.b16 %v2637, %v2636
        %vm2646 = vcmask 523264
        %v2648 = vsel %vm2646, %v2568, 0
        %v2651 = vsel %vm2646, %v2569, 0
        %2653 = vmatprep.subr.bf16.mxu0 0
        %2654 = vmatpush1.bf16.msra.mxu0 0
        %2655 = vmatprep.subr.bf16.mxu0 0
        %2656 = vmatpush1.bf16.msra.mxu0 0
        %2657 = vmatprep.subr.bf16.mxu0 0
        %2658 = vmatpush1.bf16.msra.mxu0 0
        %2659 = vmatprep.subr.bf16.mxu0 0
        %2660 = vmatpush1.bf16.msra.mxu0 0
        %2661 = vmatprep.subr.bf16.mxu0 0
        %2662 = vmatpush1.bf16.msra.mxu0 %v2641
        %2663 = vmatprep.subr.bf16.mxu0 0
        %2664 = vmatpush1.bf16.msra.mxu0 %v2640
        %2665 = vmatprep.subr.bf16.mxu0 0
        %2666 = vmatpush1.bf16.msra.mxu0 %v2639
        %2667 = vmatprep.subr.bf16.mxu0 0
        %2668 = vmatpush1.bf16.msra.mxu0 %v2638
        %2669 = vmatprep.subr.bf16.mxu0 0
        %2670 = vmatpush2.bf16.msra.mxu0 0
        %2671 = vmatprep.subr.bf16.mxu0 0
        %2672 = vmatpush2.bf16.msra.mxu0 0
        %2673 = vmatprep.subr.bf16.mxu0 0
        %2674 = vmatpush2.bf16.msra.mxu0 0
        %2675 = vmatprep.subr.bf16.mxu0 0
        %2676 = vmatpush2.bf16.msra.mxu0 0
        %2677 = vmatprep.subr.bf16.mxu0 0
        %2678 = vmatpush2.bf16.msra.mxu0 0
        %2679 = vmatprep.subr.bf16.mxu0 0
        %2680 = vmatpush2.bf16.msra.mxu0 0
        %2681 = vmatprep.subr.bf16.mxu0 0
        %2682 = vmatpush2.bf16.msra.mxu0 0
        %2683 = vmatprep.subr.bf16.mxu0 0
        %2684 = vmatpush2.bf16.msra.mxu0 0
        %2685 = vmatprep.mubr.bf16.mxu0 0
        %2686 = vmatmul.mubr.bf16.gmra.mxu0 %v2648
        %v2687 = vpop.f32.mrf.mxu0
        %v2688 = vadd.f32 0.0, %v2687
        %v2689 = vpop.f32.mrf.mxu0
        %v2690 = vpop.f32.mrf.mxu0
        %v2691 = vadd.f32 0.0, %v2690
        %v2692 = vpop.f32.mrf.mxu0
        %2693 = vmatprep.mubr.bf16.mxu0 0
        %2694 = vmatmul.mubr.bf16.gmra.mxu0 %v2651
        %v2695 = vpop.f32.mrf.mxu0
        %v2696 = vadd.f32 0.0, %v2695
        %v2697 = vpop.f32.mrf.mxu0
        %v2698 = vpop.f32.mrf.mxu0
        %v2699 = vadd.f32 0.0, %v2698
        %v2700 = vpop.f32.mrf.mxu0
        %2701 = vdwg.mxu0
        %v2702 = vpack.c.bf16 %v2691, %v2688
        %v2703 = vpack.c.bf16 %v2699, %v2696
        %v2712 = vunpack.c.l.b16 %v2598
        %v2713 = vunpack.c.l.b16 %v2599
        %v2714 = vunpack.c.l.b16 %v2600
        %v2715 = vunpack.c.l.b16 %v2601
        %v2716 = vunpack.c.l.b16 %v2602
        %v2717 = vunpack.c.l.b16 %v2603
        %v2718 = vunpack.c.l.b16 %v2604
        %v2719 = vunpack.c.l.b16 %v2605
        %v2720 = vpack.c.b16 %v2713, %v2712
        %v2721 = vpack.c.b16 %v2715, %v2714
        %v2722 = vpack.c.b16 %v2717, %v2716
        %v2723 = vpack.c.b16 %v2719, %v2718
        %2728 = vmatprep.subr.bf16.mxu0 0
        %2729 = vmatpush1.bf16.msra.mxu0 0
        %2730 = vmatprep.subr.bf16.mxu0 0
        %2731 = vmatpush1.bf16.msra.mxu0 0
        %2732 = vmatprep.subr.bf16.mxu0 0
        %2733 = vmatpush1.bf16.msra.mxu0 0
        %2734 = vmatprep.subr.bf16.mxu0 0
        %2735 = vmatpush1.bf16.msra.mxu0 0
        %2736 = vmatprep.subr.bf16.mxu0 0
        %2737 = vmatpush1.bf16.msra.mxu0 %v2723
        %2738 = vmatprep.subr.bf16.mxu0 0
        %2739 = vmatpush1.bf16.msra.mxu0 %v2722
        %2740 = vmatprep.subr.bf16.mxu0 0
        %2741 = vmatpush1.bf16.msra.mxu0 %v2721
        %2742 = vmatprep.subr.bf16.mxu0 0
        %2743 = vmatpush1.bf16.msra.mxu0 %v2720
        %2744 = vmatprep.subr.bf16.mxu0 0
        %2745 = vmatpush2.bf16.msra.mxu0 0
        %2746 = vmatprep.subr.bf16.mxu0 0
        %2747 = vmatpush2.bf16.msra.mxu0 0
        %2748 = vmatprep.subr.bf16.mxu0 0
        %2749 = vmatpush2.bf16.msra.mxu0 0
        %2750 = vmatprep.subr.bf16.mxu0 0
        %2751 = vmatpush2.bf16.msra.mxu0 0
        %2752 = vmatprep.subr.bf16.mxu0 0
        %2753 = vmatpush2.bf16.msra.mxu0 0
        %2754 = vmatprep.subr.bf16.mxu0 0
        %2755 = vmatpush2.bf16.msra.mxu0 0
        %2756 = vmatprep.subr.bf16.mxu0 0
        %2757 = vmatpush2.bf16.msra.mxu0 0
        %2758 = vmatprep.subr.bf16.mxu0 0
        %2759 = vmatpush2.bf16.msra.mxu0 0
        %2760 = vmatprep.mubr.bf16.mxu0 0
        %2761 = vmatmul.mubr.bf16.gmra.mxu0 %v2648
        %v2762 = vpop.f32.mrf.mxu0
        %v2763 = vadd.f32 0.0, %v2762
        %v2764 = vpop.f32.mrf.mxu0
        %v2765 = vpop.f32.mrf.mxu0
        %v2766 = vadd.f32 0.0, %v2765
        %v2767 = vpop.f32.mrf.mxu0
        %2768 = vmatprep.mubr.bf16.mxu0 0
        %2769 = vmatmul.mubr.bf16.gmra.mxu0 %v2651
        %v2770 = vpop.f32.mrf.mxu0
        %v2771 = vadd.f32 0.0, %v2770
        %v2772 = vpop.f32.mrf.mxu0
        %v2773 = vpop.f32.mrf.mxu0
        %v2774 = vadd.f32 0.0, %v2773
        %v2775 = vpop.f32.mrf.mxu0
        %2776 = vdwg.mxu0
        %v2777 = vpack.c.bf16 %v2766, %v2763
        %v2778 = vpack.c.bf16 %v2774, %v2771
        %v2783 = vunpack.c.l.b16 %v2582
        %v2784 = vunpack.c.l.b16 %v2583
        %v2785 = vunpack.c.l.b16 %v2584
        %v2786 = vunpack.c.l.b16 %v2585
        %v2787 = vpack.c.b16 %v2784, %v2783
        %v2788 = vpack.c.b16 %v2786, %v2785
        %v2790 = vsel %vm933, %v2787, 0
        %v2793 = vsel %vm933, %v2788, 0
        %2795 = vmatprep.subr.bf16.mxu0 0
        %2796 = vmatpush1.bf16.msra.mxu0 0
        %2797 = vmatprep.subr.bf16.mxu0 0
        %2798 = vmatpush1.bf16.msra.mxu0 0
        %2799 = vmatprep.subr.bf16.mxu0 0
        %2800 = vmatpush1.bf16.msra.mxu0 0
        %2801 = vmatprep.subr.bf16.mxu0 0
        %2802 = vmatpush1.bf16.msra.mxu0 0
        %2803 = vmatprep.subr.bf16.mxu0 0
        %2804 = vmatpush1.bf16.msra.mxu0 0
        %2805 = vmatprep.subr.bf16.mxu0 0
        %2806 = vmatpush1.bf16.msra.mxu0 0
        %2807 = vmatprep.subr.bf16.mxu0 0
        %2808 = vmatpush1.bf16.msra.mxu0 %v2703
        %2809 = vmatprep.subr.bf16.mxu0 0
        %2810 = vmatpush1.bf16.msra.mxu0 %v2702
        %2811 = vmatprep.subr.bf16.mxu0 0
        %2812 = vmatpush2.bf16.msra.mxu0 0
        %2813 = vmatprep.subr.bf16.mxu0 0
        %2814 = vmatpush2.bf16.msra.mxu0 0
        %2815 = vmatprep.subr.bf16.mxu0 0
        %2816 = vmatpush2.bf16.msra.mxu0 0
        %2817 = vmatprep.subr.bf16.mxu0 0
        %2818 = vmatpush2.bf16.msra.mxu0 0
        %2819 = vmatprep.subr.bf16.mxu0 0
        %2820 = vmatpush2.bf16.msra.mxu0 0
        %2821 = vmatprep.subr.bf16.mxu0 0
        %2822 = vmatpush2.bf16.msra.mxu0 0
        %2823 = vmatprep.subr.bf16.mxu0 0
        %2824 = vmatpush2.bf16.msra.mxu0 0
        %2825 = vmatprep.subr.bf16.mxu0 0
        %2826 = vmatpush2.bf16.msra.mxu0 0
        %2827 = vmatprep.mubr.bf16.mxu0 0
        %2828 = vmatmul.mubr.bf16.gmra.mxu0 %v2790
        %v2829 = vpop.f32.mrf.mxu0
        %v2830 = vadd.f32 0.0, %v2829
        %v2831 = vpop.f32.mrf.mxu0
        %v2832 = vpop.f32.mrf.mxu0
        %v2833 = vadd.f32 0.0, %v2832
        %v2834 = vpop.f32.mrf.mxu0
        %2835 = vmatprep.mubr.bf16.mxu0 0
        %2836 = vmatmul.mubr.bf16.gmra.mxu0 %v2793
        %v2837 = vpop.f32.mrf.mxu0
        %v2838 = vadd.f32 0.0, %v2837
        %v2839 = vpop.f32.mrf.mxu0
        %v2840 = vpop.f32.mrf.mxu0
        %v2841 = vadd.f32 0.0, %v2840
        %v2842 = vpop.f32.mrf.mxu0
        %2843 = vdwg.mxu0
        %v2848 = vunpack.c.l.b16 %v2574
        %v2849 = vunpack.c.l.b16 %v2575
        %v2850 = vunpack.c.l.b16 %v2576
        %v2851 = vunpack.c.l.b16 %v2577
        %v2852 = vpack.c.b16 %v2849, %v2848
        %v2853 = vpack.c.b16 %v2851, %v2850
        %v2855 = vsel %vm933, %v2852, 0
        %v2858 = vsel %vm933, %v2853, 0
        %2860 = vmatprep.subr.bf16.mxu0 0
        %2861 = vmatpush1.bf16.msra.mxu0 0
        %2862 = vmatprep.subr.bf16.mxu0 0
        %2863 = vmatpush1.bf16.msra.mxu0 0
        %2864 = vmatprep.subr.bf16.mxu0 0
        %2865 = vmatpush1.bf16.msra.mxu0 0
        %2866 = vmatprep.subr.bf16.mxu0 0
        %2867 = vmatpush1.bf16.msra.mxu0 0
        %2868 = vmatprep.subr.bf16.mxu0 0
        %2869 = vmatpush1.bf16.msra.mxu0 0
        %2870 = vmatprep.subr.bf16.mxu0 0
        %2871 = vmatpush1.bf16.msra.mxu0 0
        %2872 = vmatprep.subr.bf16.mxu0 0
        %2873 = vmatpush1.bf16.msra.mxu0 %v2569
        %2874 = vmatprep.subr.bf16.mxu0 0
        %2875 = vmatpush1.bf16.msra.mxu0 %v2568
        %2876 = vmatprep.subr.bf16.mxu0 0
        %2877 = vmatpush2.bf16.msra.mxu0 0
        %2878 = vmatprep.subr.bf16.mxu0 0
        %2879 = vmatpush2.bf16.msra.mxu0 0
        %2880 = vmatprep.subr.bf16.mxu0 0
        %2881 = vmatpush2.bf16.msra.mxu0 0
        %2882 = vmatprep.subr.bf16.mxu0 0
        %2883 = vmatpush2.bf16.msra.mxu0 0
        %2884 = vmatprep.subr.bf16.mxu0 0
        %2885 = vmatpush2.bf16.msra.mxu0 0
        %2886 = vmatprep.subr.bf16.mxu0 0
        %2887 = vmatpush2.bf16.msra.mxu0 0
        %2888 = vmatprep.subr.bf16.mxu0 0
        %2889 = vmatpush2.bf16.msra.mxu0 0
        %2890 = vmatprep.subr.bf16.mxu0 0
        %2891 = vmatpush2.bf16.msra.mxu0 0
        %2892 = vmatprep.mubr.bf16.mxu0 0
        %2893 = vmatmul.mubr.bf16.gmra.mxu0 %v2855
        %v2894 = vpop.f32.mrf.mxu0
        %v2895 = vadd.f32 %v2830, %v2894
        %v2896 = vpop.f32.mrf.mxu0
        %v2897 = vpop.f32.mrf.mxu0
        %v2898 = vadd.f32 %v2833, %v2897
        %v2899 = vpop.f32.mrf.mxu0
        %2900 = vmatprep.mubr.bf16.mxu0 0
        %2901 = vmatmul.mubr.bf16.gmra.mxu0 %v2858
        %v2902 = vpop.f32.mrf.mxu0
        %v2903 = vadd.f32 %v2838, %v2902
        %v2904 = vpop.f32.mrf.mxu0
        %v2905 = vpop.f32.mrf.mxu0
        %v2906 = vadd.f32 %v2841, %v2905
        %v2907 = vpop.f32.mrf.mxu0
        %2908 = vdwg.mxu0
        %v2913 = vunpack.c.l.b16 %v2570
        %v2914 = vunpack.c.l.b16 %v2571
        %v2915 = vunpack.c.l.b16 %v2572
        %v2916 = vunpack.c.l.b16 %v2573
        %v2917 = vpack.c.b16 %v2914, %v2913
        %v2918 = vpack.c.b16 %v2916, %v2915
        %v2920 = vsel %vm933, %v2917, 0
        %v2923 = vsel %vm933, %v2918, 0
        %2925 = vmatprep.subr.bf16.mxu0 0
        %2926 = vmatpush1.bf16.msra.mxu0 0
        %2927 = vmatprep.subr.bf16.mxu0 0
        %2928 = vmatpush1.bf16.msra.mxu0 0
        %2929 = vmatprep.subr.bf16.mxu0 0
        %2930 = vmatpush1.bf16.msra.mxu0 0
        %2931 = vmatprep.subr.bf16.mxu0 0
        %2932 = vmatpush1.bf16.msra.mxu0 0
        %2933 = vmatprep.subr.bf16.mxu0 0
        %2934 = vmatpush1.bf16.msra.mxu0 0
        %2935 = vmatprep.subr.bf16.mxu0 0
        %2936 = vmatpush1.bf16.msra.mxu0 0
        %2937 = vmatprep.subr.bf16.mxu0 0
        %2938 = vmatpush1.bf16.msra.mxu0 %v2778
        %2939 = vmatprep.subr.bf16.mxu0 0
        %2940 = vmatpush1.bf16.msra.mxu0 %v2777
        %2941 = vmatprep.subr.bf16.mxu0 0
        %2942 = vmatpush2.bf16.msra.mxu0 0
        %2943 = vmatprep.subr.bf16.mxu0 0
        %2944 = vmatpush2.bf16.msra.mxu0 0
        %2945 = vmatprep.subr.bf16.mxu0 0
        %2946 = vmatpush2.bf16.msra.mxu0 0
        %2947 = vmatprep.subr.bf16.mxu0 0
        %2948 = vmatpush2.bf16.msra.mxu0 0
        %2949 = vmatprep.subr.bf16.mxu0 0
        %2950 = vmatpush2.bf16.msra.mxu0 0
        %2951 = vmatprep.subr.bf16.mxu0 0
        %2952 = vmatpush2.bf16.msra.mxu0 0
        %2953 = vmatprep.subr.bf16.mxu0 0
        %2954 = vmatpush2.bf16.msra.mxu0 0
        %2955 = vmatprep.subr.bf16.mxu0 0
        %2956 = vmatpush2.bf16.msra.mxu0 0
        %2957 = vmatprep.mubr.bf16.mxu0 0
        %2958 = vmatmul.mubr.bf16.gmra.mxu0 %v2920
        %v2959 = vpop.f32.mrf.mxu0
        %v2960 = vadd.f32 0.0, %v2959
        %v2961 = vpop.f32.mrf.mxu0
        %v2962 = vpop.f32.mrf.mxu0
        %v2963 = vadd.f32 0.0, %v2962
        %v2964 = vpop.f32.mrf.mxu0
        %2965 = vmatprep.mubr.bf16.mxu0 0
        %2966 = vmatmul.mubr.bf16.gmra.mxu0 %v2923
        %v2967 = vpop.f32.mrf.mxu0
        %v2968 = vadd.f32 0.0, %v2967
        %v2969 = vpop.f32.mrf.mxu0
        %v2970 = vpop.f32.mrf.mxu0
        %v2971 = vadd.f32 0.0, %v2970
        %v2972 = vpop.f32.mrf.mxu0
        %2973 = vdwg.mxu0
        %v2978 = vunpack.c.l.b16 %v2578
        %v2979 = vunpack.c.l.b16 %v2579
        %v2980 = vunpack.c.l.b16 %v2580
        %v2981 = vunpack.c.l.b16 %v2581
        %v2982 = vpack.c.b16 %v2979, %v2978
        %v2983 = vpack.c.b16 %v2981, %v2980
        %v2985 = vsel %vm933, %v2982, 0
        %v2988 = vsel %vm933, %v2983, 0
        %2990 = vmatprep.subr.bf16.mxu0 0
        %2991 = vmatpush1.bf16.msra.mxu0 0
        %2992 = vmatprep.subr.bf16.mxu0 0
        %2993 = vmatpush1.bf16.msra.mxu0 0
        %2994 = vmatprep.subr.bf16.mxu0 0
        %2995 = vmatpush1.bf16.msra.mxu0 0
        %2996 = vmatprep.subr.bf16.mxu0 0
        %2997 = vmatpush1.bf16.msra.mxu0 0
        %2998 = vmatprep.subr.bf16.mxu0 0
        %2999 = vmatpush1.bf16.msra.mxu0 0
        %3000 = vmatprep.subr.bf16.mxu0 0
        %3001 = vmatpush1.bf16.msra.mxu0 0
        %3002 = vmatprep.subr.bf16.mxu0 0
        %3003 = vmatpush1.bf16.msra.mxu0 %v2569
        %3004 = vmatprep.subr.bf16.mxu0 0
        %3005 = vmatpush1.bf16.msra.mxu0 %v2568
        %3006 = vmatprep.subr.bf16.mxu0 0
        %3007 = vmatpush2.bf16.msra.mxu0 0
        %3008 = vmatprep.subr.bf16.mxu0 0
        %3009 = vmatpush2.bf16.msra.mxu0 0
        %3010 = vmatprep.subr.bf16.mxu0 0
        %3011 = vmatpush2.bf16.msra.mxu0 0
        %3012 = vmatprep.subr.bf16.mxu0 0
        %3013 = vmatpush2.bf16.msra.mxu0 0
        %3014 = vmatprep.subr.bf16.mxu0 0
        %3015 = vmatpush2.bf16.msra.mxu0 0
        %3016 = vmatprep.subr.bf16.mxu0 0
        %3017 = vmatpush2.bf16.msra.mxu0 0
        %3018 = vmatprep.subr.bf16.mxu0 0
        %3019 = vmatpush2.bf16.msra.mxu0 0
        %3020 = vmatprep.subr.bf16.mxu0 0
        %3021 = vmatpush2.bf16.msra.mxu0 0
        %3022 = vmatprep.mubr.bf16.mxu0 0
        %3023 = vmatmul.mubr.bf16.gmra.mxu0 %v2985
        %v3024 = vpop.f32.mrf.mxu0
        %v3025 = vadd.f32 %v2960, %v3024
        %v3026 = vpop.f32.mrf.mxu0
        %v3027 = vpop.f32.mrf.mxu0
        %v3028 = vadd.f32 %v2963, %v3027
        %v3029 = vpop.f32.mrf.mxu0
        %3030 = vmatprep.mubr.bf16.mxu0 0
        %3031 = vmatmul.mubr.bf16.gmra.mxu0 %v2988
        %v3032 = vpop.f32.mrf.mxu0
        %v3033 = vadd.f32 %v2968, %v3032
        %v3034 = vpop.f32.mrf.mxu0
        %v3035 = vpop.f32.mrf.mxu0
        %v3036 = vadd.f32 %v2971, %v3035
        %v3037 = vpop.f32.mrf.mxu0
        %3038 = vdwg.mxu0
        %v3039 = vpack.c.bf16 %v2898, %v2895
        %v3040 = vpack.c.bf16 %v2906, %v2903
        %v3041 = vpack.c.bf16 %v3028, %v3025
        %v3042 = vpack.c.bf16 %v3036, %v3033
        %v3051 = vunpack.c.l.b16 %v2614
        %v3052 = vunpack.c.l.b16 %v2615
        %v3053 = vunpack.c.l.b16 %v2616
        %v3054 = vunpack.c.l.b16 %v2617
        %v3055 = vunpack.c.l.b16 %v2618
        %v3056 = vunpack.c.l.b16 %v2619
        %v3057 = vunpack.c.l.b16 %v2620
        %v3058 = vunpack.c.l.b16 %v2621
        %v3059 = vpack.c.b16 %v3052, %v3051
        %v3060 = vpack.c.b16 %v3054, %v3053
        %v3061 = vpack.c.b16 %v3056, %v3055
        %v3062 = vpack.c.b16 %v3058, %v3057
        %v3068 = vsel %vm2646, %v3041, 0
        %v3071 = vsel %vm2646, %v3042, 0
        %3073 = vmatprep.subr.bf16.mxu0 0
        %3074 = vmatpush1.bf16.msra.mxu0 0
        %3075 = vmatprep.subr.bf16.mxu0 0
        %3076 = vmatpush1.bf16.msra.mxu0 0
        %3077 = vmatprep.subr.bf16.mxu0 0
        %3078 = vmatpush1.bf16.msra.mxu0 0
        %3079 = vmatprep.subr.bf16.mxu0 0
        %3080 = vmatpush1.bf16.msra.mxu0 0
        %3081 = vmatprep.subr.bf16.mxu0 0
        %3082 = vmatpush1.bf16.msra.mxu0 %v3062
        %3083 = vmatprep.subr.bf16.mxu0 0
        %3084 = vmatpush1.bf16.msra.mxu0 %v3061
        %3085 = vmatprep.subr.bf16.mxu0 0
        %3086 = vmatpush1.bf16.msra.mxu0 %v3060
        %3087 = vmatprep.subr.bf16.mxu0 0
        %3088 = vmatpush1.bf16.msra.mxu0 %v3059
        %3089 = vmatprep.subr.bf16.mxu0 0
        %3090 = vmatpush2.bf16.msra.mxu0 0
        %3091 = vmatprep.subr.bf16.mxu0 0
        %3092 = vmatpush2.bf16.msra.mxu0 0
        %3093 = vmatprep.subr.bf16.mxu0 0
        %3094 = vmatpush2.bf16.msra.mxu0 0
        %3095 = vmatprep.subr.bf16.mxu0 0
        %3096 = vmatpush2.bf16.msra.mxu0 0
        %3097 = vmatprep.subr.bf16.mxu0 0
        %3098 = vmatpush2.bf16.msra.mxu0 0
        %3099 = vmatprep.subr.bf16.mxu0 0
        %3100 = vmatpush2.bf16.msra.mxu0 0
        %3101 = vmatprep.subr.bf16.mxu0 0
        %3102 = vmatpush2.bf16.msra.mxu0 0
        %3103 = vmatprep.subr.bf16.mxu0 0
        %3104 = vmatpush2.bf16.msra.mxu0 0
        %3105 = vmatprep.mubr.bf16.mxu0 0
        %3106 = vmatmul.mubr.bf16.gmra.mxu0 %v3068
        %v3107 = vpop.f32.mrf.mxu0
        %v3108 = vadd.f32 0.0, %v3107
        %v3109 = vpop.f32.mrf.mxu0
        %v3110 = vpop.f32.mrf.mxu0
        %v3111 = vadd.f32 0.0, %v3110
        %v3112 = vpop.f32.mrf.mxu0
        %3113 = vmatprep.mubr.bf16.mxu0 0
        %3114 = vmatmul.mubr.bf16.gmra.mxu0 %v3071
        %v3115 = vpop.f32.mrf.mxu0
        %v3116 = vadd.f32 0.0, %v3115
        %v3117 = vpop.f32.mrf.mxu0
        %v3118 = vpop.f32.mrf.mxu0
        %v3119 = vadd.f32 0.0, %v3118
        %v3120 = vpop.f32.mrf.mxu0
        %3121 = vdwg.mxu0
        %v3130 = vunpack.c.l.b16 %v2606
        %v3131 = vunpack.c.l.b16 %v2607
        %v3132 = vunpack.c.l.b16 %v2608
        %v3133 = vunpack.c.l.b16 %v2609
        %v3134 = vunpack.c.l.b16 %v2610
        %v3135 = vunpack.c.l.b16 %v2611
        %v3136 = vunpack.c.l.b16 %v2612
        %v3137 = vunpack.c.l.b16 %v2613
        %v3138 = vpack.c.b16 %v3131, %v3130
        %v3139 = vpack.c.b16 %v3133, %v3132
        %v3140 = vpack.c.b16 %v3135, %v3134
        %v3141 = vpack.c.b16 %v3137, %v3136
        %v3147 = vsel %vm2646, %v3039, 0
        %v3150 = vsel %vm2646, %v3040, 0
        %3152 = vmatprep.subr.bf16.mxu0 0
        %3153 = vmatpush1.bf16.msra.mxu0 0
        %3154 = vmatprep.subr.bf16.mxu0 0
        %3155 = vmatpush1.bf16.msra.mxu0 0
        %3156 = vmatprep.subr.bf16.mxu0 0
        %3157 = vmatpush1.bf16.msra.mxu0 0
        %3158 = vmatprep.subr.bf16.mxu0 0
        %3159 = vmatpush1.bf16.msra.mxu0 0
        %3160 = vmatprep.subr.bf16.mxu0 0
        %3161 = vmatpush1.bf16.msra.mxu0 %v3141
        %3162 = vmatprep.subr.bf16.mxu0 0
        %3163 = vmatpush1.bf16.msra.mxu0 %v3140
        %3164 = vmatprep.subr.bf16.mxu0 0
        %3165 = vmatpush1.bf16.msra.mxu0 %v3139
        %3166 = vmatprep.subr.bf16.mxu0 0
        %3167 = vmatpush1.bf16.msra.mxu0 %v3138
        %3168 = vmatprep.subr.bf16.mxu0 0
        %3169 = vmatpush2.bf16.msra.mxu0 0
        %3170 = vmatprep.subr.bf16.mxu0 0
        %3171 = vmatpush2.bf16.msra.mxu0 0
        %3172 = vmatprep.subr.bf16.mxu0 0
        %3173 = vmatpush2.bf16.msra.mxu0 0
        %3174 = vmatprep.subr.bf16.mxu0 0
        %3175 = vmatpush2.bf16.msra.mxu0 0
        %3176 = vmatprep.subr.bf16.mxu0 0
        %3177 = vmatpush2.bf16.msra.mxu0 0
        %3178 = vmatprep.subr.bf16.mxu0 0
        %3179 = vmatpush2.bf16.msra.mxu0 0
        %3180 = vmatprep.subr.bf16.mxu0 0
        %3181 = vmatpush2.bf16.msra.mxu0 0
        %3182 = vmatprep.subr.bf16.mxu0 0
        %3183 = vmatpush2.bf16.msra.mxu0 0
        %3184 = vmatprep.mubr.bf16.mxu0 0
        %3185 = vmatmul.mubr.bf16.gmra.mxu0 %v3147
        %v3186 = vpop.f32.mrf.mxu0
        %v3187 = vadd.f32 %v3108, %v3186
        %v3188 = vpop.f32.mrf.mxu0
        %v3189 = vpop.f32.mrf.mxu0
        %v3190 = vadd.f32 %v3111, %v3189
        %v3191 = vpop.f32.mrf.mxu0
        %3192 = vmatprep.mubr.bf16.mxu0 0
        %3193 = vmatmul.mubr.bf16.gmra.mxu0 %v3150
        %v3194 = vpop.f32.mrf.mxu0
        %v3195 = vadd.f32 %v3116, %v3194
        %v3196 = vpop.f32.mrf.mxu0
        %v3197 = vpop.f32.mrf.mxu0
        %v3198 = vadd.f32 %v3119, %v3197
        %v3199 = vpop.f32.mrf.mxu0
        %3200 = vdwg.mxu0
        %3202 = vset.pattern.permute.xlu0 0
        %3203 = vperm.xlu0 %3202, %v2586
        %v3204 = vpop.permute.xlu0 %3203
        %3207 = vset.pattern.permute.xlu0 0
        %3208 = vperm.xlu0 %3207, %v2587
        %v3209 = vpop.permute.xlu0 %3208
        %3212 = vset.pattern.permute.xlu0 0
        %3213 = vperm.xlu0 %3212, %v2588
        %v3214 = vpop.permute.xlu0 %3213
        %3217 = vset.pattern.permute.xlu0 0
        %3218 = vperm.xlu0 %3217, %v2589
        %v3219 = vpop.permute.xlu0 %3218
        %v3221 = vadd.f32 %v3187, %v3204
        %v3222 = vadd.f32 %v3190, %v3209
        %v3223 = vadd.f32 %v3195, %v3214
        %v3224 = vadd.f32 %v3198, %v3219
        %v3225 = vmax.f32 %v3221, 0.0
        %v3226 = vmax.f32 %v3222, 0.0
        %v3227 = vmax.f32 %v3223, 0.0
        %v3228 = vmax.f32 %v3224, 0.0
        %v3229 = vpack.c.bf16 %v3226, %v3225
        %v3230 = vpack.c.bf16 %v3228, %v3227
        %v3231 = vld [vmem:[#allocation18] sm:$0xf]
        %v3232 = vld [vmem:[#allocation18 + $0x4] sm:$0xf]
        %v3233 = vld [vmem:[#allocation18 + $0x8] sm:$0xf]
        %v3234 = vld [vmem:[#allocation18 + $0xc] sm:$0xf]
        %v3235 = vld [vmem:[#allocation18 + $0x10] sm:$0xf]
        %v3236 = vld [vmem:[#allocation18 + $0x14] sm:$0xf]
        %v3237 = vld [vmem:[#allocation18 + $0x18] sm:$0xf]
        %v3238 = vld [vmem:[#allocation18 + $0x1c] sm:$0xf]
        %v3239 = vld [vmem:[%s15] sm:$0xff]
        %v3240 = vld [vmem:[%s15 + $0x8] sm:$0xff]
        %v3241 = vld [vmem:[%s16] sm:$0xf]
        %v3242 = vld [vmem:[%s16 + $0x4] sm:$0xf]
        %v3243 = vld [vmem:[%s16 + $0x8] sm:$0xf]
        %v3244 = vld [vmem:[%s16 + $0xc] sm:$0xf]
        %v3245 = vld [vmem:[%s16 + $0x10] sm:$0xf]
        %v3246 = vld [vmem:[%s16 + $0x14] sm:$0xf]
        %v3247 = vld [vmem:[%s16 + $0x18] sm:$0xf]
        %v3248 = vld [vmem:[%s16 + $0x1c] sm:$0xf]
        %v3249 = vld [vmem:[%s16 + $0x20] sm:$0xf]
        %v3250 = vld [vmem:[%s16 + $0x24] sm:$0xf]
        %v3251 = vld [vmem:[%s16 + $0x28] sm:$0xf]
        %v3252 = vld [vmem:[%s16 + $0x2c] sm:$0xf]
        %v3253 = vld [vmem:[%s16 + $0x30] sm:$0xf]
        %v3254 = vld [vmem:[%s16 + $0x34] sm:$0xf]
        %v3255 = vld [vmem:[%s16 + $0x38] sm:$0xf]
        %v3256 = vld [vmem:[%s16 + $0x3c] sm:$0xf]
        %v3257 = vld [vmem:[%s16 + $0x40] sm:$0xf]
        %v3258 = vld [vmem:[%s16 + $0x44] sm:$0xf]
        %v3259 = vld [vmem:[%s16 + $0x48] sm:$0xf]
        %v3260 = vld [vmem:[%s16 + $0x4c] sm:$0xf]
        %v3261 = vld [vmem:[%s16 + $0x50] sm:$0xf]
        %v3262 = vld [vmem:[%s16 + $0x54] sm:$0xf]
        %v3263 = vld [vmem:[%s16 + $0x58] sm:$0xf]
        %v3264 = vld [vmem:[%s16 + $0x5c] sm:$0xf]
        %v3265 = vld [vmem:[%s16 + $0x60] sm:$0xf]
        %v3266 = vld [vmem:[%s16 + $0x64] sm:$0xf]
        %v3267 = vld [vmem:[%s16 + $0x68] sm:$0xf]
        %v3268 = vld [vmem:[%s16 + $0x6c] sm:$0xf]
        %v3269 = vld [vmem:[%s16 + $0x70] sm:$0xf]
        %v3270 = vld [vmem:[%s16 + $0x74] sm:$0xf]
        %v3271 = vld [vmem:[%s16 + $0x78] sm:$0xf]
        %v3272 = vld [vmem:[%s16 + $0x7c] sm:$0xf]
        %v3273 = vld [vmem:[#allocation20] sm:$0xff]
        %v3274 = vld [vmem:[#allocation20 + $0x8] sm:$0xff]
        %v3275 = vld [vmem:[#allocation20 + $0x10] sm:$0xff]
        %v3276 = vld [vmem:[#allocation20 + $0x18] sm:$0xff]
        %v3277 = vld [vmem:[#allocation20 + $0x20] sm:$0xff]
        %v3278 = vld [vmem:[#allocation20 + $0x28] sm:$0xff]
        %v3279 = vld [vmem:[#allocation20 + $0x30] sm:$0xff]
        %v3280 = vld [vmem:[#allocation20 + $0x38] sm:$0xff]
        %v3281 = vld [vmem:[#allocation20 + $0x40] sm:$0xff]
        %v3282 = vld [vmem:[#allocation20 + $0x48] sm:$0xff]
        %v3283 = vld [vmem:[#allocation20 + $0x50] sm:$0xff]
        %v3284 = vld [vmem:[#allocation20 + $0x58] sm:$0xff]
        %v3285 = vld [vmem:[#allocation20 + $0x60] sm:$0xff]
        %v3286 = vld [vmem:[#allocation20 + $0x68] sm:$0xff]
        %v3287 = vld [vmem:[#allocation20 + $0x70] sm:$0xff]
        %v3288 = vld [vmem:[#allocation20 + $0x78] sm:$0xff]
        %v3289 = vld [vmem:[#allocation20 + $0x80] sm:$0xff]
        %v3290 = vld [vmem:[#allocation20 + $0x88] sm:$0xff]
        %v3291 = vld [vmem:[#allocation20 + $0x90] sm:$0xff]
        %v3292 = vld [vmem:[#allocation20 + $0x98] sm:$0xff]
        %v3293 = vld [vmem:[#allocation20 + $0xa0] sm:$0xff]
        %v3294 = vld [vmem:[#allocation20 + $0xa8] sm:$0xff]
        %v3295 = vld [vmem:[#allocation20 + $0xb0] sm:$0xff]
        %v3296 = vld [vmem:[#allocation20 + $0xb8] sm:$0xff]
        %v3297 = vld [vmem:[#allocation20 + $0xc0] sm:$0xff]
        %v3298 = vld [vmem:[#allocation20 + $0xc8] sm:$0xff]
        %v3299 = vld [vmem:[#allocation20 + $0xd0] sm:$0xff]
        %v3300 = vld [vmem:[#allocation20 + $0xd8] sm:$0xff]
        %v3301 = vld [vmem:[#allocation20 + $0xe0] sm:$0xff]
        %v3302 = vld [vmem:[#allocation20 + $0xe8] sm:$0xff]
        %v3303 = vld [vmem:[#allocation20 + $0xf0] sm:$0xff]
        %v3304 = vld [vmem:[#allocation20 + $0xf8] sm:$0xff]
        %v3321 = vunpack.c.l.b16 %v3241
        %v3322 = vunpack.c.l.b16 %v3242
        %v3323 = vunpack.c.l.b16 %v3243
        %v3324 = vunpack.c.l.b16 %v3244
        %v3325 = vunpack.c.l.b16 %v3245
        %v3326 = vunpack.c.l.b16 %v3246
        %v3327 = vunpack.c.l.b16 %v3247
        %v3328 = vunpack.c.l.b16 %v3248
        %v3329 = vunpack.c.l.b16 %v3249
        %v3330 = vunpack.c.l.b16 %v3250
        %v3331 = vunpack.c.l.b16 %v3251
        %v3332 = vunpack.c.l.b16 %v3252
        %v3333 = vunpack.c.l.b16 %v3253
        %v3334 = vunpack.c.l.b16 %v3254
        %v3335 = vunpack.c.l.b16 %v3255
        %v3336 = vunpack.c.l.b16 %v3256
        %v3337 = vpack.c.b16 %v3322, %v3321
        %v3338 = vpack.c.b16 %v3324, %v3323
        %v3339 = vpack.c.b16 %v3326, %v3325
        %v3340 = vpack.c.b16 %v3328, %v3327
        %v3341 = vpack.c.b16 %v3330, %v3329
        %v3342 = vpack.c.b16 %v3332, %v3331
        %v3343 = vpack.c.b16 %v3334, %v3333
        %v3344 = vpack.c.b16 %v3336, %v3335
        %3353 = vmatprep.subr.bf16.mxu0 0
        %3354 = vmatpush1.bf16.msra.mxu0 %v3344
        %3355 = vmatprep.subr.bf16.mxu0 0
        %3356 = vmatpush1.bf16.msra.mxu0 %v3343
        %3357 = vmatprep.subr.bf16.mxu0 0
        %3358 = vmatpush1.bf16.msra.mxu0 %v3342
        %3359 = vmatprep.subr.bf16.mxu0 0
        %3360 = vmatpush1.bf16.msra.mxu0 %v3341
        %3361 = vmatprep.subr.bf16.mxu0 0
        %3362 = vmatpush1.bf16.msra.mxu0 %v3340
        %3363 = vmatprep.subr.bf16.mxu0 0
        %3364 = vmatpush1.bf16.msra.mxu0 %v3339
        %3365 = vmatprep.subr.bf16.mxu0 0
        %3366 = vmatpush1.bf16.msra.mxu0 %v3338
        %3367 = vmatprep.subr.bf16.mxu0 0
        %3368 = vmatpush1.bf16.msra.mxu0 %v3337
        %3369 = vmatprep.subr.bf16.mxu0 0
        %3370 = vmatpush2.bf16.msra.mxu0 0
        %3371 = vmatprep.subr.bf16.mxu0 0
        %3372 = vmatpush2.bf16.msra.mxu0 0
        %3373 = vmatprep.subr.bf16.mxu0 0
        %3374 = vmatpush2.bf16.msra.mxu0 0
        %3375 = vmatprep.subr.bf16.mxu0 0
        %3376 = vmatpush2.bf16.msra.mxu0 0
        %3377 = vmatprep.subr.bf16.mxu0 0
        %3378 = vmatpush2.bf16.msra.mxu0 0
        %3379 = vmatprep.subr.bf16.mxu0 0
        %3380 = vmatpush2.bf16.msra.mxu0 0
        %3381 = vmatprep.subr.bf16.mxu0 0
        %3382 = vmatpush2.bf16.msra.mxu0 0
        %3383 = vmatprep.subr.bf16.mxu0 0
        %3384 = vmatpush2.bf16.msra.mxu0 0
        %3385 = vmatprep.mubr.bf16.mxu0 0
        %3386 = vmatmul.mubr.bf16.gmra.mxu0 %v3229
        %v3387 = vpop.f32.mrf.mxu0
        %v3388 = vadd.f32 0.0, %v3387
        %v3389 = vpop.f32.mrf.mxu0
        %v3390 = vpop.f32.mrf.mxu0
        %v3391 = vadd.f32 0.0, %v3390
        %v3392 = vpop.f32.mrf.mxu0
        %3393 = vmatprep.mubr.bf16.mxu0 0
        %3394 = vmatmul.mubr.bf16.gmra.mxu0 %v3230
        %v3395 = vpop.f32.mrf.mxu0
        %v3396 = vadd.f32 0.0, %v3395
        %v3397 = vpop.f32.mrf.mxu0
        %v3398 = vpop.f32.mrf.mxu0
        %v3399 = vadd.f32 0.0, %v3398
        %v3400 = vpop.f32.mrf.mxu0
        %3401 = vdwg.mxu0
        %v3402 = vpack.c.bf16 %v3391, %v3388
        %v3403 = vpack.c.bf16 %v3399, %v3396
        %v3420 = vunpack.c.l.b16 %v3257
        %v3421 = vunpack.c.l.b16 %v3258
        %v3422 = vunpack.c.l.b16 %v3259
        %v3423 = vunpack.c.l.b16 %v3260
        %v3424 = vunpack.c.l.b16 %v3261
        %v3425 = vunpack.c.l.b16 %v3262
        %v3426 = vunpack.c.l.b16 %v3263
        %v3427 = vunpack.c.l.b16 %v3264
        %v3428 = vunpack.c.l.b16 %v3265
        %v3429 = vunpack.c.l.b16 %v3266
        %v3430 = vunpack.c.l.b16 %v3267
        %v3431 = vunpack.c.l.b16 %v3268
        %v3432 = vunpack.c.l.b16 %v3269
        %v3433 = vunpack.c.l.b16 %v3270
        %v3434 = vunpack.c.l.b16 %v3271
        %v3435 = vunpack.c.l.b16 %v3272
        %v3436 = vpack.c.b16 %v3421, %v3420
        %v3437 = vpack.c.b16 %v3423, %v3422
        %v3438 = vpack.c.b16 %v3425, %v3424
        %v3439 = vpack.c.b16 %v3427, %v3426
        %v3440 = vpack.c.b16 %v3429, %v3428
        %v3441 = vpack.c.b16 %v3431, %v3430
        %v3442 = vpack.c.b16 %v3433, %v3432
        %v3443 = vpack.c.b16 %v3435, %v3434
        %3452 = vmatprep.subr.bf16.mxu0 0
        %3453 = vmatpush1.bf16.msra.mxu0 %v3443
        %3454 = vmatprep.subr.bf16.mxu0 0
        %3455 = vmatpush1.bf16.msra.mxu0 %v3442
        %3456 = vmatprep.subr.bf16.mxu0 0
        %3457 = vmatpush1.bf16.msra.mxu0 %v3441
        %3458 = vmatprep.subr.bf16.mxu0 0
        %3459 = vmatpush1.bf16.msra.mxu0 %v3440
        %3460 = vmatprep.subr.bf16.mxu0 0
        %3461 = vmatpush1.bf16.msra.mxu0 %v3439
        %3462 = vmatprep.subr.bf16.mxu0 0
        %3463 = vmatpush1.bf16.msra.mxu0 %v3438
        %3464 = vmatprep.subr.bf16.mxu0 0
        %3465 = vmatpush1.bf16.msra.mxu0 %v3437
        %3466 = vmatprep.subr.bf16.mxu0 0
        %3467 = vmatpush1.bf16.msra.mxu0 %v3436
        %3468 = vmatprep.subr.bf16.mxu0 0
        %3469 = vmatpush2.bf16.msra.mxu0 0
        %3470 = vmatprep.subr.bf16.mxu0 0
        %3471 = vmatpush2.bf16.msra.mxu0 0
        %3472 = vmatprep.subr.bf16.mxu0 0
        %3473 = vmatpush2.bf16.msra.mxu0 0
        %3474 = vmatprep.subr.bf16.mxu0 0
        %3475 = vmatpush2.bf16.msra.mxu0 0
        %3476 = vmatprep.subr.bf16.mxu0 0
        %3477 = vmatpush2.bf16.msra.mxu0 0
        %3478 = vmatprep.subr.bf16.mxu0 0
        %3479 = vmatpush2.bf16.msra.mxu0 0
        %3480 = vmatprep.subr.bf16.mxu0 0
        %3481 = vmatpush2.bf16.msra.mxu0 0
        %3482 = vmatprep.subr.bf16.mxu0 0
        %3483 = vmatpush2.bf16.msra.mxu0 0
        %3484 = vmatprep.mubr.bf16.mxu0 0
        %3485 = vmatmul.mubr.bf16.gmra.mxu0 %v3229
        %v3486 = vpop.f32.mrf.mxu0
        %v3487 = vadd.f32 0.0, %v3486
        %v3488 = vpop.f32.mrf.mxu0
        %v3489 = vpop.f32.mrf.mxu0
        %v3490 = vadd.f32 0.0, %v3489
        %v3491 = vpop.f32.mrf.mxu0
        %3492 = vmatprep.mubr.bf16.mxu0 0
        %3493 = vmatmul.mubr.bf16.gmra.mxu0 %v3230
        %v3494 = vpop.f32.mrf.mxu0
        %v3495 = vadd.f32 0.0, %v3494
        %v3496 = vpop.f32.mrf.mxu0
        %v3497 = vpop.f32.mrf.mxu0
        %v3498 = vadd.f32 0.0, %v3497
        %v3499 = vpop.f32.mrf.mxu0
        %3500 = vdwg.mxu0
        %v3501 = vpack.c.bf16 %v3490, %v3487
        %v3502 = vpack.c.bf16 %v3498, %v3495
        %v3505 = vunpack.c.l.b16 %v3237
        %v3506 = vunpack.c.l.b16 %v3238
        %v3507 = vpack.c.b16 %v3506, %v3505
        %v3509 = vsel %vm933, %v3507, 0
        %3511 = vmatprep.subr.bf16.mxu0 0
        %3512 = vmatpush1.bf16.msra.mxu0 0
        %3513 = vmatprep.subr.bf16.mxu0 0
        %3514 = vmatpush1.bf16.msra.mxu0 0
        %3515 = vmatprep.subr.bf16.mxu0 0
        %3516 = vmatpush1.bf16.msra.mxu0 0
        %3517 = vmatprep.subr.bf16.mxu0 0
        %3518 = vmatpush1.bf16.msra.mxu0 0
        %3519 = vmatprep.subr.bf16.mxu0 0
        %3520 = vmatpush1.bf16.msra.mxu0 0
        %3521 = vmatprep.subr.bf16.mxu0 0
        %3522 = vmatpush1.bf16.msra.mxu0 0
        %3523 = vmatprep.subr.bf16.mxu0 0
        %3524 = vmatpush1.bf16.msra.mxu0 %v3403
        %3525 = vmatprep.subr.bf16.mxu0 0
        %3526 = vmatpush1.bf16.msra.mxu0 %v3402
        %3527 = vmatprep.subr.bf16.mxu0 0
        %3528 = vmatpush2.bf16.msra.mxu0 0
        %3529 = vmatprep.subr.bf16.mxu0 0
        %3530 = vmatpush2.bf16.msra.mxu0 0
        %3531 = vmatprep.subr.bf16.mxu0 0
        %3532 = vmatpush2.bf16.msra.mxu0 0
        %3533 = vmatprep.subr.bf16.mxu0 0
        %3534 = vmatpush2.bf16.msra.mxu0 0
        %3535 = vmatprep.subr.bf16.mxu0 0
        %3536 = vmatpush2.bf16.msra.mxu0 0
        %3537 = vmatprep.subr.bf16.mxu0 0
        %3538 = vmatpush2.bf16.msra.mxu0 0
        %3539 = vmatprep.subr.bf16.mxu0 0
        %3540 = vmatpush2.bf16.msra.mxu0 0
        %3541 = vmatprep.subr.bf16.mxu0 0
        %3542 = vmatpush2.bf16.msra.mxu0 0
        %3543 = vmatprep.mubr.bf16.mxu0 0
        %3544 = vmatmul.mubr.bf16.gmra.mxu0 %v3509
        %v3545 = vpop.f32.mrf.mxu0
        %v3546 = vadd.f32 0.0, %v3545
        %v3547 = vpop.f32.mrf.mxu0
        %v3548 = vpop.f32.mrf.mxu0
        %v3549 = vadd.f32 0.0, %v3548
        %v3550 = vpop.f32.mrf.mxu0
        %3551 = vdwg.mxu0
        %v3554 = vunpack.c.l.b16 %v3233
        %v3555 = vunpack.c.l.b16 %v3234
        %v3556 = vpack.c.b16 %v3555, %v3554
        %v3558 = vsel %vm933, %v3556, 0
        %3560 = vmatprep.subr.bf16.mxu0 0
        %3561 = vmatpush1.bf16.msra.mxu0 0
        %3562 = vmatprep.subr.bf16.mxu0 0
        %3563 = vmatpush1.bf16.msra.mxu0 0
        %3564 = vmatprep.subr.bf16.mxu0 0
        %3565 = vmatpush1.bf16.msra.mxu0 0
        %3566 = vmatprep.subr.bf16.mxu0 0
        %3567 = vmatpush1.bf16.msra.mxu0 0
        %3568 = vmatprep.subr.bf16.mxu0 0
        %3569 = vmatpush1.bf16.msra.mxu0 0
        %3570 = vmatprep.subr.bf16.mxu0 0
        %3571 = vmatpush1.bf16.msra.mxu0 0
        %3572 = vmatprep.subr.bf16.mxu0 0
        %3573 = vmatpush1.bf16.msra.mxu0 %v3230
        %3574 = vmatprep.subr.bf16.mxu0 0
        %3575 = vmatpush1.bf16.msra.mxu0 %v3229
        %3576 = vmatprep.subr.bf16.mxu0 0
        %3577 = vmatpush2.bf16.msra.mxu0 0
        %3578 = vmatprep.subr.bf16.mxu0 0
        %3579 = vmatpush2.bf16.msra.mxu0 0
        %3580 = vmatprep.subr.bf16.mxu0 0
        %3581 = vmatpush2.bf16.msra.mxu0 0
        %3582 = vmatprep.subr.bf16.mxu0 0
        %3583 = vmatpush2.bf16.msra.mxu0 0
        %3584 = vmatprep.subr.bf16.mxu0 0
        %3585 = vmatpush2.bf16.msra.mxu0 0
        %3586 = vmatprep.subr.bf16.mxu0 0
        %3587 = vmatpush2.bf16.msra.mxu0 0
        %3588 = vmatprep.subr.bf16.mxu0 0
        %3589 = vmatpush2.bf16.msra.mxu0 0
        %3590 = vmatprep.subr.bf16.mxu0 0
        %3591 = vmatpush2.bf16.msra.mxu0 0
        %3592 = vmatprep.mubr.bf16.mxu0 0
        %3593 = vmatmul.mubr.bf16.gmra.mxu0 %v3558
        %v3594 = vpop.f32.mrf.mxu0
        %v3595 = vadd.f32 %v3546, %v3594
        %v3596 = vpop.f32.mrf.mxu0
        %v3597 = vpop.f32.mrf.mxu0
        %v3598 = vadd.f32 %v3549, %v3597
        %v3599 = vpop.f32.mrf.mxu0
        %3600 = vdwg.mxu0
        %v3603 = vunpack.c.l.b16 %v3231
        %v3604 = vunpack.c.l.b16 %v3232
        %v3605 = vpack.c.b16 %v3604, %v3603
        %v3607 = vsel %vm933, %v3605, 0
        %3609 = vmatprep.subr.bf16.mxu0 0
        %3610 = vmatpush1.bf16.msra.mxu0 0
        %3611 = vmatprep.subr.bf16.mxu0 0
        %3612 = vmatpush1.bf16.msra.mxu0 0
        %3613 = vmatprep.subr.bf16.mxu0 0
        %3614 = vmatpush1.bf16.msra.mxu0 0
        %3615 = vmatprep.subr.bf16.mxu0 0
        %3616 = vmatpush1.bf16.msra.mxu0 0
        %3617 = vmatprep.subr.bf16.mxu0 0
        %3618 = vmatpush1.bf16.msra.mxu0 0
        %3619 = vmatprep.subr.bf16.mxu0 0
        %3620 = vmatpush1.bf16.msra.mxu0 0
        %3621 = vmatprep.subr.bf16.mxu0 0
        %3622 = vmatpush1.bf16.msra.mxu0 %v3502
        %3623 = vmatprep.subr.bf16.mxu0 0
        %3624 = vmatpush1.bf16.msra.mxu0 %v3501
        %3625 = vmatprep.subr.bf16.mxu0 0
        %3626 = vmatpush2.bf16.msra.mxu0 0
        %3627 = vmatprep.subr.bf16.mxu0 0
        %3628 = vmatpush2.bf16.msra.mxu0 0
        %3629 = vmatprep.subr.bf16.mxu0 0
        %3630 = vmatpush2.bf16.msra.mxu0 0
        %3631 = vmatprep.subr.bf16.mxu0 0
        %3632 = vmatpush2.bf16.msra.mxu0 0
        %3633 = vmatprep.subr.bf16.mxu0 0
        %3634 = vmatpush2.bf16.msra.mxu0 0
        %3635 = vmatprep.subr.bf16.mxu0 0
        %3636 = vmatpush2.bf16.msra.mxu0 0
        %3637 = vmatprep.subr.bf16.mxu0 0
        %3638 = vmatpush2.bf16.msra.mxu0 0
        %3639 = vmatprep.subr.bf16.mxu0 0
        %3640 = vmatpush2.bf16.msra.mxu0 0
        %3641 = vmatprep.mubr.bf16.mxu0 0
        %3642 = vmatmul.mubr.bf16.gmra.mxu0 %v3607
        %v3643 = vpop.f32.mrf.mxu0
        %v3644 = vadd.f32 0.0, %v3643
        %v3645 = vpop.f32.mrf.mxu0
        %v3646 = vpop.f32.mrf.mxu0
        %v3647 = vadd.f32 0.0, %v3646
        %v3648 = vpop.f32.mrf.mxu0
        %3649 = vdwg.mxu0
        %v3652 = vunpack.c.l.b16 %v3235
        %v3653 = vunpack.c.l.b16 %v3236
        %v3654 = vpack.c.b16 %v3653, %v3652
        %v3656 = vsel %vm933, %v3654, 0
        %3658 = vmatprep.subr.bf16.mxu0 0
        %3659 = vmatpush1.bf16.msra.mxu0 0
        %3660 = vmatprep.subr.bf16.mxu0 0
        %3661 = vmatpush1.bf16.msra.mxu0 0
        %3662 = vmatprep.subr.bf16.mxu0 0
        %3663 = vmatpush1.bf16.msra.mxu0 0
        %3664 = vmatprep.subr.bf16.mxu0 0
        %3665 = vmatpush1.bf16.msra.mxu0 0
        %3666 = vmatprep.subr.bf16.mxu0 0
        %3667 = vmatpush1.bf16.msra.mxu0 0
        %3668 = vmatprep.subr.bf16.mxu0 0
        %3669 = vmatpush1.bf16.msra.mxu0 0
        %3670 = vmatprep.subr.bf16.mxu0 0
        %3671 = vmatpush1.bf16.msra.mxu0 %v3230
        %3672 = vmatprep.subr.bf16.mxu0 0
        %3673 = vmatpush1.bf16.msra.mxu0 %v3229
        %3674 = vmatprep.subr.bf16.mxu0 0
        %3675 = vmatpush2.bf16.msra.mxu0 0
        %3676 = vmatprep.subr.bf16.mxu0 0
        %3677 = vmatpush2.bf16.msra.mxu0 0
        %3678 = vmatprep.subr.bf16.mxu0 0
        %3679 = vmatpush2.bf16.msra.mxu0 0
        %3680 = vmatprep.subr.bf16.mxu0 0
        %3681 = vmatpush2.bf16.msra.mxu0 0
        %3682 = vmatprep.subr.bf16.mxu0 0
        %3683 = vmatpush2.bf16.msra.mxu0 0
        %3684 = vmatprep.subr.bf16.mxu0 0
        %3685 = vmatpush2.bf16.msra.mxu0 0
        %3686 = vmatprep.subr.bf16.mxu0 0
        %3687 = vmatpush2.bf16.msra.mxu0 0
        %3688 = vmatprep.subr.bf16.mxu0 0
        %3689 = vmatpush2.bf16.msra.mxu0 0
        %3690 = vmatprep.mubr.bf16.mxu0 0
        %3691 = vmatmul.mubr.bf16.gmra.mxu0 %v3656
        %v3692 = vpop.f32.mrf.mxu0
        %v3693 = vadd.f32 %v3644, %v3692
        %v3694 = vpop.f32.mrf.mxu0
        %v3695 = vpop.f32.mrf.mxu0
        %v3696 = vadd.f32 %v3647, %v3695
        %v3697 = vpop.f32.mrf.mxu0
        %3698 = vdwg.mxu0
        %v3699 = vpack.c.bf16 %v3598, %v3595
        %v3700 = vpack.c.bf16 %v3696, %v3693
        %v3717 = vunpack.c.l.b16 %v3289
        %v3718 = vunpack.c.h.b16 %v3289
        %v3719 = vunpack.c.l.b16 %v3290
        %v3720 = vunpack.c.h.b16 %v3290
        %v3721 = vunpack.c.l.b16 %v3291
        %v3722 = vunpack.c.h.b16 %v3291
        %v3723 = vunpack.c.l.b16 %v3292
        %v3724 = vunpack.c.h.b16 %v3292
        %v3725 = vunpack.c.l.b16 %v3293
        %v3726 = vunpack.c.h.b16 %v3293
        %v3727 = vunpack.c.l.b16 %v3294
        %v3728 = vunpack.c.h.b16 %v3294
        %v3729 = vunpack.c.l.b16 %v3295
        %v3730 = vunpack.c.h.b16 %v3295
        %v3731 = vunpack.c.l.b16 %v3296
        %v3732 = vunpack.c.h.b16 %v3296
        %v3733 = vunpack.c.l.b16 %v3297
        %v3734 = vunpack.c.h.b16 %v3297
        %v3735 = vunpack.c.l.b16 %v3298
        %v3736 = vunpack.c.h.b16 %v3298
        %v3737 = vunpack.c.l.b16 %v3299
        %v3738 = vunpack.c.h.b16 %v3299
        %v3739 = vunpack.c.l.b16 %v3300
        %v3740 = vunpack.c.h.b16 %v3300
        %v3741 = vunpack.c.l.b16 %v3301
        %v3742 = vunpack.c.h.b16 %v3301
        %v3743 = vunpack.c.l.b16 %v3302
        %v3744 = vunpack.c.h.b16 %v3302
        %v3745 = vunpack.c.l.b16 %v3303
        %v3746 = vunpack.c.h.b16 %v3303
        %v3747 = vunpack.c.l.b16 %v3304
        %v3748 = vunpack.c.h.b16 %v3304
        %v3749 = vpack.c.b16 %v3719, %v3717
        %v3750 = vpack.c.b16 %v3720, %v3718
        %v3751 = vpack.c.b16 %v3723, %v3721
        %v3752 = vpack.c.b16 %v3724, %v3722
        %v3753 = vpack.c.b16 %v3727, %v3725
        %v3754 = vpack.c.b16 %v3728, %v3726
        %v3755 = vpack.c.b16 %v3731, %v3729
        %v3756 = vpack.c.b16 %v3732, %v3730
        %v3757 = vpack.c.b16 %v3735, %v3733
        %v3758 = vpack.c.b16 %v3736, %v3734
        %v3759 = vpack.c.b16 %v3739, %v3737
        %v3760 = vpack.c.b16 %v3740, %v3738
        %v3761 = vpack.c.b16 %v3743, %v3741
        %v3762 = vpack.c.b16 %v3744, %v3742
        %v3763 = vpack.c.b16 %v3747, %v3745
        %v3764 = vpack.c.b16 %v3748, %v3746
        %3781 = vmatprep.subr.bf16.mxu0 %v3764
        %3782 = vmatpush1.bf16.msra.mxu0 %v3763
        %3783 = vmatprep.subr.bf16.mxu0 %v3762
        %3784 = vmatpush1.bf16.msra.mxu0 %v3761
        %3785 = vmatprep.subr.bf16.mxu0 %v3760
        %3786 = vmatpush1.bf16.msra.mxu0 %v3759
        %3787 = vmatprep.subr.bf16.mxu0 %v3758
        %3788 = vmatpush1.bf16.msra.mxu0 %v3757
        %3789 = vmatprep.subr.bf16.mxu0 %v3756
        %3790 = vmatpush1.bf16.msra.mxu0 %v3755
        %3791 = vmatprep.subr.bf16.mxu0 %v3754
        %3792 = vmatpush1.bf16.msra.mxu0 %v3753
        %3793 = vmatprep.subr.bf16.mxu0 %v3752
        %3794 = vmatpush1.bf16.msra.mxu0 %v3751
        %3795 = vmatprep.subr.bf16.mxu0 %v3750
        %3796 = vmatpush1.bf16.msra.mxu0 %v3749
        %3797 = vmatprep.subr.bf16.mxu0 0
        %3798 = vmatpush2.bf16.msra.mxu0 0
        %3799 = vmatprep.subr.bf16.mxu0 0
        %3800 = vmatpush2.bf16.msra.mxu0 0
        %3801 = vmatprep.subr.bf16.mxu0 0
        %3802 = vmatpush2.bf16.msra.mxu0 0
        %3803 = vmatprep.subr.bf16.mxu0 0
        %3804 = vmatpush2.bf16.msra.mxu0 0
        %3805 = vmatprep.subr.bf16.mxu0 0
        %3806 = vmatpush2.bf16.msra.mxu0 0
        %3807 = vmatprep.subr.bf16.mxu0 0
        %3808 = vmatpush2.bf16.msra.mxu0 0
        %3809 = vmatprep.subr.bf16.mxu0 0
        %3810 = vmatpush2.bf16.msra.mxu0 0
        %3811 = vmatprep.subr.bf16.mxu0 0
        %3812 = vmatpush2.bf16.msra.mxu0 0
        %3813 = vmatprep.mubr.bf16.mxu0 0
        %3814 = vmatmul.mubr.bf16.gmra.mxu0 %v3700
        %v3815 = vpop.f32.mrf.mxu0
        %v3816 = vadd.f32 0.0, %v3815
        %v3817 = vpop.f32.mrf.mxu0
        %v3818 = vadd.f32 0.0, %v3817
        %v3819 = vpop.f32.mrf.mxu0
        %v3820 = vadd.f32 0.0, %v3819
        %v3821 = vpop.f32.mrf.mxu0
        %v3822 = vadd.f32 0.0, %v3821
        %3823 = vdwg.mxu0
        %v3840 = vunpack.c.l.b16 %v3273
        %v3841 = vunpack.c.h.b16 %v3273
        %v3842 = vunpack.c.l.b16 %v3274
        %v3843 = vunpack.c.h.b16 %v3274
        %v3844 = vunpack.c.l.b16 %v3275
        %v3845 = vunpack.c.h.b16 %v3275
        %v3846 = vunpack.c.l.b16 %v3276
        %v3847 = vunpack.c.h.b16 %v3276
        %v3848 = vunpack.c.l.b16 %v3277
        %v3849 = vunpack.c.h.b16 %v3277
        %v3850 = vunpack.c.l.b16 %v3278
        %v3851 = vunpack.c.h.b16 %v3278
        %v3852 = vunpack.c.l.b16 %v3279
        %v3853 = vunpack.c.h.b16 %v3279
        %v3854 = vunpack.c.l.b16 %v3280
        %v3855 = vunpack.c.h.b16 %v3280
        %v3856 = vunpack.c.l.b16 %v3281
        %v3857 = vunpack.c.h.b16 %v3281
        %v3858 = vunpack.c.l.b16 %v3282
        %v3859 = vunpack.c.h.b16 %v3282
        %v3860 = vunpack.c.l.b16 %v3283
        %v3861 = vunpack.c.h.b16 %v3283
        %v3862 = vunpack.c.l.b16 %v3284
        %v3863 = vunpack.c.h.b16 %v3284
        %v3864 = vunpack.c.l.b16 %v3285
        %v3865 = vunpack.c.h.b16 %v3285
        %v3866 = vunpack.c.l.b16 %v3286
        %v3867 = vunpack.c.h.b16 %v3286
        %v3868 = vunpack.c.l.b16 %v3287
        %v3869 = vunpack.c.h.b16 %v3287
        %v3870 = vunpack.c.l.b16 %v3288
        %v3871 = vunpack.c.h.b16 %v3288
        %v3872 = vpack.c.b16 %v3842, %v3840
        %v3873 = vpack.c.b16 %v3843, %v3841
        %v3874 = vpack.c.b16 %v3846, %v3844
        %v3875 = vpack.c.b16 %v3847, %v3845
        %v3876 = vpack.c.b16 %v3850, %v3848
        %v3877 = vpack.c.b16 %v3851, %v3849
        %v3878 = vpack.c.b16 %v3854, %v3852
        %v3879 = vpack.c.b16 %v3855, %v3853
        %v3880 = vpack.c.b16 %v3858, %v3856
        %v3881 = vpack.c.b16 %v3859, %v3857
        %v3882 = vpack.c.b16 %v3862, %v3860
        %v3883 = vpack.c.b16 %v3863, %v3861
        %v3884 = vpack.c.b16 %v3866, %v3864
        %v3885 = vpack.c.b16 %v3867, %v3865
        %v3886 = vpack.c.b16 %v3870, %v3868
        %v3887 = vpack.c.b16 %v3871, %v3869
        %3904 = vmatprep.subr.bf16.mxu0 %v3887
        %3905 = vmatpush1.bf16.msra.mxu0 %v3886
        %3906 = vmatprep.subr.bf16.mxu0 %v3885
        %3907 = vmatpush1.bf16.msra.mxu0 %v3884
        %3908 = vmatprep.subr.bf16.mxu0 %v3883
        %3909 = vmatpush1.bf16.msra.mxu0 %v3882
        %3910 = vmatprep.subr.bf16.mxu0 %v3881
        %3911 = vmatpush1.bf16.msra.mxu0 %v3880
        %3912 = vmatprep.subr.bf16.mxu0 %v3879
        %3913 = vmatpush1.bf16.msra.mxu0 %v3878
        %3914 = vmatprep.subr.bf16.mxu0 %v3877
        %3915 = vmatpush1.bf16.msra.mxu0 %v3876
        %3916 = vmatprep.subr.bf16.mxu0 %v3875
        %3917 = vmatpush1.bf16.msra.mxu0 %v3874
        %3918 = vmatprep.subr.bf16.mxu0 %v3873
        %3919 = vmatpush1.bf16.msra.mxu0 %v3872
        %3920 = vmatprep.subr.bf16.mxu0 0
        %3921 = vmatpush2.bf16.msra.mxu0 0
        %3922 = vmatprep.subr.bf16.mxu0 0
        %3923 = vmatpush2.bf16.msra.mxu0 0
        %3924 = vmatprep.subr.bf16.mxu0 0
        %3925 = vmatpush2.bf16.msra.mxu0 0
        %3926 = vmatprep.subr.bf16.mxu0 0
        %3927 = vmatpush2.bf16.msra.mxu0 0
        %3928 = vmatprep.subr.bf16.mxu0 0
        %3929 = vmatpush2.bf16.msra.mxu0 0
        %3930 = vmatprep.subr.bf16.mxu0 0
        %3931 = vmatpush2.bf16.msra.mxu0 0
        %3932 = vmatprep.subr.bf16.mxu0 0
        %3933 = vmatpush2.bf16.msra.mxu0 0
        %3934 = vmatprep.subr.bf16.mxu0 0
        %3935 = vmatpush2.bf16.msra.mxu0 0
        %3936 = vmatprep.mubr.bf16.mxu0 0
        %3937 = vmatmul.mubr.bf16.gmra.mxu0 %v3699
        %v3938 = vpop.f32.mrf.mxu0
        %v3939 = vadd.f32 %v3816, %v3938
        %v3940 = vpop.f32.mrf.mxu0
        %v3941 = vadd.f32 %v3818, %v3940
        %v3942 = vpop.f32.mrf.mxu0
        %v3943 = vadd.f32 %v3820, %v3942
        %v3944 = vpop.f32.mrf.mxu0
        %v3945 = vadd.f32 %v3822, %v3944
        %3946 = vdwg.mxu0
        %3948 = vset.pattern.permute.xlu0 0
        %3949 = vperm.xlu0 %3948, %v3239
        %v3950 = vpop.permute.xlu0 %3949
        %3953 = vset.pattern.permute.xlu0 0
        %3954 = vperm.xlu0 %3953, %v3240
        %v3955 = vpop.permute.xlu0 %3954
        %v3957 = vadd.f32 %v3939, %v3950
        %v3958 = vadd.f32 %v3941, %v3950
        %v3959 = vadd.f32 %v3943, %v3955
        %v3960 = vadd.f32 %v3945, %v3955
        %v3961 = vmax.f32 %v3957, 0.0
        %v3962 = vmax.f32 %v3958, 0.0
        %v3963 = vmax.f32 %v3959, 0.0
        %v3964 = vmax.f32 %v3960, 0.0
        %v3965 = vpack.c.bf16 %v3963, %v3961
        %v3966 = vpack.c.bf16 %v3964, %v3962
        %v3967 = vld [vmem:[%s18] sm:$0x1]
        %v3968 = vld [vmem:[%s18 + $0x1] sm:$0x1]
        %v3969 = vld [vmem:[%s18 + $0x2] sm:$0x1]
        %v3970 = vld [vmem:[%s18 + $0x3] sm:$0x1]
        %v3971 = vld [vmem:[#allocation2] sm:$0x1]
        %v3972 = vld [vmem:[#allocation21] sm:$0xff]
        %v3973 = vld [vmem:[#allocation21 + $0x8] sm:$0xff]
        %v3974 = vld [vmem:[#allocation21 + $0x10] sm:$0xff]
        %v3975 = vld [vmem:[#allocation21 + $0x18] sm:$0xff]
        %v3976 = vld [vmem:[#allocation21 + $0x20] sm:$0xff]
        %v3977 = vld [vmem:[#allocation21 + $0x28] sm:$0xff]
        %v3978 = vld [vmem:[#allocation21 + $0x30] sm:$0xff]
        %v3979 = vld [vmem:[#allocation21 + $0x38] sm:$0xff]
        %v3980 = vld [vmem:[#allocation21 + $0x40] sm:$0xff]
        %v3981 = vld [vmem:[#allocation21 + $0x48] sm:$0xff]
        %v3982 = vld [vmem:[#allocation21 + $0x50] sm:$0xff]
        %v3983 = vld [vmem:[#allocation21 + $0x58] sm:$0xff]
        %v3984 = vld [vmem:[#allocation21 + $0x60] sm:$0xff]
        %v3985 = vld [vmem:[#allocation21 + $0x68] sm:$0xff]
        %v3986 = vld [vmem:[#allocation21 + $0x70] sm:$0xff]
        %v3987 = vld [vmem:[#allocation21 + $0x78] sm:$0xff]
        %v3988 = vld [vmem:[#allocation21 + $0x80] sm:$0xff]
        %v3989 = vld [vmem:[#allocation21 + $0x88] sm:$0xff]
        %v3990 = vld [vmem:[#allocation21 + $0x90] sm:$0xff]
        %v3991 = vld [vmem:[#allocation21 + $0x98] sm:$0xff]
        %v3992 = vld [vmem:[#allocation21 + $0xa0] sm:$0xff]
        %v3993 = vld [vmem:[#allocation21 + $0xa8] sm:$0xff]
        %v3994 = vld [vmem:[#allocation21 + $0xb0] sm:$0xff]
        %v3995 = vld [vmem:[#allocation21 + $0xb8] sm:$0xff]
        %v3996 = vld [vmem:[#allocation21 + $0xc0] sm:$0xff]
        %v3997 = vld [vmem:[#allocation21 + $0xc8] sm:$0xff]
        %v3998 = vld [vmem:[#allocation21 + $0xd0] sm:$0xff]
        %v3999 = vld [vmem:[#allocation21 + $0xd8] sm:$0xff]
        %v4000 = vld [vmem:[#allocation21 + $0xe0] sm:$0xff]
        %v4001 = vld [vmem:[#allocation21 + $0xe8] sm:$0xff]
        %v4002 = vld [vmem:[#allocation21 + $0xf0] sm:$0xff]
        %v4003 = vld [vmem:[#allocation21 + $0xf8] sm:$0xff]
        %v4004 = vld [vmem:[#allocation21 + $0x100] sm:$0xff]
        %v4005 = vld [vmem:[#allocation21 + $0x108] sm:$0xff]
        %v4006 = vld [vmem:[#allocation21 + $0x110] sm:$0xff]
        %v4007 = vld [vmem:[#allocation21 + $0x118] sm:$0xff]
        %v4008 = vld [vmem:[#allocation21 + $0x120] sm:$0xff]
        %v4009 = vld [vmem:[#allocation21 + $0x128] sm:$0xff]
        %v4010 = vld [vmem:[#allocation21 + $0x130] sm:$0xff]
        %v4011 = vld [vmem:[#allocation21 + $0x138] sm:$0xff]
        %v4012 = vld [vmem:[#allocation21 + $0x140] sm:$0xff]
        %v4013 = vld [vmem:[#allocation21 + $0x148] sm:$0xff]
        %v4014 = vld [vmem:[#allocation21 + $0x150] sm:$0xff]
        %v4015 = vld [vmem:[#allocation21 + $0x158] sm:$0xff]
        %v4016 = vld [vmem:[#allocation21 + $0x160] sm:$0xff]
        %v4017 = vld [vmem:[#allocation21 + $0x168] sm:$0xff]
        %v4018 = vld [vmem:[#allocation21 + $0x170] sm:$0xff]
        %v4019 = vld [vmem:[#allocation21 + $0x178] sm:$0xff]
        %v4020 = vld [vmem:[#allocation21 + $0x180] sm:$0xff]
        %v4021 = vld [vmem:[#allocation21 + $0x188] sm:$0xff]
        %v4022 = vld [vmem:[#allocation21 + $0x190] sm:$0xff]
        %v4023 = vld [vmem:[#allocation21 + $0x198] sm:$0xff]
        %v4024 = vld [vmem:[#allocation21 + $0x1a0] sm:$0xff]
        %v4025 = vld [vmem:[#allocation21 + $0x1a8] sm:$0xff]
        %v4026 = vld [vmem:[#allocation21 + $0x1b0] sm:$0xff]
        %v4027 = vld [vmem:[#allocation21 + $0x1b8] sm:$0xff]
        %v4028 = vld [vmem:[#allocation21 + $0x1c0] sm:$0xff]
        %v4029 = vld [vmem:[#allocation21 + $0x1c8] sm:$0xff]
        %v4030 = vld [vmem:[#allocation21 + $0x1d0] sm:$0xff]
        %v4031 = vld [vmem:[#allocation21 + $0x1d8] sm:$0xff]
        %v4032 = vld [vmem:[#allocation21 + $0x1e0] sm:$0xff]
        %v4033 = vld [vmem:[#allocation21 + $0x1e8] sm:$0xff]
        %v4034 = vld [vmem:[#allocation21 + $0x1f0] sm:$0xff]
        %v4035 = vld [vmem:[#allocation21 + $0x1f8] sm:$0xff]
        %v4036 = vld [vmem:[#allocation23] sm:$0xff]
        %v4037 = vld [vmem:[#allocation23 + $0x8] sm:$0xff]
        %v4038 = vld [vmem:[#allocation23 + $0x10] sm:$0xff]
        %v4039 = vld [vmem:[#allocation23 + $0x18] sm:$0xff]
        %v4040 = vld [vmem:[#allocation23 + $0x20] sm:$0xff]
        %v4041 = vld [vmem:[#allocation23 + $0x28] sm:$0xff]
        %v4042 = vld [vmem:[#allocation23 + $0x30] sm:$0xff]
        %v4043 = vld [vmem:[#allocation23 + $0x38] sm:$0xff]
        %v4044 = vld [vmem:[#allocation23 + $0x40] sm:$0xff]
        %v4045 = vld [vmem:[#allocation23 + $0x48] sm:$0xff]
        %v4046 = vld [vmem:[#allocation23 + $0x50] sm:$0xff]
        %v4047 = vld [vmem:[#allocation23 + $0x58] sm:$0xff]
        %v4048 = vld [vmem:[#allocation23 + $0x60] sm:$0xff]
        %v4049 = vld [vmem:[#allocation23 + $0x68] sm:$0xff]
        %v4050 = vld [vmem:[#allocation23 + $0x70] sm:$0xff]
        %v4051 = vld [vmem:[#allocation23 + $0x78] sm:$0xff]
        %v4052 = vld [vmem:[#allocation23 + $0x80] sm:$0xff]
        %v4053 = vld [vmem:[#allocation23 + $0x88] sm:$0xff]
        %v4054 = vld [vmem:[#allocation23 + $0x90] sm:$0xff]
        %v4055 = vld [vmem:[#allocation23 + $0x98] sm:$0xff]
        %v4056 = vld [vmem:[#allocation23 + $0xa0] sm:$0xff]
        %v4057 = vld [vmem:[#allocation23 + $0xa8] sm:$0xff]
        %v4058 = vld [vmem:[#allocation23 + $0xb0] sm:$0xff]
        %v4059 = vld [vmem:[#allocation23 + $0xb8] sm:$0xff]
        %v4060 = vld [vmem:[#allocation23 + $0xc0] sm:$0xff]
        %v4061 = vld [vmem:[#allocation23 + $0xc8] sm:$0xff]
        %v4062 = vld [vmem:[#allocation23 + $0xd0] sm:$0xff]
        %v4063 = vld [vmem:[#allocation23 + $0xd8] sm:$0xff]
        %v4064 = vld [vmem:[#allocation23 + $0xe0] sm:$0xff]
        %v4065 = vld [vmem:[#allocation23 + $0xe8] sm:$0xff]
        %v4066 = vld [vmem:[#allocation23 + $0xf0] sm:$0xff]
        %v4067 = vld [vmem:[#allocation23 + $0xf8] sm:$0xff]
        %v4068 = vld [vmem:[#allocation23 + $0x100] sm:$0xff]
        %v4069 = vld [vmem:[#allocation23 + $0x108] sm:$0xff]
        %v4070 = vld [vmem:[#allocation23 + $0x110] sm:$0xff]
        %v4071 = vld [vmem:[#allocation23 + $0x118] sm:$0xff]
        %v4072 = vld [vmem:[#allocation23 + $0x120] sm:$0xff]
        %v4073 = vld [vmem:[#allocation23 + $0x128] sm:$0xff]
        %v4074 = vld [vmem:[#allocation23 + $0x130] sm:$0xff]
        %v4075 = vld [vmem:[#allocation23 + $0x138] sm:$0xff]
        %v4076 = vld [vmem:[#allocation23 + $0x140] sm:$0xff]
        %v4077 = vld [vmem:[#allocation23 + $0x148] sm:$0xff]
        %v4078 = vld [vmem:[#allocation23 + $0x150] sm:$0xff]
        %v4079 = vld [vmem:[#allocation23 + $0x158] sm:$0xff]
        %v4080 = vld [vmem:[#allocation23 + $0x160] sm:$0xff]
        %v4081 = vld [vmem:[#allocation23 + $0x168] sm:$0xff]
        %v4082 = vld [vmem:[#allocation23 + $0x170] sm:$0xff]
        %v4083 = vld [vmem:[#allocation23 + $0x178] sm:$0xff]
        %v4084 = vld [vmem:[#allocation23 + $0x180] sm:$0xff]
        %v4085 = vld [vmem:[#allocation23 + $0x188] sm:$0xff]
        %v4086 = vld [vmem:[#allocation23 + $0x190] sm:$0xff]
        %v4087 = vld [vmem:[#allocation23 + $0x198] sm:$0xff]
        %v4088 = vld [vmem:[#allocation23 + $0x1a0] sm:$0xff]
        %v4089 = vld [vmem:[#allocation23 + $0x1a8] sm:$0xff]
        %v4090 = vld [vmem:[#allocation23 + $0x1b0] sm:$0xff]
        %v4091 = vld [vmem:[#allocation23 + $0x1b8] sm:$0xff]
        %v4092 = vld [vmem:[#allocation23 + $0x1c0] sm:$0xff]
        %v4093 = vld [vmem:[#allocation23 + $0x1c8] sm:$0xff]
        %v4094 = vld [vmem:[#allocation23 + $0x1d0] sm:$0xff]
        %v4095 = vld [vmem:[#allocation23 + $0x1d8] sm:$0xff]
        %v4096 = vld [vmem:[#allocation23 + $0x1e0] sm:$0xff]
        %v4097 = vld [vmem:[#allocation23 + $0x1e8] sm:$0xff]
        %v4098 = vld [vmem:[#allocation23 + $0x1f0] sm:$0xff]
        %v4099 = vld [vmem:[#allocation23 + $0x1f8] sm:$0xff]
        %v4100 = vld [vmem:[#allocation23 + $0x200] sm:$0xff]
        %v4101 = vld [vmem:[#allocation23 + $0x208] sm:$0xff]
        %v4102 = vld [vmem:[#allocation23 + $0x210] sm:$0xff]
        %v4103 = vld [vmem:[#allocation23 + $0x218] sm:$0xff]
        %v4104 = vld [vmem:[#allocation23 + $0x220] sm:$0xff]
        %v4105 = vld [vmem:[#allocation23 + $0x228] sm:$0xff]
        %v4106 = vld [vmem:[#allocation23 + $0x230] sm:$0xff]
        %v4107 = vld [vmem:[#allocation23 + $0x238] sm:$0xff]
        %v4108 = vld [vmem:[#allocation23 + $0x240] sm:$0xff]
        %v4109 = vld [vmem:[#allocation23 + $0x248] sm:$0xff]
        %v4110 = vld [vmem:[#allocation23 + $0x250] sm:$0xff]
        %v4111 = vld [vmem:[#allocation23 + $0x258] sm:$0xff]
        %v4112 = vld [vmem:[#allocation23 + $0x260] sm:$0xff]
        %v4113 = vld [vmem:[#allocation23 + $0x268] sm:$0xff]
        %v4114 = vld [vmem:[#allocation23 + $0x270] sm:$0xff]
        %v4115 = vld [vmem:[#allocation23 + $0x278] sm:$0xff]
        %v4116 = vld [vmem:[#allocation23 + $0x280] sm:$0xff]
        %v4117 = vld [vmem:[#allocation23 + $0x288] sm:$0xff]
        %v4118 = vld [vmem:[#allocation23 + $0x290] sm:$0xff]
        %v4119 = vld [vmem:[#allocation23 + $0x298] sm:$0xff]
        %v4120 = vld [vmem:[#allocation23 + $0x2a0] sm:$0xff]
        %v4121 = vld [vmem:[#allocation23 + $0x2a8] sm:$0xff]
        %v4122 = vld [vmem:[#allocation23 + $0x2b0] sm:$0xff]
        %v4123 = vld [vmem:[#allocation23 + $0x2b8] sm:$0xff]
        %v4124 = vld [vmem:[#allocation23 + $0x2c0] sm:$0xff]
        %v4125 = vld [vmem:[#allocation23 + $0x2c8] sm:$0xff]
        %v4126 = vld [vmem:[#allocation23 + $0x2d0] sm:$0xff]
        %v4127 = vld [vmem:[#allocation23 + $0x2d8] sm:$0xff]
        %v4128 = vld [vmem:[#allocation23 + $0x2e0] sm:$0xff]
        %v4129 = vld [vmem:[#allocation23 + $0x2e8] sm:$0xff]
        %v4130 = vld [vmem:[#allocation23 + $0x2f0] sm:$0xff]
        %v4131 = vld [vmem:[#allocation23 + $0x2f8] sm:$0xff]
        %v4132 = vld [vmem:[#allocation23 + $0x300] sm:$0xff]
        %v4133 = vld [vmem:[#allocation23 + $0x308] sm:$0xff]
        %v4134 = vld [vmem:[#allocation23 + $0x310] sm:$0xff]
        %v4135 = vld [vmem:[#allocation23 + $0x318] sm:$0xff]
        %v4136 = vld [vmem:[#allocation23 + $0x320] sm:$0xff]
        %v4137 = vld [vmem:[#allocation23 + $0x328] sm:$0xff]
        %v4138 = vld [vmem:[#allocation23 + $0x330] sm:$0xff]
        %v4139 = vld [vmem:[#allocation23 + $0x338] sm:$0xff]
        %v4140 = vld [vmem:[#allocation23 + $0x340] sm:$0xff]
        %v4141 = vld [vmem:[#allocation23 + $0x348] sm:$0xff]
        %v4142 = vld [vmem:[#allocation23 + $0x350] sm:$0xff]
        %v4143 = vld [vmem:[#allocation23 + $0x358] sm:$0xff]
        %v4144 = vld [vmem:[#allocation23 + $0x360] sm:$0xff]
        %v4145 = vld [vmem:[#allocation23 + $0x368] sm:$0xff]
        %v4146 = vld [vmem:[#allocation23 + $0x370] sm:$0xff]
        %v4147 = vld [vmem:[#allocation23 + $0x378] sm:$0xff]
        %v4148 = vld [vmem:[#allocation23 + $0x380] sm:$0xff]
        %v4149 = vld [vmem:[#allocation23 + $0x388] sm:$0xff]
        %v4150 = vld [vmem:[#allocation23 + $0x390] sm:$0xff]
        %v4151 = vld [vmem:[#allocation23 + $0x398] sm:$0xff]
        %v4152 = vld [vmem:[#allocation23 + $0x3a0] sm:$0xff]
        %v4153 = vld [vmem:[#allocation23 + $0x3a8] sm:$0xff]
        %v4154 = vld [vmem:[#allocation23 + $0x3b0] sm:$0xff]
        %v4155 = vld [vmem:[#allocation23 + $0x3b8] sm:$0xff]
        %v4156 = vld [vmem:[#allocation23 + $0x3c0] sm:$0xff]
        %v4157 = vld [vmem:[#allocation23 + $0x3c8] sm:$0xff]
        %v4158 = vld [vmem:[#allocation23 + $0x3d0] sm:$0xff]
        %v4159 = vld [vmem:[#allocation23 + $0x3d8] sm:$0xff]
        %v4160 = vld [vmem:[#allocation23 + $0x3e0] sm:$0xff]
        %v4161 = vld [vmem:[#allocation23 + $0x3e8] sm:$0xff]
        %v4162 = vld [vmem:[#allocation23 + $0x3f0] sm:$0xff]
        %v4163 = vld [vmem:[#allocation23 + $0x3f8] sm:$0xff]
        %v4196 = vunpack.c.l.b16 %v3972
        %v4197 = vunpack.c.h.b16 %v3972
        %v4198 = vunpack.c.l.b16 %v3973
        %v4199 = vunpack.c.h.b16 %v3973
        %v4200 = vunpack.c.l.b16 %v3974
        %v4201 = vunpack.c.h.b16 %v3974
        %v4202 = vunpack.c.l.b16 %v3975
        %v4203 = vunpack.c.h.b16 %v3975
        %v4204 = vunpack.c.l.b16 %v3976
        %v4205 = vunpack.c.h.b16 %v3976
        %v4206 = vunpack.c.l.b16 %v3977
        %v4207 = vunpack.c.h.b16 %v3977
        %v4208 = vunpack.c.l.b16 %v3978
        %v4209 = vunpack.c.h.b16 %v3978
        %v4210 = vunpack.c.l.b16 %v3979
        %v4211 = vunpack.c.h.b16 %v3979
        %v4212 = vunpack.c.l.b16 %v3980
        %v4213 = vunpack.c.h.b16 %v3980
        %v4214 = vunpack.c.l.b16 %v3981
        %v4215 = vunpack.c.h.b16 %v3981
        %v4216 = vunpack.c.l.b16 %v3982
        %v4217 = vunpack.c.h.b16 %v3982
        %v4218 = vunpack.c.l.b16 %v3983
        %v4219 = vunpack.c.h.b16 %v3983
        %v4220 = vunpack.c.l.b16 %v3984
        %v4221 = vunpack.c.h.b16 %v3984
        %v4222 = vunpack.c.l.b16 %v3985
        %v4223 = vunpack.c.h.b16 %v3985
        %v4224 = vunpack.c.l.b16 %v3986
        %v4225 = vunpack.c.h.b16 %v3986
        %v4226 = vunpack.c.l.b16 %v3987
        %v4227 = vunpack.c.h.b16 %v3987
        %v4228 = vunpack.c.l.b16 %v3988
        %v4229 = vunpack.c.h.b16 %v3988
        %v4230 = vunpack.c.l.b16 %v3989
        %v4231 = vunpack.c.h.b16 %v3989
        %v4232 = vunpack.c.l.b16 %v3990
        %v4233 = vunpack.c.h.b16 %v3990
        %v4234 = vunpack.c.l.b16 %v3991
        %v4235 = vunpack.c.h.b16 %v3991
        %v4236 = vunpack.c.l.b16 %v3992
        %v4237 = vunpack.c.h.b16 %v3992
        %v4238 = vunpack.c.l.b16 %v3993
        %v4239 = vunpack.c.h.b16 %v3993
        %v4240 = vunpack.c.l.b16 %v3994
        %v4241 = vunpack.c.h.b16 %v3994
        %v4242 = vunpack.c.l.b16 %v3995
        %v4243 = vunpack.c.h.b16 %v3995
        %v4244 = vunpack.c.l.b16 %v3996
        %v4245 = vunpack.c.h.b16 %v3996
        %v4246 = vunpack.c.l.b16 %v3997
        %v4247 = vunpack.c.h.b16 %v3997
        %v4248 = vunpack.c.l.b16 %v3998
        %v4249 = vunpack.c.h.b16 %v3998
        %v4250 = vunpack.c.l.b16 %v3999
        %v4251 = vunpack.c.h.b16 %v3999
        %v4252 = vunpack.c.l.b16 %v4000
        %v4253 = vunpack.c.h.b16 %v4000
        %v4254 = vunpack.c.l.b16 %v4001
        %v4255 = vunpack.c.h.b16 %v4001
        %v4256 = vunpack.c.l.b16 %v4002
        %v4257 = vunpack.c.h.b16 %v4002
        %v4258 = vunpack.c.l.b16 %v4003
        %v4259 = vunpack.c.h.b16 %v4003
        %v4260 = vpack.c.b16 %v4198, %v4196
        %v4261 = vpack.c.b16 %v4199, %v4197
        %v4262 = vpack.c.b16 %v4202, %v4200
        %v4263 = vpack.c.b16 %v4203, %v4201
        %v4264 = vpack.c.b16 %v4206, %v4204
        %v4265 = vpack.c.b16 %v4207, %v4205
        %v4266 = vpack.c.b16 %v4210, %v4208
        %v4267 = vpack.c.b16 %v4211, %v4209
        %v4268 = vpack.c.b16 %v4214, %v4212
        %v4269 = vpack.c.b16 %v4215, %v4213
        %v4270 = vpack.c.b16 %v4218, %v4216
        %v4271 = vpack.c.b16 %v4219, %v4217
        %v4272 = vpack.c.b16 %v4222, %v4220
        %v4273 = vpack.c.b16 %v4223, %v4221
        %v4274 = vpack.c.b16 %v4226, %v4224
        %v4275 = vpack.c.b16 %v4227, %v4225
        %v4276 = vpack.c.b16 %v4230, %v4228
        %v4277 = vpack.c.b16 %v4231, %v4229
        %v4278 = vpack.c.b16 %v4234, %v4232
        %v4279 = vpack.c.b16 %v4235, %v4233
        %v4280 = vpack.c.b16 %v4238, %v4236
        %v4281 = vpack.c.b16 %v4239, %v4237
        %v4282 = vpack.c.b16 %v4242, %v4240
        %v4283 = vpack.c.b16 %v4243, %v4241
        %v4284 = vpack.c.b16 %v4246, %v4244
        %v4285 = vpack.c.b16 %v4247, %v4245
        %v4286 = vpack.c.b16 %v4250, %v4248
        %v4287 = vpack.c.b16 %v4251, %v4249
        %v4288 = vpack.c.b16 %v4254, %v4252
        %v4289 = vpack.c.b16 %v4255, %v4253
        %v4290 = vpack.c.b16 %v4258, %v4256
        %v4291 = vpack.c.b16 %v4259, %v4257
        %4324 = vmatprep.subr.bf16.mxu0 %v4275
        %4325 = vmatpush1.bf16.msra.mxu0 %v4274
        %4326 = vmatprep.subr.bf16.mxu0 %v4273
        %4327 = vmatpush1.bf16.msra.mxu0 %v4272
        %4328 = vmatprep.subr.bf16.mxu0 %v4271
        %4329 = vmatpush1.bf16.msra.mxu0 %v4270
        %4330 = vmatprep.subr.bf16.mxu0 %v4269
        %4331 = vmatpush1.bf16.msra.mxu0 %v4268
        %4332 = vmatprep.subr.bf16.mxu0 %v4267
        %4333 = vmatpush1.bf16.msra.mxu0 %v4266
        %4334 = vmatprep.subr.bf16.mxu0 %v4265
        %4335 = vmatpush1.bf16.msra.mxu0 %v4264
        %4336 = vmatprep.subr.bf16.mxu0 %v4263
        %4337 = vmatpush1.bf16.msra.mxu0 %v4262
        %4338 = vmatprep.subr.bf16.mxu0 %v4261
        %4339 = vmatpush1.bf16.msra.mxu0 %v4260
        %4340 = vmatprep.subr.bf16.mxu0 %v4291
        %4341 = vmatpush2.bf16.msra.mxu0 %v4290
        %4342 = vmatprep.subr.bf16.mxu0 %v4289
        %4343 = vmatpush2.bf16.msra.mxu0 %v4288
        %4344 = vmatprep.subr.bf16.mxu0 %v4287
        %4345 = vmatpush2.bf16.msra.mxu0 %v4286
        %4346 = vmatprep.subr.bf16.mxu0 %v4285
        %4347 = vmatpush2.bf16.msra.mxu0 %v4284
        %4348 = vmatprep.subr.bf16.mxu0 %v4283
        %4349 = vmatpush2.bf16.msra.mxu0 %v4282
        %4350 = vmatprep.subr.bf16.mxu0 %v4281
        %4351 = vmatpush2.bf16.msra.mxu0 %v4280
        %4352 = vmatprep.subr.bf16.mxu0 %v4279
        %4353 = vmatpush2.bf16.msra.mxu0 %v4278
        %4354 = vmatprep.subr.bf16.mxu0 %v4277
        %4355 = vmatpush2.bf16.msra.mxu0 %v4276
        %4356 = vmatprep.mubr.bf16.mxu0 %v3966
        %4357 = vmatmul.mubr.bf16.gmra.mxu0 %v3965
        %v4358 = vpop.f32.mrf.mxu0
        %v4359 = vadd.f32 0.0, %v4358
        %v4360 = vpop.f32.mrf.mxu0
        %v4361 = vadd.f32 0.0, %v4360
        %v4362 = vpop.f32.mrf.mxu0
        %v4363 = vadd.f32 0.0, %v4362
        %v4364 = vpop.f32.mrf.mxu0
        %v4365 = vadd.f32 0.0, %v4364
        %4366 = vdwg.mxu0
        %v4367 = vpack.c.bf16 %v4363, %v4359
        %v4368 = vpack.c.bf16 %v4365, %v4361
        %v4401 = vunpack.c.l.b16 %v4004
        %v4402 = vunpack.c.h.b16 %v4004
        %v4403 = vunpack.c.l.b16 %v4005
        %v4404 = vunpack.c.h.b16 %v4005
        %v4405 = vunpack.c.l.b16 %v4006
        %v4406 = vunpack.c.h.b16 %v4006
        %v4407 = vunpack.c.l.b16 %v4007
        %v4408 = vunpack.c.h.b16 %v4007
        %v4409 = vunpack.c.l.b16 %v4008
        %v4410 = vunpack.c.h.b16 %v4008
        %v4411 = vunpack.c.l.b16 %v4009
        %v4412 = vunpack.c.h.b16 %v4009
        %v4413 = vunpack.c.l.b16 %v4010
        %v4414 = vunpack.c.h.b16 %v4010
        %v4415 = vunpack.c.l.b16 %v4011
        %v4416 = vunpack.c.h.b16 %v4011
        %v4417 = vunpack.c.l.b16 %v4012
        %v4418 = vunpack.c.h.b16 %v4012
        %v4419 = vunpack.c.l.b16 %v4013
        %v4420 = vunpack.c.h.b16 %v4013
        %v4421 = vunpack.c.l.b16 %v4014
        %v4422 = vunpack.c.h.b16 %v4014
        %v4423 = vunpack.c.l.b16 %v4015
        %v4424 = vunpack.c.h.b16 %v4015
        %v4425 = vunpack.c.l.b16 %v4016
        %v4426 = vunpack.c.h.b16 %v4016
        %v4427 = vunpack.c.l.b16 %v4017
        %v4428 = vunpack.c.h.b16 %v4017
        %v4429 = vunpack.c.l.b16 %v4018
        %v4430 = vunpack.c.h.b16 %v4018
        %v4431 = vunpack.c.l.b16 %v4019
        %v4432 = vunpack.c.h.b16 %v4019
        %v4433 = vunpack.c.l.b16 %v4020
        %v4434 = vunpack.c.h.b16 %v4020
        %v4435 = vunpack.c.l.b16 %v4021
        %v4436 = vunpack.c.h.b16 %v4021
        %v4437 = vunpack.c.l.b16 %v4022
        %v4438 = vunpack.c.h.b16 %v4022
        %v4439 = vunpack.c.l.b16 %v4023
        %v4440 = vunpack.c.h.b16 %v4023
        %v4441 = vunpack.c.l.b16 %v4024
        %v4442 = vunpack.c.h.b16 %v4024
        %v4443 = vunpack.c.l.b16 %v4025
        %v4444 = vunpack.c.h.b16 %v4025
        %v4445 = vunpack.c.l.b16 %v4026
        %v4446 = vunpack.c.h.b16 %v4026
        %v4447 = vunpack.c.l.b16 %v4027
        %v4448 = vunpack.c.h.b16 %v4027
        %v4449 = vunpack.c.l.b16 %v4028
        %v4450 = vunpack.c.h.b16 %v4028
        %v4451 = vunpack.c.l.b16 %v4029
        %v4452 = vunpack.c.h.b16 %v4029
        %v4453 = vunpack.c.l.b16 %v4030
        %v4454 = vunpack.c.h.b16 %v4030
        %v4455 = vunpack.c.l.b16 %v4031
        %v4456 = vunpack.c.h.b16 %v4031
        %v4457 = vunpack.c.l.b16 %v4032
        %v4458 = vunpack.c.h.b16 %v4032
        %v4459 = vunpack.c.l.b16 %v4033
        %v4460 = vunpack.c.h.b16 %v4033
        %v4461 = vunpack.c.l.b16 %v4034
        %v4462 = vunpack.c.h.b16 %v4034
        %v4463 = vunpack.c.l.b16 %v4035
        %v4464 = vunpack.c.h.b16 %v4035
        %v4465 = vpack.c.b16 %v4403, %v4401
        %v4466 = vpack.c.b16 %v4404, %v4402
        %v4467 = vpack.c.b16 %v4407, %v4405
        %v4468 = vpack.c.b16 %v4408, %v4406
        %v4469 = vpack.c.b16 %v4411, %v4409
        %v4470 = vpack.c.b16 %v4412, %v4410
        %v4471 = vpack.c.b16 %v4415, %v4413
        %v4472 = vpack.c.b16 %v4416, %v4414
        %v4473 = vpack.c.b16 %v4419, %v4417
        %v4474 = vpack.c.b16 %v4420, %v4418
        %v4475 = vpack.c.b16 %v4423, %v4421
        %v4476 = vpack.c.b16 %v4424, %v4422
        %v4477 = vpack.c.b16 %v4427, %v4425
        %v4478 = vpack.c.b16 %v4428, %v4426
        %v4479 = vpack.c.b16 %v4431, %v4429
        %v4480 = vpack.c.b16 %v4432, %v4430
        %v4481 = vpack.c.b16 %v4435, %v4433
        %v4482 = vpack.c.b16 %v4436, %v4434
        %v4483 = vpack.c.b16 %v4439, %v4437
        %v4484 = vpack.c.b16 %v4440, %v4438
        %v4485 = vpack.c.b16 %v4443, %v4441
        %v4486 = vpack.c.b16 %v4444, %v4442
        %v4487 = vpack.c.b16 %v4447, %v4445
        %v4488 = vpack.c.b16 %v4448, %v4446
        %v4489 = vpack.c.b16 %v4451, %v4449
        %v4490 = vpack.c.b16 %v4452, %v4450
        %v4491 = vpack.c.b16 %v4455, %v4453
        %v4492 = vpack.c.b16 %v4456, %v4454
        %v4493 = vpack.c.b16 %v4459, %v4457
        %v4494 = vpack.c.b16 %v4460, %v4458
        %v4495 = vpack.c.b16 %v4463, %v4461
        %v4496 = vpack.c.b16 %v4464, %v4462
        %4529 = vmatprep.subr.bf16.mxu0 %v4480
        %4530 = vmatpush1.bf16.msra.mxu0 %v4479
        %4531 = vmatprep.subr.bf16.mxu0 %v4478
        %4532 = vmatpush1.bf16.msra.mxu0 %v4477
        %4533 = vmatprep.subr.bf16.mxu0 %v4476
        %4534 = vmatpush1.bf16.msra.mxu0 %v4475
        %4535 = vmatprep.subr.bf16.mxu0 %v4474
        %4536 = vmatpush1.bf16.msra.mxu0 %v4473
        %4537 = vmatprep.subr.bf16.mxu0 %v4472
        %4538 = vmatpush1.bf16.msra.mxu0 %v4471
        %4539 = vmatprep.subr.bf16.mxu0 %v4470
        %4540 = vmatpush1.bf16.msra.mxu0 %v4469
        %4541 = vmatprep.subr.bf16.mxu0 %v4468
        %4542 = vmatpush1.bf16.msra.mxu0 %v4467
        %4543 = vmatprep.subr.bf16.mxu0 %v4466
        %4544 = vmatpush1.bf16.msra.mxu0 %v4465
        %4545 = vmatprep.subr.bf16.mxu0 %v4496
        %4546 = vmatpush2.bf16.msra.mxu0 %v4495
        %4547 = vmatprep.subr.bf16.mxu0 %v4494
        %4548 = vmatpush2.bf16.msra.mxu0 %v4493
        %4549 = vmatprep.subr.bf16.mxu0 %v4492
        %4550 = vmatpush2.bf16.msra.mxu0 %v4491
        %4551 = vmatprep.subr.bf16.mxu0 %v4490
        %4552 = vmatpush2.bf16.msra.mxu0 %v4489
        %4553 = vmatprep.subr.bf16.mxu0 %v4488
        %4554 = vmatpush2.bf16.msra.mxu0 %v4487
        %4555 = vmatprep.subr.bf16.mxu0 %v4486
        %4556 = vmatpush2.bf16.msra.mxu0 %v4485
        %4557 = vmatprep.subr.bf16.mxu0 %v4484
        %4558 = vmatpush2.bf16.msra.mxu0 %v4483
        %4559 = vmatprep.subr.bf16.mxu0 %v4482
        %4560 = vmatpush2.bf16.msra.mxu0 %v4481
        %4561 = vmatprep.mubr.bf16.mxu0 %v3966
        %4562 = vmatmul.mubr.bf16.gmra.mxu0 %v3965
        %v4563 = vpop.f32.mrf.mxu0
        %v4564 = vadd.f32 0.0, %v4563
        %v4565 = vpop.f32.mrf.mxu0
        %v4566 = vadd.f32 0.0, %v4565
        %v4567 = vpop.f32.mrf.mxu0
        %v4568 = vadd.f32 0.0, %v4567
        %v4569 = vpop.f32.mrf.mxu0
        %v4570 = vadd.f32 0.0, %v4569
        %4571 = vdwg.mxu0
        %v4572 = vpack.c.bf16 %v4568, %v4564
        %v4573 = vpack.c.bf16 %v4570, %v4566
        %v4575 = vsel %vm1593, %v3970, 0
        %4577 = vmatprep.subr.bf16.mxu0 0
        %4578 = vmatpush1.bf16.msra.mxu0 0
        %4579 = vmatprep.subr.bf16.mxu0 0
        %4580 = vmatpush1.bf16.msra.mxu0 0
        %4581 = vmatprep.subr.bf16.mxu0 0
        %4582 = vmatpush1.bf16.msra.mxu0 0
        %4583 = vmatprep.subr.bf16.mxu0 0
        %4584 = vmatpush1.bf16.msra.mxu0 0
        %4585 = vmatprep.subr.bf16.mxu0 0
        %4586 = vmatpush1.bf16.msra.mxu0 0
        %4587 = vmatprep.subr.bf16.mxu0 0
        %4588 = vmatpush1.bf16.msra.mxu0 0
        %4589 = vmatprep.subr.bf16.mxu0 0
        %4590 = vmatpush1.bf16.msra.mxu0 0
        %4591 = vmatprep.subr.bf16.mxu0 %v4368
        %4592 = vmatpush1.bf16.msra.mxu0 %v4367
        %4593 = vmatprep.subr.bf16.mxu0 0
        %4594 = vmatpush2.bf16.msra.mxu0 0
        %4595 = vmatprep.subr.bf16.mxu0 0
        %4596 = vmatpush2.bf16.msra.mxu0 0
        %4597 = vmatprep.subr.bf16.mxu0 0
        %4598 = vmatpush2.bf16.msra.mxu0 0
        %4599 = vmatprep.subr.bf16.mxu0 0
        %4600 = vmatpush2.bf16.msra.mxu0 0
        %4601 = vmatprep.subr.bf16.mxu0 0
        %4602 = vmatpush2.bf16.msra.mxu0 0
        %4603 = vmatprep.subr.bf16.mxu0 0
        %4604 = vmatpush2.bf16.msra.mxu0 0
        %4605 = vmatprep.subr.bf16.mxu0 0
        %4606 = vmatpush2.bf16.msra.mxu0 0
        %4607 = vmatprep.subr.bf16.mxu0 0
        %4608 = vmatpush2.bf16.msra.mxu0 0
        %4609 = vmatprep.mubr.bf16.mxu0 0
        %4610 = vmatmul.mubr.bf16.gmra.mxu0 %v4575
        %v4611 = vpop.f32.mrf.mxu0
        %v4612 = vadd.f32 0.0, %v4611
        %v4613 = vpop.f32.mrf.mxu0
        %v4614 = vadd.f32 0.0, %v4613
        %v4615 = vpop.f32.mrf.mxu0
        %v4616 = vpop.f32.mrf.mxu0
        %4617 = vdwg.mxu0
        %v4619 = vsel %vm1593, %v3968, 0
        %4621 = vmatprep.subr.bf16.mxu0 0
        %4622 = vmatpush1.bf16.msra.mxu0 0
        %4623 = vmatprep.subr.bf16.mxu0 0
        %4624 = vmatpush1.bf16.msra.mxu0 0
        %4625 = vmatprep.subr.bf16.mxu0 0
        %4626 = vmatpush1.bf16.msra.mxu0 0
        %4627 = vmatprep.subr.bf16.mxu0 0
        %4628 = vmatpush1.bf16.msra.mxu0 0
        %4629 = vmatprep.subr.bf16.mxu0 0
        %4630 = vmatpush1.bf16.msra.mxu0 0
        %4631 = vmatprep.subr.bf16.mxu0 0
        %4632 = vmatpush1.bf16.msra.mxu0 0
        %4633 = vmatprep.subr.bf16.mxu0 0
        %4634 = vmatpush1.bf16.msra.mxu0 0
        %4635 = vmatprep.subr.bf16.mxu0 %v3966
        %4636 = vmatpush1.bf16.msra.mxu0 %v3965
        %4637 = vmatprep.subr.bf16.mxu0 0
        %4638 = vmatpush2.bf16.msra.mxu0 0
        %4639 = vmatprep.subr.bf16.mxu0 0
        %4640 = vmatpush2.bf16.msra.mxu0 0
        %4641 = vmatprep.subr.bf16.mxu0 0
        %4642 = vmatpush2.bf16.msra.mxu0 0
        %4643 = vmatprep.subr.bf16.mxu0 0
        %4644 = vmatpush2.bf16.msra.mxu0 0
        %4645 = vmatprep.subr.bf16.mxu0 0
        %4646 = vmatpush2.bf16.msra.mxu0 0
        %4647 = vmatprep.subr.bf16.mxu0 0
        %4648 = vmatpush2.bf16.msra.mxu0 0
        %4649 = vmatprep.subr.bf16.mxu0 0
        %4650 = vmatpush2.bf16.msra.mxu0 0
        %4651 = vmatprep.subr.bf16.mxu0 0
        %4652 = vmatpush2.bf16.msra.mxu0 0
        %4653 = vmatprep.mubr.bf16.mxu0 0
        %4654 = vmatmul.mubr.bf16.gmra.mxu0 %v4619
        %v4655 = vpop.f32.mrf.mxu0
        %v4656 = vadd.f32 %v4612, %v4655
        %v4657 = vpop.f32.mrf.mxu0
        %v4658 = vadd.f32 %v4614, %v4657
        %v4659 = vpop.f32.mrf.mxu0
        %v4660 = vpop.f32.mrf.mxu0
        %4661 = vdwg.mxu0
        %v4663 = vsel %vm1593, %v3967, 0
        %4665 = vmatprep.subr.bf16.mxu0 0
        %4666 = vmatpush1.bf16.msra.mxu0 0
        %4667 = vmatprep.subr.bf16.mxu0 0
        %4668 = vmatpush1.bf16.msra.mxu0 0
        %4669 = vmatprep.subr.bf16.mxu0 0
        %4670 = vmatpush1.bf16.msra.mxu0 0
        %4671 = vmatprep.subr.bf16.mxu0 0
        %4672 = vmatpush1.bf16.msra.mxu0 0
        %4673 = vmatprep.subr.bf16.mxu0 0
        %4674 = vmatpush1.bf16.msra.mxu0 0
        %4675 = vmatprep.subr.bf16.mxu0 0
        %4676 = vmatpush1.bf16.msra.mxu0 0
        %4677 = vmatprep.subr.bf16.mxu0 0
        %4678 = vmatpush1.bf16.msra.mxu0 0
        %4679 = vmatprep.subr.bf16.mxu0 %v4573
        %4680 = vmatpush1.bf16.msra.mxu0 %v4572
        %4681 = vmatprep.subr.bf16.mxu0 0
        %4682 = vmatpush2.bf16.msra.mxu0 0
        %4683 = vmatprep.subr.bf16.mxu0 0
        %4684 = vmatpush2.bf16.msra.mxu0 0
        %4685 = vmatprep.subr.bf16.mxu0 0
        %4686 = vmatpush2.bf16.msra.mxu0 0
        %4687 = vmatprep.subr.bf16.mxu0 0
        %4688 = vmatpush2.bf16.msra.mxu0 0
        %4689 = vmatprep.subr.bf16.mxu0 0
        %4690 = vmatpush2.bf16.msra.mxu0 0
        %4691 = vmatprep.subr.bf16.mxu0 0
        %4692 = vmatpush2.bf16.msra.mxu0 0
        %4693 = vmatprep.subr.bf16.mxu0 0
        %4694 = vmatpush2.bf16.msra.mxu0 0
        %4695 = vmatprep.subr.bf16.mxu0 0
        %4696 = vmatpush2.bf16.msra.mxu0 0
        %4697 = vmatprep.mubr.bf16.mxu0 0
        %4698 = vmatmul.mubr.bf16.gmra.mxu0 %v4663
        %v4699 = vpop.f32.mrf.mxu0
        %v4700 = vadd.f32 0.0, %v4699
        %v4701 = vpop.f32.mrf.mxu0
        %v4702 = vadd.f32 0.0, %v4701
        %v4703 = vpop.f32.mrf.mxu0
        %v4704 = vpop.f32.mrf.mxu0
        %4705 = vdwg.mxu0
        %v4707 = vsel %vm1593, %v3969, 0
        %4709 = vmatprep.subr.bf16.mxu0 0
        %4710 = vmatpush1.bf16.msra.mxu0 0
        %4711 = vmatprep.subr.bf16.mxu0 0
        %4712 = vmatpush1.bf16.msra.mxu0 0
        %4713 = vmatprep.subr.bf16.mxu0 0
        %4714 = vmatpush1.bf16.msra.mxu0 0
        %4715 = vmatprep.subr.bf16.mxu0 0
        %4716 = vmatpush1.bf16.msra.mxu0 0
        %4717 = vmatprep.subr.bf16.mxu0 0
        %4718 = vmatpush1.bf16.msra.mxu0 0
        %4719 = vmatprep.subr.bf16.mxu0 0
        %4720 = vmatpush1.bf16.msra.mxu0 0
        %4721 = vmatprep.subr.bf16.mxu0 0
        %4722 = vmatpush1.bf16.msra.mxu0 0
        %4723 = vmatprep.subr.bf16.mxu0 %v3966
        %4724 = vmatpush1.bf16.msra.mxu0 %v3965
        %4725 = vmatprep.subr.bf16.mxu0 0
        %4726 = vmatpush2.bf16.msra.mxu0 0
        %4727 = vmatprep.subr.bf16.mxu0 0
        %4728 = vmatpush2.bf16.msra.mxu0 0
        %4729 = vmatprep.subr.bf16.mxu0 0
        %4730 = vmatpush2.bf16.msra.mxu0 0
        %4731 = vmatprep.subr.bf16.mxu0 0
        %4732 = vmatpush2.bf16.msra.mxu0 0
        %4733 = vmatprep.subr.bf16.mxu0 0
        %4734 = vmatpush2.bf16.msra.mxu0 0
        %4735 = vmatprep.subr.bf16.mxu0 0
        %4736 = vmatpush2.bf16.msra.mxu0 0
        %4737 = vmatprep.subr.bf16.mxu0 0
        %4738 = vmatpush2.bf16.msra.mxu0 0
        %4739 = vmatprep.subr.bf16.mxu0 0
        %4740 = vmatpush2.bf16.msra.mxu0 0
        %4741 = vmatprep.mubr.bf16.mxu0 0
        %4742 = vmatmul.mubr.bf16.gmra.mxu0 %v4707
        %v4743 = vpop.f32.mrf.mxu0
        %v4744 = vadd.f32 %v4700, %v4743
        %v4745 = vpop.f32.mrf.mxu0
        %v4746 = vadd.f32 %v4702, %v4745
        %v4747 = vpop.f32.mrf.mxu0
        %v4748 = vpop.f32.mrf.mxu0
        %4749 = vdwg.mxu0
        %v4750 = vpack.c.bf16 %v4656, %v4656
        %v4751 = vpack.c.bf16 %v4658, %v4658
        %v4752 = vpack.c.bf16 %v4744, %v4744
        %v4753 = vpack.c.bf16 %v4746, %v4746
        %v4818 = vunpack.c.l.b16 %v4100
        %v4819 = vunpack.c.h.b16 %v4100
        %v4820 = vunpack.c.l.b16 %v4101
        %v4821 = vunpack.c.h.b16 %v4101
        %v4822 = vunpack.c.l.b16 %v4102
        %v4823 = vunpack.c.h.b16 %v4102
        %v4824 = vunpack.c.l.b16 %v4103
        %v4825 = vunpack.c.h.b16 %v4103
        %v4826 = vunpack.c.l.b16 %v4104
        %v4827 = vunpack.c.h.b16 %v4104
        %v4828 = vunpack.c.l.b16 %v4105
        %v4829 = vunpack.c.h.b16 %v4105
        %v4830 = vunpack.c.l.b16 %v4106
        %v4831 = vunpack.c.h.b16 %v4106
        %v4832 = vunpack.c.l.b16 %v4107
        %v4833 = vunpack.c.h.b16 %v4107
        %v4834 = vunpack.c.l.b16 %v4108
        %v4835 = vunpack.c.h.b16 %v4108
        %v4836 = vunpack.c.l.b16 %v4109
        %v4837 = vunpack.c.h.b16 %v4109
        %v4838 = vunpack.c.l.b16 %v4110
        %v4839 = vunpack.c.h.b16 %v4110
        %v4840 = vunpack.c.l.b16 %v4111
        %v4841 = vunpack.c.h.b16 %v4111
        %v4842 = vunpack.c.l.b16 %v4112
        %v4843 = vunpack.c.h.b16 %v4112
        %v4844 = vunpack.c.l.b16 %v4113
        %v4845 = vunpack.c.h.b16 %v4113
        %v4846 = vunpack.c.l.b16 %v4114
        %v4847 = vunpack.c.h.b16 %v4114
        %v4848 = vunpack.c.l.b16 %v4115
        %v4849 = vunpack.c.h.b16 %v4115
        %v4850 = vunpack.c.l.b16 %v4116
        %v4851 = vunpack.c.h.b16 %v4116
        %v4852 = vunpack.c.l.b16 %v4117
        %v4853 = vunpack.c.h.b16 %v4117
        %v4854 = vunpack.c.l.b16 %v4118
        %v4855 = vunpack.c.h.b16 %v4118
        %v4856 = vunpack.c.l.b16 %v4119
        %v4857 = vunpack.c.h.b16 %v4119
        %v4858 = vunpack.c.l.b16 %v4120
        %v4859 = vunpack.c.h.b16 %v4120
        %v4860 = vunpack.c.l.b16 %v4121
        %v4861 = vunpack.c.h.b16 %v4121
        %v4862 = vunpack.c.l.b16 %v4122
        %v4863 = vunpack.c.h.b16 %v4122
        %v4864 = vunpack.c.l.b16 %v4123
        %v4865 = vunpack.c.h.b16 %v4123
        %v4866 = vunpack.c.l.b16 %v4124
        %v4867 = vunpack.c.h.b16 %v4124
        %v4868 = vunpack.c.l.b16 %v4125
        %v4869 = vunpack.c.h.b16 %v4125
        %v4870 = vunpack.c.l.b16 %v4126
        %v4871 = vunpack.c.h.b16 %v4126
        %v4872 = vunpack.c.l.b16 %v4127
        %v4873 = vunpack.c.h.b16 %v4127
        %v4874 = vunpack.c.l.b16 %v4128
        %v4875 = vunpack.c.h.b16 %v4128
        %v4876 = vunpack.c.l.b16 %v4129
        %v4877 = vunpack.c.h.b16 %v4129
        %v4878 = vunpack.c.l.b16 %v4130
        %v4879 = vunpack.c.h.b16 %v4130
        %v4880 = vunpack.c.l.b16 %v4131
        %v4881 = vunpack.c.h.b16 %v4131
        %v4882 = vunpack.c.l.b16 %v4132
        %v4883 = vunpack.c.h.b16 %v4132
        %v4884 = vunpack.c.l.b16 %v4133
        %v4885 = vunpack.c.h.b16 %v4133
        %v4886 = vunpack.c.l.b16 %v4134
        %v4887 = vunpack.c.h.b16 %v4134
        %v4888 = vunpack.c.l.b16 %v4135
        %v4889 = vunpack.c.h.b16 %v4135
        %v4890 = vunpack.c.l.b16 %v4136
        %v4891 = vunpack.c.h.b16 %v4136
        %v4892 = vunpack.c.l.b16 %v4137
        %v4893 = vunpack.c.h.b16 %v4137
        %v4894 = vunpack.c.l.b16 %v4138
        %v4895 = vunpack.c.h.b16 %v4138
        %v4896 = vunpack.c.l.b16 %v4139
        %v4897 = vunpack.c.h.b16 %v4139
        %v4898 = vunpack.c.l.b16 %v4140
        %v4899 = vunpack.c.h.b16 %v4140
        %v4900 = vunpack.c.l.b16 %v4141
        %v4901 = vunpack.c.h.b16 %v4141
        %v4902 = vunpack.c.l.b16 %v4142
        %v4903 = vunpack.c.h.b16 %v4142
        %v4904 = vunpack.c.l.b16 %v4143
        %v4905 = vunpack.c.h.b16 %v4143
        %v4906 = vunpack.c.l.b16 %v4144
        %v4907 = vunpack.c.h.b16 %v4144
        %v4908 = vunpack.c.l.b16 %v4145
        %v4909 = vunpack.c.h.b16 %v4145
        %v4910 = vunpack.c.l.b16 %v4146
        %v4911 = vunpack.c.h.b16 %v4146
        %v4912 = vunpack.c.l.b16 %v4147
        %v4913 = vunpack.c.h.b16 %v4147
        %v4914 = vunpack.c.l.b16 %v4148
        %v4915 = vunpack.c.h.b16 %v4148
        %v4916 = vunpack.c.l.b16 %v4149
        %v4917 = vunpack.c.h.b16 %v4149
        %v4918 = vunpack.c.l.b16 %v4150
        %v4919 = vunpack.c.h.b16 %v4150
        %v4920 = vunpack.c.l.b16 %v4151
        %v4921 = vunpack.c.h.b16 %v4151
        %v4922 = vunpack.c.l.b16 %v4152
        %v4923 = vunpack.c.h.b16 %v4152
        %v4924 = vunpack.c.l.b16 %v4153
        %v4925 = vunpack.c.h.b16 %v4153
        %v4926 = vunpack.c.l.b16 %v4154
        %v4927 = vunpack.c.h.b16 %v4154
        %v4928 = vunpack.c.l.b16 %v4155
        %v4929 = vunpack.c.h.b16 %v4155
        %v4930 = vunpack.c.l.b16 %v4156
        %v4931 = vunpack.c.h.b16 %v4156
        %v4932 = vunpack.c.l.b16 %v4157
        %v4933 = vunpack.c.h.b16 %v4157
        %v4934 = vunpack.c.l.b16 %v4158
        %v4935 = vunpack.c.h.b16 %v4158
        %v4936 = vunpack.c.l.b16 %v4159
        %v4937 = vunpack.c.h.b16 %v4159
        %v4938 = vunpack.c.l.b16 %v4160
        %v4939 = vunpack.c.h.b16 %v4160
        %v4940 = vunpack.c.l.b16 %v4161
        %v4941 = vunpack.c.h.b16 %v4161
        %v4942 = vunpack.c.l.b16 %v4162
        %v4943 = vunpack.c.h.b16 %v4162
        %v4944 = vunpack.c.l.b16 %v4163
        %v4945 = vunpack.c.h.b16 %v4163
        %v4946 = vpack.c.b16 %v4822, %v4818
        %v4947 = vpack.c.b16 %v4823, %v4819
        %v4948 = vpack.c.b16 %v4824, %v4820
        %v4949 = vpack.c.b16 %v4825, %v4821
        %v4950 = vpack.c.b16 %v4830, %v4826
        %v4951 = vpack.c.b16 %v4831, %v4827
        %v4952 = vpack.c.b16 %v4832, %v4828
        %v4953 = vpack.c.b16 %v4833, %v4829
        %v4954 = vpack.c.b16 %v4838, %v4834
        %v4955 = vpack.c.b16 %v4839, %v4835
        %v4956 = vpack.c.b16 %v4840, %v4836
        %v4957 = vpack.c.b16 %v4841, %v4837
        %v4958 = vpack.c.b16 %v4846, %v4842
        %v4959 = vpack.c.b16 %v4847, %v4843
        %v4960 = vpack.c.b16 %v4848, %v4844
        %v4961 = vpack.c.b16 %v4849, %v4845
        %v4962 = vpack.c.b16 %v4854, %v4850
        %v4963 = vpack.c.b16 %v4855, %v4851
        %v4964 = vpack.c.b16 %v4856, %v4852
        %v4965 = vpack.c.b16 %v4857, %v4853
        %v4966 = vpack.c.b16 %v4862, %v4858
        %v4967 = vpack.c.b16 %v4863, %v4859
        %v4968 = vpack.c.b16 %v4864, %v4860
        %v4969 = vpack.c.b16 %v4865, %v4861
        %v4970 = vpack.c.b16 %v4870, %v4866
        %v4971 = vpack.c.b16 %v4871, %v4867
        %v4972 = vpack.c.b16 %v4872, %v4868
        %v4973 = vpack.c.b16 %v4873, %v4869
        %v4974 = vpack.c.b16 %v4878, %v4874
        %v4975 = vpack.c.b16 %v4879, %v4875
        %v4976 = vpack.c.b16 %v4880, %v4876
        %v4977 = vpack.c.b16 %v4881, %v4877
        %v4978 = vpack.c.b16 %v4886, %v4882
        %v4979 = vpack.c.b16 %v4887, %v4883
        %v4980 = vpack.c.b16 %v4888, %v4884
        %v4981 = vpack.c.b16 %v4889, %v4885
        %v4982 = vpack.c.b16 %v4894, %v4890
        %v4983 = vpack.c.b16 %v4895, %v4891
        %v4984 = vpack.c.b16 %v4896, %v4892
        %v4985 = vpack.c.b16 %v4897, %v4893
        %v4986 = vpack.c.b16 %v4902, %v4898
        %v4987 = vpack.c.b16 %v4903, %v4899
        %v4988 = vpack.c.b16 %v4904, %v4900
        %v4989 = vpack.c.b16 %v4905, %v4901
        %v4990 = vpack.c.b16 %v4910, %v4906
        %v4991 = vpack.c.b16 %v4911, %v4907
        %v4992 = vpack.c.b16 %v4912, %v4908
        %v4993 = vpack.c.b16 %v4913, %v4909
        %v4994 = vpack.c.b16 %v4918, %v4914
        %v4995 = vpack.c.b16 %v4919, %v4915
        %v4996 = vpack.c.b16 %v4920, %v4916
        %v4997 = vpack.c.b16 %v4921, %v4917
        %v4998 = vpack.c.b16 %v4926, %v4922
        %v4999 = vpack.c.b16 %v4927, %v4923
        %v5000 = vpack.c.b16 %v4928, %v4924
        %v5001 = vpack.c.b16 %v4929, %v4925
        %v5002 = vpack.c.b16 %v4934, %v4930
        %v5003 = vpack.c.b16 %v4935, %v4931
        %v5004 = vpack.c.b16 %v4936, %v4932
        %v5005 = vpack.c.b16 %v4937, %v4933
        %v5006 = vpack.c.b16 %v4942, %v4938
        %v5007 = vpack.c.b16 %v4943, %v4939
        %v5008 = vpack.c.b16 %v4944, %v4940
        %v5009 = vpack.c.b16 %v4945, %v4941
        %5074 = vmatprep.subr.bf16.mxu0 %v4975
        %5075 = vmatpush1.bf16.msra.mxu0 %v4974
        %5076 = vmatprep.subr.bf16.mxu0 %v4971
        %5077 = vmatpush1.bf16.msra.mxu0 %v4970
        %5078 = vmatprep.subr.bf16.mxu0 %v4967
        %5079 = vmatpush1.bf16.msra.mxu0 %v4966
        %5080 = vmatprep.subr.bf16.mxu0 %v4963
        %5081 = vmatpush1.bf16.msra.mxu0 %v4962
        %5082 = vmatprep.subr.bf16.mxu0 %v4959
        %5083 = vmatpush1.bf16.msra.mxu0 %v4958
        %5084 = vmatprep.subr.bf16.mxu0 %v4955
        %5085 = vmatpush1.bf16.msra.mxu0 %v4954
        %5086 = vmatprep.subr.bf16.mxu0 %v4951
        %5087 = vmatpush1.bf16.msra.mxu0 %v4950
        %5088 = vmatprep.subr.bf16.mxu0 %v4947
        %5089 = vmatpush1.bf16.msra.mxu0 %v4946
        %5090 = vmatprep.subr.bf16.mxu0 %v5007
        %5091 = vmatpush2.bf16.msra.mxu0 %v5006
        %5092 = vmatprep.subr.bf16.mxu0 %v5003
        %5093 = vmatpush2.bf16.msra.mxu0 %v5002
        %5094 = vmatprep.subr.bf16.mxu0 %v4999
        %5095 = vmatpush2.bf16.msra.mxu0 %v4998
        %5096 = vmatprep.subr.bf16.mxu0 %v4995
        %5097 = vmatpush2.bf16.msra.mxu0 %v4994
        %5098 = vmatprep.subr.bf16.mxu0 %v4991
        %5099 = vmatpush2.bf16.msra.mxu0 %v4990
        %5100 = vmatprep.subr.bf16.mxu0 %v4987
        %5101 = vmatpush2.bf16.msra.mxu0 %v4986
        %5102 = vmatprep.subr.bf16.mxu0 %v4983
        %5103 = vmatpush2.bf16.msra.mxu0 %v4982
        %5104 = vmatprep.subr.bf16.mxu0 %v4979
        %5105 = vmatpush2.bf16.msra.mxu0 %v4978
        %5106 = vmatprep.mubr.bf16.mxu0 %v4753
        %5107 = vmatmul.mubr.bf16.gmra.mxu0 %v4752
        %v5108 = vpop.f32.mrf.mxu0
        %v5109 = vadd.f32 0.0, %v5108
        %v5110 = vpop.f32.mrf.mxu0
        %v5111 = vadd.f32 0.0, %v5110
        %v5112 = vpop.f32.mrf.mxu0
        %v5113 = vpop.f32.mrf.mxu0
        %5114 = vdwg.mxu0
        %5115 = vmatprep.subr.bf16.mxu0 %v4977
        %5116 = vmatpush1.bf16.msra.mxu0 %v4976
        %5117 = vmatprep.subr.bf16.mxu0 %v4973
        %5118 = vmatpush1.bf16.msra.mxu0 %v4972
        %5119 = vmatprep.subr.bf16.mxu0 %v4969
        %5120 = vmatpush1.bf16.msra.mxu0 %v4968
        %5121 = vmatprep.subr.bf16.mxu0 %v4965
        %5122 = vmatpush1.bf16.msra.mxu0 %v4964
        %5123 = vmatprep.subr.bf16.mxu0 %v4961
        %5124 = vmatpush1.bf16.msra.mxu0 %v4960
        %5125 = vmatprep.subr.bf16.mxu0 %v4957
        %5126 = vmatpush1.bf16.msra.mxu0 %v4956
        %5127 = vmatprep.subr.bf16.mxu0 %v4953
        %5128 = vmatpush1.bf16.msra.mxu0 %v4952
        %5129 = vmatprep.subr.bf16.mxu0 %v4949
        %5130 = vmatpush1.bf16.msra.mxu0 %v4948
        %5131 = vmatprep.subr.bf16.mxu0 %v5009
        %5132 = vmatpush2.bf16.msra.mxu0 %v5008
        %5133 = vmatprep.subr.bf16.mxu0 %v5005
        %5134 = vmatpush2.bf16.msra.mxu0 %v5004
        %5135 = vmatprep.subr.bf16.mxu0 %v5001
        %5136 = vmatpush2.bf16.msra.mxu0 %v5000
        %5137 = vmatprep.subr.bf16.mxu0 %v4997
        %5138 = vmatpush2.bf16.msra.mxu0 %v4996
        %5139 = vmatprep.subr.bf16.mxu0 %v4993
        %5140 = vmatpush2.bf16.msra.mxu0 %v4992
        %5141 = vmatprep.subr.bf16.mxu0 %v4989
        %5142 = vmatpush2.bf16.msra.mxu0 %v4988
        %5143 = vmatprep.subr.bf16.mxu0 %v4985
        %5144 = vmatpush2.bf16.msra.mxu0 %v4984
        %5145 = vmatprep.subr.bf16.mxu0 %v4981
        %5146 = vmatpush2.bf16.msra.mxu0 %v4980
        %5147 = vmatprep.mubr.bf16.mxu0 %v4753
        %5148 = vmatmul.mubr.bf16.gmra.mxu0 %v4752
        %v5149 = vpop.f32.mrf.mxu0
        %v5150 = vadd.f32 0.0, %v5149
        %v5151 = vpop.f32.mrf.mxu0
        %v5152 = vadd.f32 0.0, %v5151
        %v5153 = vpop.f32.mrf.mxu0
        %v5154 = vpop.f32.mrf.mxu0
        %5155 = vdwg.mxu0
        %v5220 = vunpack.c.l.b16 %v4036
        %v5221 = vunpack.c.h.b16 %v4036
        %v5222 = vunpack.c.l.b16 %v4037
        %v5223 = vunpack.c.h.b16 %v4037
        %v5224 = vunpack.c.l.b16 %v4038
        %v5225 = vunpack.c.h.b16 %v4038
        %v5226 = vunpack.c.l.b16 %v4039
        %v5227 = vunpack.c.h.b16 %v4039
        %v5228 = vunpack.c.l.b16 %v4040
        %v5229 = vunpack.c.h.b16 %v4040
        %v5230 = vunpack.c.l.b16 %v4041
        %v5231 = vunpack.c.h.b16 %v4041
        %v5232 = vunpack.c.l.b16 %v4042
        %v5233 = vunpack.c.h.b16 %v4042
        %v5234 = vunpack.c.l.b16 %v4043
        %v5235 = vunpack.c.h.b16 %v4043
        %v5236 = vunpack.c.l.b16 %v4044
        %v5237 = vunpack.c.h.b16 %v4044
        %v5238 = vunpack.c.l.b16 %v4045
        %v5239 = vunpack.c.h.b16 %v4045
        %v5240 = vunpack.c.l.b16 %v4046
        %v5241 = vunpack.c.h.b16 %v4046
        %v5242 = vunpack.c.l.b16 %v4047
        %v5243 = vunpack.c.h.b16 %v4047
        %v5244 = vunpack.c.l.b16 %v4048
        %v5245 = vunpack.c.h.b16 %v4048
        %v5246 = vunpack.c.l.b16 %v4049
        %v5247 = vunpack.c.h.b16 %v4049
        %v5248 = vunpack.c.l.b16 %v4050
        %v5249 = vunpack.c.h.b16 %v4050
        %v5250 = vunpack.c.l.b16 %v4051
        %v5251 = vunpack.c.h.b16 %v4051
        %v5252 = vunpack.c.l.b16 %v4052
        %v5253 = vunpack.c.h.b16 %v4052
        %v5254 = vunpack.c.l.b16 %v4053
        %v5255 = vunpack.c.h.b16 %v4053
        %v5256 = vunpack.c.l.b16 %v4054
        %v5257 = vunpack.c.h.b16 %v4054
        %v5258 = vunpack.c.l.b16 %v4055
        %v5259 = vunpack.c.h.b16 %v4055
        %v5260 = vunpack.c.l.b16 %v4056
        %v5261 = vunpack.c.h.b16 %v4056
        %v5262 = vunpack.c.l.b16 %v4057
        %v5263 = vunpack.c.h.b16 %v4057
        %v5264 = vunpack.c.l.b16 %v4058
        %v5265 = vunpack.c.h.b16 %v4058
        %v5266 = vunpack.c.l.b16 %v4059
        %v5267 = vunpack.c.h.b16 %v4059
        %v5268 = vunpack.c.l.b16 %v4060
        %v5269 = vunpack.c.h.b16 %v4060
        %v5270 = vunpack.c.l.b16 %v4061
        %v5271 = vunpack.c.h.b16 %v4061
        %v5272 = vunpack.c.l.b16 %v4062
        %v5273 = vunpack.c.h.b16 %v4062
        %v5274 = vunpack.c.l.b16 %v4063
        %v5275 = vunpack.c.h.b16 %v4063
        %v5276 = vunpack.c.l.b16 %v4064
        %v5277 = vunpack.c.h.b16 %v4064
        %v5278 = vunpack.c.l.b16 %v4065
        %v5279 = vunpack.c.h.b16 %v4065
        %v5280 = vunpack.c.l.b16 %v4066
        %v5281 = vunpack.c.h.b16 %v4066
        %v5282 = vunpack.c.l.b16 %v4067
        %v5283 = vunpack.c.h.b16 %v4067
        %v5284 = vunpack.c.l.b16 %v4068
        %v5285 = vunpack.c.h.b16 %v4068
        %v5286 = vunpack.c.l.b16 %v4069
        %v5287 = vunpack.c.h.b16 %v4069
        %v5288 = vunpack.c.l.b16 %v4070
        %v5289 = vunpack.c.h.b16 %v4070
        %v5290 = vunpack.c.l.b16 %v4071
        %v5291 = vunpack.c.h.b16 %v4071
        %v5292 = vunpack.c.l.b16 %v4072
        %v5293 = vunpack.c.h.b16 %v4072
        %v5294 = vunpack.c.l.b16 %v4073
        %v5295 = vunpack.c.h.b16 %v4073
        %v5296 = vunpack.c.l.b16 %v4074
        %v5297 = vunpack.c.h.b16 %v4074
        %v5298 = vunpack.c.l.b16 %v4075
        %v5299 = vunpack.c.h.b16 %v4075
        %v5300 = vunpack.c.l.b16 %v4076
        %v5301 = vunpack.c.h.b16 %v4076
        %v5302 = vunpack.c.l.b16 %v4077
        %v5303 = vunpack.c.h.b16 %v4077
        %v5304 = vunpack.c.l.b16 %v4078
        %v5305 = vunpack.c.h.b16 %v4078
        %v5306 = vunpack.c.l.b16 %v4079
        %v5307 = vunpack.c.h.b16 %v4079
        %v5308 = vunpack.c.l.b16 %v4080
        %v5309 = vunpack.c.h.b16 %v4080
        %v5310 = vunpack.c.l.b16 %v4081
        %v5311 = vunpack.c.h.b16 %v4081
        %v5312 = vunpack.c.l.b16 %v4082
        %v5313 = vunpack.c.h.b16 %v4082
        %v5314 = vunpack.c.l.b16 %v4083
        %v5315 = vunpack.c.h.b16 %v4083
        %v5316 = vunpack.c.l.b16 %v4084
        %v5317 = vunpack.c.h.b16 %v4084
        %v5318 = vunpack.c.l.b16 %v4085
        %v5319 = vunpack.c.h.b16 %v4085
        %v5320 = vunpack.c.l.b16 %v4086
        %v5321 = vunpack.c.h.b16 %v4086
        %v5322 = vunpack.c.l.b16 %v4087
        %v5323 = vunpack.c.h.b16 %v4087
        %v5324 = vunpack.c.l.b16 %v4088
        %v5325 = vunpack.c.h.b16 %v4088
        %v5326 = vunpack.c.l.b16 %v4089
        %v5327 = vunpack.c.h.b16 %v4089
        %v5328 = vunpack.c.l.b16 %v4090
        %v5329 = vunpack.c.h.b16 %v4090
        %v5330 = vunpack.c.l.b16 %v4091
        %v5331 = vunpack.c.h.b16 %v4091
        %v5332 = vunpack.c.l.b16 %v4092
        %v5333 = vunpack.c.h.b16 %v4092
        %v5334 = vunpack.c.l.b16 %v4093
        %v5335 = vunpack.c.h.b16 %v4093
        %v5336 = vunpack.c.l.b16 %v4094
        %v5337 = vunpack.c.h.b16 %v4094
        %v5338 = vunpack.c.l.b16 %v4095
        %v5339 = vunpack.c.h.b16 %v4095
        %v5340 = vunpack.c.l.b16 %v4096
        %v5341 = vunpack.c.h.b16 %v4096
        %v5342 = vunpack.c.l.b16 %v4097
        %v5343 = vunpack.c.h.b16 %v4097
        %v5344 = vunpack.c.l.b16 %v4098
        %v5345 = vunpack.c.h.b16 %v4098
        %v5346 = vunpack.c.l.b16 %v4099
        %v5347 = vunpack.c.h.b16 %v4099
        %v5348 = vpack.c.b16 %v5224, %v5220
        %v5349 = vpack.c.b16 %v5225, %v5221
        %v5350 = vpack.c.b16 %v5226, %v5222
        %v5351 = vpack.c.b16 %v5227, %v5223
        %v5352 = vpack.c.b16 %v5232, %v5228
        %v5353 = vpack.c.b16 %v5233, %v5229
        %v5354 = vpack.c.b16 %v5234, %v5230
        %v5355 = vpack.c.b16 %v5235, %v5231
        %v5356 = vpack.c.b16 %v5240, %v5236
        %v5357 = vpack.c.b16 %v5241, %v5237
        %v5358 = vpack.c.b16 %v5242, %v5238
        %v5359 = vpack.c.b16 %v5243, %v5239
        %v5360 = vpack.c.b16 %v5248, %v5244
        %v5361 = vpack.c.b16 %v5249, %v5245
        %v5362 = vpack.c.b16 %v5250, %v5246
        %v5363 = vpack.c.b16 %v5251, %v5247
        %v5364 = vpack.c.b16 %v5256, %v5252
        %v5365 = vpack.c.b16 %v5257, %v5253
        %v5366 = vpack.c.b16 %v5258, %v5254
        %v5367 = vpack.c.b16 %v5259, %v5255
        %v5368 = vpack.c.b16 %v5264, %v5260
        %v5369 = vpack.c.b16 %v5265, %v5261
        %v5370 = vpack.c.b16 %v5266, %v5262
        %v5371 = vpack.c.b16 %v5267, %v5263
        %v5372 = vpack.c.b16 %v5272, %v5268
        %v5373 = vpack.c.b16 %v5273, %v5269
        %v5374 = vpack.c.b16 %v5274, %v5270
        %v5375 = vpack.c.b16 %v5275, %v5271
        %v5376 = vpack.c.b16 %v5280, %v5276
        %v5377 = vpack.c.b16 %v5281, %v5277
        %v5378 = vpack.c.b16 %v5282, %v5278
        %v5379 = vpack.c.b16 %v5283, %v5279
        %v5380 = vpack.c.b16 %v5288, %v5284
        %v5381 = vpack.c.b16 %v5289, %v5285
        %v5382 = vpack.c.b16 %v5290, %v5286
        %v5383 = vpack.c.b16 %v5291, %v5287
        %v5384 = vpack.c.b16 %v5296, %v5292
        %v5385 = vpack.c.b16 %v5297, %v5293
        %v5386 = vpack.c.b16 %v5298, %v5294
        %v5387 = vpack.c.b16 %v5299, %v5295
        %v5388 = vpack.c.b16 %v5304, %v5300
        %v5389 = vpack.c.b16 %v5305, %v5301
        %v5390 = vpack.c.b16 %v5306, %v5302
        %v5391 = vpack.c.b16 %v5307, %v5303
        %v5392 = vpack.c.b16 %v5312, %v5308
        %v5393 = vpack.c.b16 %v5313, %v5309
        %v5394 = vpack.c.b16 %v5314, %v5310
        %v5395 = vpack.c.b16 %v5315, %v5311
        %v5396 = vpack.c.b16 %v5320, %v5316
        %v5397 = vpack.c.b16 %v5321, %v5317
        %v5398 = vpack.c.b16 %v5322, %v5318
        %v5399 = vpack.c.b16 %v5323, %v5319
        %v5400 = vpack.c.b16 %v5328, %v5324
        %v5401 = vpack.c.b16 %v5329, %v5325
        %v5402 = vpack.c.b16 %v5330, %v5326
        %v5403 = vpack.c.b16 %v5331, %v5327
        %v5404 = vpack.c.b16 %v5336, %v5332
        %v5405 = vpack.c.b16 %v5337, %v5333
        %v5406 = vpack.c.b16 %v5338, %v5334
        %v5407 = vpack.c.b16 %v5339, %v5335
        %v5408 = vpack.c.b16 %v5344, %v5340
        %v5409 = vpack.c.b16 %v5345, %v5341
        %v5410 = vpack.c.b16 %v5346, %v5342
        %v5411 = vpack.c.b16 %v5347, %v5343
        %5476 = vmatprep.subr.bf16.mxu0 %v5377
        %5477 = vmatpush1.bf16.msra.mxu0 %v5376
        %5478 = vmatprep.subr.bf16.mxu0 %v5373
        %5479 = vmatpush1.bf16.msra.mxu0 %v5372
        %5480 = vmatprep.subr.bf16.mxu0 %v5369
        %5481 = vmatpush1.bf16.msra.mxu0 %v5368
        %5482 = vmatprep.subr.bf16.mxu0 %v5365
        %5483 = vmatpush1.bf16.msra.mxu0 %v5364
        %5484 = vmatprep.subr.bf16.mxu0 %v5361
        %5485 = vmatpush1.bf16.msra.mxu0 %v5360
        %5486 = vmatprep.subr.bf16.mxu0 %v5357
        %5487 = vmatpush1.bf16.msra.mxu0 %v5356
        %5488 = vmatprep.subr.bf16.mxu0 %v5353
        %5489 = vmatpush1.bf16.msra.mxu0 %v5352
        %5490 = vmatprep.subr.bf16.mxu0 %v5349
        %5491 = vmatpush1.bf16.msra.mxu0 %v5348
        %5492 = vmatprep.subr.bf16.mxu0 %v5409
        %5493 = vmatpush2.bf16.msra.mxu0 %v5408
        %5494 = vmatprep.subr.bf16.mxu0 %v5405
        %5495 = vmatpush2.bf16.msra.mxu0 %v5404
        %5496 = vmatprep.subr.bf16.mxu0 %v5401
        %5497 = vmatpush2.bf16.msra.mxu0 %v5400
        %5498 = vmatprep.subr.bf16.mxu0 %v5397
        %5499 = vmatpush2.bf16.msra.mxu0 %v5396
        %5500 = vmatprep.subr.bf16.mxu0 %v5393
        %5501 = vmatpush2.bf16.msra.mxu0 %v5392
        %5502 = vmatprep.subr.bf16.mxu0 %v5389
        %5503 = vmatpush2.bf16.msra.mxu0 %v5388
        %5504 = vmatprep.subr.bf16.mxu0 %v5385
        %5505 = vmatpush2.bf16.msra.mxu0 %v5384
        %5506 = vmatprep.subr.bf16.mxu0 %v5381
        %5507 = vmatpush2.bf16.msra.mxu0 %v5380
        %5508 = vmatprep.mubr.bf16.mxu0 %v4751
        %5509 = vmatmul.mubr.bf16.gmra.mxu0 %v4750
        %v5510 = vpop.f32.mrf.mxu0
        %v5511 = vadd.f32 %v5109, %v5510
        %v5512 = vpop.f32.mrf.mxu0
        %v5513 = vadd.f32 %v5111, %v5512
        %v5514 = vpop.f32.mrf.mxu0
        %v5515 = vpop.f32.mrf.mxu0
        %5516 = vdwg.mxu0
        %5517 = vmatprep.subr.bf16.mxu0 %v5379
        %5518 = vmatpush1.bf16.msra.mxu0 %v5378
        %5519 = vmatprep.subr.bf16.mxu0 %v5375
        %5520 = vmatpush1.bf16.msra.mxu0 %v5374
        %5521 = vmatprep.subr.bf16.mxu0 %v5371
        %5522 = vmatpush1.bf16.msra.mxu0 %v5370
        %5523 = vmatprep.subr.bf16.mxu0 %v5367
        %5524 = vmatpush1.bf16.msra.mxu0 %v5366
        %5525 = vmatprep.subr.bf16.mxu0 %v5363
        %5526 = vmatpush1.bf16.msra.mxu0 %v5362
        %5527 = vmatprep.subr.bf16.mxu0 %v5359
        %5528 = vmatpush1.bf16.msra.mxu0 %v5358
        %5529 = vmatprep.subr.bf16.mxu0 %v5355
        %5530 = vmatpush1.bf16.msra.mxu0 %v5354
        %5531 = vmatprep.subr.bf16.mxu0 %v5351
        %5532 = vmatpush1.bf16.msra.mxu0 %v5350
        %5533 = vmatprep.subr.bf16.mxu0 %v5411
        %5534 = vmatpush2.bf16.msra.mxu0 %v5410
        %5535 = vmatprep.subr.bf16.mxu0 %v5407
        %5536 = vmatpush2.bf16.msra.mxu0 %v5406
        %5537 = vmatprep.subr.bf16.mxu0 %v5403
        %5538 = vmatpush2.bf16.msra.mxu0 %v5402
        %5539 = vmatprep.subr.bf16.mxu0 %v5399
        %5540 = vmatpush2.bf16.msra.mxu0 %v5398
        %5541 = vmatprep.subr.bf16.mxu0 %v5395
        %5542 = vmatpush2.bf16.msra.mxu0 %v5394
        %5543 = vmatprep.subr.bf16.mxu0 %v5391
        %5544 = vmatpush2.bf16.msra.mxu0 %v5390
        %5545 = vmatprep.subr.bf16.mxu0 %v5387
        %5546 = vmatpush2.bf16.msra.mxu0 %v5386
        %5547 = vmatprep.subr.bf16.mxu0 %v5383
        %5548 = vmatpush2.bf16.msra.mxu0 %v5382
        %5549 = vmatprep.mubr.bf16.mxu0 %v4751
        %5550 = vmatmul.mubr.bf16.gmra.mxu0 %v4750
        %v5551 = vpop.f32.mrf.mxu0
        %v5552 = vadd.f32 %v5150, %v5551
        %v5553 = vpop.f32.mrf.mxu0
        %v5554 = vadd.f32 %v5152, %v5553
        %v5555 = vpop.f32.mrf.mxu0
        %v5556 = vpop.f32.mrf.mxu0
        %5557 = vdwg.mxu0
        %5559 = vset.pattern.permute.xlu0 0
        %5560 = vperm.xlu0 %5559, %v3971
        %v5561 = vpop.permute.xlu0 %5560
        %v5563 = vlaneseq
        %v5564 = vshrl.u32 %v5563, 7
        %v5565 = vsub.s32 0, %v5564
        %v5566 = vrot.slane %v5561, %v5565
        %v5567 = vadd.f32 %v5511, %v5566
        %v5568 = vadd.f32 %v5513, %v5566
        %v5569 = vadd.f32 %v5552, %v5566
        %v5570 = vadd.f32 %v5554, %v5566
        %v5575 = vcombine.low %v5567, %v5568
        %v5576 = vcombine.low %v5569, %v5570
        %v5578 = vunpack.c.l.s4 1966171168
        %v5579 = vunpack.c.0.s8 %v5578
        %v5580 = vlaneseq
        %v5581 = vshrl.u32 %v5580, 7
        %v5582 = vsub.s32 %v5579, %v5581
        %v5583 = vrot.slane %v5575, %v5582
        %v5585 = vunpack.c.l.s4 1966171168
        %v5586 = vunpack.c.0.s8 %v5585
        %v5587 = vlaneseq
        %v5588 = vshrl.u32 %v5587, 7
        %v5589 = vsub.s32 %v5586, %v5588
        %v5590 = vrot.slane %v5576, %v5589
        %v5591 = vcombine.low %v5583, %v5590
        %v5593 = vunpack.c.l.s4 1966171168
        %v5594 = vunpack.c.0.s8 %v5593
        %v5595 = vlaneseq
        %v5596 = vshrl.u32 %v5595, 7
        %v5597 = vsub.s32 %v5594, %v5596
        %v5598 = vrot.slane %v5591, %v5597
        %v5600 = vlaneseq
        %vm5601 = vcmp.ge.s32.totalorder %v5600, 0
        %vm5602 = vcmp.lt.s32.totalorder %v5600, 512
        %vm5603 = vmand %vm5601, %vm5602
        %5604 = vst.msk [vmem:[%s877] sm:$0xf] %vm5603, %v5598
        %s5605 = sand.u32 %s522, 1
        %s5606 = scalar_lea.sflag [#allocation5], %s5605
        %s5607 = sand.u32 %s522, 1
        %s5608 = smul.addr %s5607, 4
        %s5609 = scalar_lea.vmem [#allocation24], %s5608
        // Predicated region
        $region161: #{tpu_custom_call.1} parent=107 // pred_check
          %p5610 = pneg %p532
        $region162: #{tpu_custom_call.1} parent=107 // pred_check_branch
          %5612 = sbr.rel (%p5610) target = $region164
        $region163: #{tpu_custom_call.1} parent=107 // pred_region
          %s5614 = ssub.s32 64, 64
          %5615 = vsyncadd %s5606, %s5614
          %s5616 = smul.addr %s47, 4
          %s5617 = smul.addr %s5616, 16
          %s5618 = scalar_lea.hbm %s22, %s5617
          %s5620 = sshll.u32 %s5609, 4
          %s5621 = int_to_ptr.vmem [resolvable:$true] %s5620
          %5623 = dma.vmem_to_hbm [thread:$0]  %s5621, 64, %s5618, %s5606
        $region164: #{tpu_custom_call.1} parent=107 // pred_fallthru
          _
      $region108: #{tpu_custom_call.1} parent=5 // pred_fallthru
        _
      %p5624 = scmp.le.s32.totalorder 2, %s42
      // Predicated region
      $region165: #{tpu_custom_call.1} parent=5 // pred_check
        %p5625 = pneg %p5624
      $region166: #{tpu_custom_call.1} parent=5 // pred_check_branch
        %5627 = sbr.rel (%p5625) target = $region168
      $region167: #{tpu_custom_call.1} parent=5 // pred_region
        %s5628 = ssub.s32 %s42, 2
        // Predicated region
        $region169: #{tpu_custom_call.1} parent=167 // pred_check
          %p5629 = pneg %p538
        $region170: #{tpu_custom_call.1} parent=167 // pred_check_branch
          %5631 = sbr.rel (%p5629) target = $region172
        $region171: #{tpu_custom_call.1} parent=167 // pred_region
          %s5632 = sand.u32 %s523, 1
          %s5633 = scalar_lea.sflag [#allocation5], %s5632
          %s5634 = sand.u32 %s523, 1
          %s5635 = smul.addr %s5634, 4
          %s5636 = scalar_lea.vmem [#allocation24], %s5635
          %5637 = dma.done %s5633, 64
        $region172: #{tpu_custom_call.1} parent=167 // pred_fallthru
          _
      $region168: #{tpu_custom_call.1} parent=5 // pred_fallthru
        _
    $region6: #{tpu_custom_call.1} parent=1 // loop_footer
      %s46 = sadd.s32 1, %s42
    $region7: #{tpu_custom_call.1} parent=1 // loop_footer_branch
      %41 = sbr.rel target = $region3
    $region8: #{tpu_custom_call.1} parent=1 // loop_exit
      _
    %5638 = vsyncpa [#allocation4], 1
    %s5639 = scalar_lea.sflag [#allocation4], 1
    %5640 = vsyncpa %s5639, 1
    %5641 = vsyncpa [#allocation7], 1
    %5642 = vsyncpa [#allocation10], 1
    %5643 = vsyncpa [#allocation13], 1
    %5644 = vsyncpa [#allocation16], 1
    %5645 = vsyncpa [#allocation19], 1
    %5646 = vsyncpa [#allocation22], 1
    %5647 = vsyncpa [#allocation5], 1
    %s5648 = scalar_lea.sflag [#allocation5], 1
    %5649 = vsyncpa %s5648, 1

</llo_original>
